<compile_context>
chip_gen: v7x
topology: tpu7x:2x2x1
jax: 0.10.0
libtpu: 0.0.40
codegen_flags: <defaults>
</compile_context>

<pallas_src>
import functools

import jax
import jax.numpy as jnp
from jax.experimental import pallas as pl
from jax.experimental.pallas import tpu as pltpu


def _round_up(x, m):
    return ((x + m - 1) // m) * m


def _geom(H):
    """Per-gate lane stride G and total packed gate width GT."""
    G = H if 4 * H <= 128 else _round_up(H, 128)   # dense while 4H fits one vreg
    GT = _round_up(4 * G, 128)
    return G, GT


def _pick_vmem_limit_bytes():
    """~75% of physical VMEM, capped at 112 MiB (v5e/v6e -> 96 MiB, v7x -> 48 MiB)."""
    cap = 64 * 1024 * 1024
    try:
        info = pltpu.get_tpu_info()
        cap = int(getattr(info, "vmem_capacity_bytes", cap))
    except Exception:
        pass
    return int(min(112 * 1024 * 1024, cap * 3 // 4))


# ---------------------------------------------------------------------------
# Fused kernel: layer-0 biLSTM + layer-1 reverse-direction LSTM.
#   x_ref        : (T*Bp, E)  bf16, time-major, batch padded to Bp rows per step
#   w*_ih refs   : (in, GT)   bf16, gates packed [i|f|o|g] at stride G
#   w*_hh refs   : (H,  GT)   bf16 (hidden unpadded)
#   b*  refs     : (1,  GT)   f32  (b_ih + b_hh)
#   hfin_ref     : (Bp, H)    f32  = final_hidden_state[-1]
# All intermediates (projections, layer-0 output, h/c state) live in VMEM scratch.
# ---------------------------------------------------------------------------
def _han_bilstm_kernel(x_ref, wihf_ref, whhf_ref, bf_ref,
                       wihb_ref, whhb_ref, bb_ref,
                       wih1f_ref, wih1b_ref, whh1_ref, b1_ref,
                       hfin_ref,
                       xpa_scr, xpb_scr, zf_scr, zb_scr,
                       ha_scr, ca_scr, hb_scr, cb_scr,
                       *, T, Bp, H, G, GT):
    f32 = jnp.float32
    bf16 = jnp.bfloat16

    def cell(pre, c_prev):
        # gates packed [i | f | o | g] at per-gate lane stride G (H real lanes each)
        sig = jax.nn.sigmoid(pre)
        th = jnp.tanh(pre)
        i_g = sig[:, 0 * G:0 * G + H]
        f_g = sig[:, 1 * G:1 * G + H]
        o_g = sig[:, 2 * G:2 * G + H]
        g_g = th[:, 3 * G:3 * G + H]
        c_new = f_g * c_prev + i_g * g_g
        h_new = o_g * jnp.tanh(c_new)
        return h_new, c_new

    # pre fits in one vreg when gates are dense -> unroll=8 is safe on vregs;
    # otherwise keep pressure down with unroll=4.
    unroll = 8 if GT <= 128 else 4

    def run_steps(step_fn):
        if T <= 32:
            # short sequences: full unroll with static, Bp-aligned row offsets
            for t in range(T):
                step_fn(t * Bp, (T - 1 - t) * Bp)
        else:
            def body(t, carry):
                step_fn(pl.multiple_of(t * Bp, Bp),
                        pl.multiple_of((T - 1 - t) * Bp, Bp))
                return carry
            jax.lax.fori_loop(0, T, body, 0, unroll=unroll)

    # ---------------- layer 0: both directions ----------------
    # Hoisted input projections: one big bf16 MXU GEMM per direction + bias once.
    x = x_ref[...]
    xpa_scr[...] = jnp.dot(x, wihf_ref[...], preferred_element_type=f32) + bf_ref[...]
    xpb_scr[...] = jnp.dot(x, wihb_ref[...], preferred_element_type=f32) + bb_ref[...]
    for r in (ha_scr, ca_scr, hb_scr, cb_scr):
        r[...] = jnp.zeros_like(r)

    def l0_step(rf, rb):
        # forward direction at row block rf (time t), backward at rb (time T-1-t)
        pre_f = xpa_scr[pl.ds(rf, Bp), :] + jnp.dot(
            ha_scr[...].astype(bf16), whhf_ref[...], preferred_element_type=f32)
        pre_b = xpb_scr[pl.ds(rb, Bp), :] + jnp.dot(
            hb_scr[...].astype(bf16), whhb_ref[...], preferred_element_type=f32)
        h_f, c_f = cell(pre_f, ca_scr[...])
        h_b, c_b = cell(pre_b, cb_scr[...])
        ha_scr[...] = h_f
        ca_scr[...] = c_f
        hb_scr[...] = h_b
        cb_scr[...] = c_b
        # layer-0 output stays in VMEM (never round-trips HBM); per-direction
        # scratches are full-width stores at the ORIGINAL time rows, so the
        # backward outputs never need a flip.
        zf_scr[pl.ds(rf, Bp), :] = h_f
        zb_scr[pl.ds(rb, Bp), :] = h_b

    run_steps(l0_step)

    # ---------------- layer 1: reverse direction only ----------------
    # Reuse xpa_scr (layer-0 fwd projection is dead) so peak VMEM does not grow.
    xpa_scr[...] = (
        jnp.dot(zf_scr[...].astype(bf16), wih1f_ref[...], preferred_element_type=f32)
        + jnp.dot(zb_scr[...].astype(bf16), wih1b_ref[...], preferred_element_type=f32)
        + b1_ref[...])
    ha_scr[...] = jnp.zeros_like(ha_scr)
    ca_scr[...] = jnp.zeros_like(ca_scr)

    def l1_step(rf, rb):
        del rf  # layer 1 runs the reverse direction only (final_hidden_state[-1])
        pre = xpa_scr[pl.ds(rb, Bp), :] + jnp.dot(
            ha_scr[...].astype(bf16), whh1_ref[...], preferred_element_type=f32)
        h_n, c_n = cell(pre, ca_scr[...])
        ha_scr[...] = h_n
        ca_scr[...] = c_n

    run_steps(l1_step)

    hfin_ref[...] = ha_scr[...]


# ---------------------------------------------------------------------------
# One-time weight preparation (hoisted out of the forward call).
# PyTorch gate order [i, f, g, o] is repacked to [i, f, o, g] at stride G,
# zero-padded to GT lanes, transposed to (in, GT)/(H, GT), and cast to bf16
# (bias stays f32; it is added to the f32 projection, not fed to the MXU).
# ---------------------------------------------------------------------------
_GATE_REORDER = (0, 1, 3, 2)   # dst slot 0..3 takes PyTorch gate i, f, o, g


def _gate_layout(w_t, H, G, GT):
    rows = w_t.shape[0]
    out = jnp.zeros((rows, GT), jnp.float32)
    for dst, src in enumerate(_GATE_REORDER):
        out = out.at[:, dst * G:dst * G + H].set(w_t[:, src * H:(src + 1) * H])
    return out


def _prep_lstm_dir(w_ih, w_hh, b_ih, b_hh, *, H, G, GT):
    wih = _gate_layout(jnp.transpose(w_ih).astype(jnp.float32), H, G, GT)
    whh = _gate_layout(jnp.transpose(w_hh).astype(jnp.float32), H, G, GT)
    bias = _gate_layout((b_ih + b_hh).reshape(1, 4 * H).astype(jnp.float32), H, G, GT)
    return wih.astype(jnp.bfloat16), whh.astype(jnp.bfloat16), bias


def prepare_params(params):
    H = params["fc_w"].shape[1]
    G, GT = _geom(H)
    l0f = _prep_lstm_dir(*params["l0_fwd"], H=H, G=G, GT=GT)
    l0b = _prep_lstm_dir(*params["l0_bwd"], H=H, G=G, GT=GT)
    wih1, whh1, b1 = _prep_lstm_dir(*params["l1_bwd"], H=H, G=G, GT=GT)
    return {
        "embedding": params["embedding"].astype(jnp.float32),
        "fc_w": params["fc_w"].astype(jnp.float32),
        "fc_b": params["fc_b"].astype(jnp.float32),
        "l0f_wih": l0f[0], "l0f_whh": l0f[1], "l0f_b": l0f[2],
        "l0b_wih": l0b[0], "l0b_whh": l0b[1], "l0b_b": l0b[2],
        # layer-1 input is concat([fwd, bwd]); split rows so the kernel can use
        # the two per-direction layer-0 scratches directly.
        "l1_wih_f": wih1[:H, :], "l1_wih_b": wih1[H:, :],
        "l1_whh": whh1, "l1_b": b1,
    }


# ---------------------------------------------------------------------------
# Full HierarchicalAttentionNetwork.forward equivalent (eval mode)
# ---------------------------------------------------------------------------
def han_forward(prepped, line_tensor, adj=None):
    del adj  # unused by the reference forward
    ids = line_tensor.astype(jnp.int32)
    B, T = ids.shape
    H = prepped["fc_w"].shape[1]
    E = prepped["embedding"].shape[1]
    G, GT = _geom(H)
    Bp = _round_up(B, 8)                    # sublane-aligned batch rows per step

    # embedding lookup (gather) + time-major, batch-padded, flattened, bf16 MXU operand
    emb = prepped["embedding"][ids]                              # (B, T, E)
    x = jnp.transpose(emb, (1, 0, 2))                            # (T, B, E)
    x = jnp.pad(x, ((0, 0), (0, Bp - B), (0, 0)))                # (T, Bp, E)
    x2 = x.reshape(T * Bp, E).astype(jnp.bfloat16)

    h_fin_p = pl.pallas_call(
        functools.partial(_han_bilstm_kernel, T=T, Bp=Bp, H=H, G=G, GT=GT),
        out_shape=jax.ShapeDtypeStruct((Bp, H), jnp.float32),
        in_specs=[pl.BlockSpec(memory_space=pltpu.MemorySpace.VMEM)] * 11,
        out_specs=pl.BlockSpec(memory_space=pltpu.MemorySpace.VMEM),
        scratch_shapes=[
            pltpu.VMEM((T * Bp, GT), jnp.float32),   # l0 fwd projection, reused by l1
            pltpu.VMEM((T * Bp, GT), jnp.float32),   # l0 bwd projection
            pltpu.VMEM((T * Bp, H), jnp.float32),    # l0 fwd output (VMEM only)
            pltpu.VMEM((T * Bp, H), jnp.float32),    # l0 bwd output (VMEM only)
            pltpu.VMEM((Bp, H), jnp.float32),        # h (l0 fwd, then l1)
            pltpu.VMEM((Bp, H), jnp.float32),        # c (l0 fwd, then l1)
            pltpu.VMEM((Bp, H), jnp.float32),        # h (l0 bwd)
            pltpu.VMEM((Bp, H), jnp.float32),        # c (l0 bwd)
        ],
        compiler_params=pltpu.CompilerParams(
            vmem_limit_bytes=_pick_vmem_limit_bytes()),
    )(x2,
      prepped["l0f_wih"], prepped["l0f_whh"], prepped["l0f_b"],
      prepped["l0b_wih"], prepped["l0b_whh"], prepped["l0b_b"],
      prepped["l1_wih_f"], prepped["l1_wih_b"], prepped["l1_whh"], prepped["l1_b"])

    sents = h_fin_p[:B, :]                  # final_hidden_state[-1]; dropout = id (eval)
    # fc + sigmoid head on the tiny (B, H) slice, in f32 XLA (review option).
    final_scrs = jax.nn.sigmoid(sents @ prepped["fc_w"].T + prepped["fc_b"])
    word_att_weights = None
    sent_att_weights = None
    return final_scrs, word_att_weights, sent_att_weights, sents


# ---------------------------------------------------------------------------
# Pure-JAX references for verification.
#   mxu_dtype=float32  -> exact module semantics (HIGHEST precision)
#   mxu_dtype=bfloat16 -> same bf16-operand casts as the kernel (tight check)
# ---------------------------------------------------------------------------
def _ref_dot(a, b_t, mxu_dtype):
    if mxu_dtype == jnp.float32:
        return jnp.dot(a, b_t, precision=jax.lax.Precision.HIGHEST)
    return jnp.dot(a.astype(mxu_dtype), b_t.astype(mxu_dtype),
                   preferred_element_type=jnp.float32)


def _lstm_dir_ref(x_tbe, w_ih, w_hh, b_ih, b_hh, mxu_dtype):
    T_, B_, _ = x_tbe.shape
    H = w_hh.shape[1]
    h = jnp.zeros((B_, H), jnp.float32)
    c = jnp.zeros((B_, H), jnp.float32)
    wih_t = jnp.transpose(w_ih).astype(jnp.float32)
    whh_t = jnp.transpose(w_hh).astype(jnp.float32)
    bias = (b_ih + b_hh).astype(jnp.float32)
    outs = []
    for t in range(T_):
        gates = (_ref_dot(x_tbe[t], wih_t, mxu_dtype)
                 + _ref_dot(h, whh_t, mxu_dtype) + bias)
        i = jax.nn.sigmoid(gates[:, :H])
        f = jax.nn.sigmoid(gates[:, H:2 * H])
        g = jnp.tanh(gates[:, 2 * H:3 * H])
        o = jax.nn.sigmoid(gates[:, 3 * H:])
        c = f * c + i * g
        h = o * jnp.tanh(c)
        outs.append(h)
    return jnp.stack(outs), h


def _han_forward_ref(params, ids, mxu_dtype=jnp.float32):
    emb = params["embedding"][ids]
    x = jnp.transpose(emb, (1, 0, 2)).astype(jnp.float32)
    out_f0, _ = _lstm_dir_ref(x, *params["l0_fwd"], mxu_dtype)
    out_b0r, _ = _lstm_dir_ref(jnp.flip(x, axis=0), *params["l0_bwd"], mxu_dtype)
    z = jnp.concatenate([out_f0, jnp.flip(out_b0r, axis=0)], axis=-1)
    _, h_fin = _lstm_dir_ref(jnp.flip(z, axis=0), *params["l1_bwd"], mxu_dtype)
    scores = jax.nn.sigmoid(h_fin @ params["fc_w"].T + params["fc_b"])
    return scores, h_fin


# ---------------------------------------------------------------------------
# Deterministic parameter init (shapes from __init__; synthetic values)
# ---------------------------------------------------------------------------
def init_params(key, vocab_size, embed_dim, hidden_dim):
    keys = jax.random.split(key, 20)
    k = 1.0 / float(hidden_dim) ** 0.5

    def u(kk, shape):
        return jax.random.uniform(kk, shape, jnp.float32, -k, k)

    def lstm_dir(base, in_dim):
        return (u(keys[base + 0], (4 * hidden_dim, in_dim)),      # w_ih
                u(keys[base + 1], (4 * hidden_dim, hidden_dim)),  # w_hh
                u(keys[base + 2], (4 * hidden_dim,)),             # b_ih
                u(keys[base + 3], (4 * hidden_dim,)))             # b_hh

    return {
        "embedding": jax.random.normal(keys[0], (vocab_size, embed_dim), jnp.float32),
        "l0_fwd": lstm_dir(1, embed_dim),
        "l0_bwd": lstm_dir(5, embed_dim),
        "l1_bwd": lstm_dir(9, 2 * hidden_dim),
        "fc_w": u(keys[13], (1, hidden_dim)),
        "fc_b": u(keys[14], (1,)),
        # l1_fwd / layer_norm / attention / context_vector exist in the module
        # but never contribute to the values returned by forward, so omitted.
    }


if __name__ == "__main__":
    VOCAB, EMBED, HIDDEN = 64, 32, 32
    B, T = 2, 8

    key = jax.random.PRNGKey(0)
    kp, ks = jax.random.split(key)
    params = init_params(kp, VOCAB, EMBED, HIDDEN)
    line_tensor = jax.random.randint(ks, (B, T), 0, VOCAB, dtype=jnp.int32)

    prepped = prepare_params(params)          # one-time weight layout / bf16 cast
    han = jax.jit(han_forward)
    final_scrs, w_att, s_att, sents = han(prepped, line_tensor)
    final_scrs = jax.block_until_ready(final_scrs)
    sents = jax.block_until_ready(sents)

    assert final_scrs.shape == (B, 1)
    assert sents.shape == (B, HIDDEN)
    assert w_att is None and s_att is None

    # 1) structural check vs a JAX reference applying the SAME bf16 casts at the
    #    same points (tight tolerance).
    ref_s_bf, ref_h_bf = _han_forward_ref(params, line_tensor, jnp.bfloat16)
    err_h = float(jnp.max(jnp.abs(sents - ref_h_bf)))
    err_s = float(jnp.max(jnp.abs(final_scrs - ref_s_bf)))
    assert err_h < 2e-3 and err_s < 2e-3, (
        f"bf16-matched reference mismatch: h {err_h}, scores {err_s}")

    # 2) drift check vs the exact f32 (HIGHEST) module semantics; bounds the
    #    bf16-MXU quantization introduced for performance.
    ref_s_32, ref_h_32 = _han_forward_ref(params, line_tensor, jnp.float32)
    err_h32 = float(jnp.max(jnp.abs(sents - ref_h_32)))
    err_s32 = float(jnp.max(jnp.abs(final_scrs - ref_s_32)))
    assert err_h32 < 5e-2 and err_s32 < 5e-2, (
        f"f32 reference drift too large: h {err_h32}, scores {err_s32}")

    print("KERNEL_OK")
</pallas_src>

<mosaic_0001>
module attributes {stable_mosaic.version = 11 : i64} {
  func.func @_han_bilstm_kernel(%arg0: memref<64x32xbf16, #tpu.memory_space<vmem>>, %arg1: memref<32x128xbf16, #tpu.memory_space<vmem>>, %arg2: memref<32x128xbf16, #tpu.memory_space<vmem>>, %arg3: memref<1x128xf32, #tpu.memory_space<vmem>>, %arg4: memref<32x128xbf16, #tpu.memory_space<vmem>>, %arg5: memref<32x128xbf16, #tpu.memory_space<vmem>>, %arg6: memref<1x128xf32, #tpu.memory_space<vmem>>, %arg7: memref<32x128xbf16, #tpu.memory_space<vmem>>, %arg8: memref<32x128xbf16, #tpu.memory_space<vmem>>, %arg9: memref<32x128xbf16, #tpu.memory_space<vmem>>, %arg10: memref<1x128xf32, #tpu.memory_space<vmem>>, %arg11: memref<8x32xf32, #tpu.memory_space<vmem>>, %arg12: memref<64x128xf32, #tpu.memory_space<vmem>>, %arg13: memref<64x128xf32, #tpu.memory_space<vmem>>, %arg14: memref<64x32xf32, #tpu.memory_space<vmem>>, %arg15: memref<64x32xf32, #tpu.memory_space<vmem>>, %arg16: memref<8x32xf32, #tpu.memory_space<vmem>>, %arg17: memref<8x32xf32, #tpu.memory_space<vmem>>, %arg18: memref<8x32xf32, #tpu.memory_space<vmem>>, %arg19: memref<8x32xf32, #tpu.memory_space<vmem>>) attributes {dimension_semantics = [], scalar_prefetch = 0 : i64, scratch_operands = 8 : i64, tpu.core_type = #tpu.core_type<tc>} {
    %c0 = arith.constant 0 : index
    %c0_0 = arith.constant 0 : index
    %0 = vector.load %arg0[%c0, %c0_0] : memref<64x32xbf16, #tpu.memory_space<vmem>>, vector<64x32xbf16>
    %c0_1 = arith.constant 0 : index
    %c0_2 = arith.constant 0 : index
    %1 = vector.load %arg1[%c0_1, %c0_2] : memref<32x128xbf16, #tpu.memory_space<vmem>>, vector<32x128xbf16>
    %cst = arith.constant dense<0.000000e+00> : vector<64x128xf32>
    %2 = tpu.matmul %0, %1, %cst {dimension_numbers = #tpu.dot_dimension_numbers<[1], [0], [0], [1], [0, 0, 1, 1], [], []>} : vector<64x32xbf16>, vector<32x128xbf16>, vector<64x128xf32> -> vector<64x128xf32>
    %c0_3 = arith.constant 0 : index
    %c0_4 = arith.constant 0 : index
    %3 = vector.load %arg3[%c0_3, %c0_4] : memref<1x128xf32, #tpu.memory_space<vmem>>, vector<1x128xf32>
    %4 = vector.broadcast %3 : vector<1x128xf32> to vector<64x128xf32>
    %5 = arith.addf %2, %4 : vector<64x128xf32>
    %c0_5 = arith.constant 0 : index
    %c0_6 = arith.constant 0 : index
    %6 = vector.load %arg12[%c0_5, %c0_6] : memref<64x128xf32, #tpu.memory_space<vmem>>, vector<64x128xf32>
    tpu.vector_store %arg12[%c0_5, %c0_6], %5 {strides = array<i32>} : memref<64x128xf32, #tpu.memory_space<vmem>>, vector<64x128xf32>,
    %c0_7 = arith.constant 0 : index
    %c0_8 = arith.constant 0 : index
    %7 = vector.load %arg4[%c0_7, %c0_8] : memref<32x128xbf16, #tpu.memory_space<vmem>>, vector<32x128xbf16>
    %cst_9 = arith.constant dense<0.000000e+00> : vector<64x128xf32>
    %8 = tpu.matmul %0, %7, %cst_9 {dimension_numbers = #tpu.dot_dimension_numbers<[1], [0], [0], [1], [0, 0, 1, 1], [], []>} : vector<64x32xbf16>, vector<32x128xbf16>, vector<64x128xf32> -> vector<64x128xf32>
    %c0_10 = arith.constant 0 : index
    %c0_11 = arith.constant 0 : index
    %9 = vector.load %arg6[%c0_10, %c0_11] : memref<1x128xf32, #tpu.memory_space<vmem>>, vector<1x128xf32>
    %10 = vector.broadcast %9 : vector<1x128xf32> to vector<64x128xf32>
    %11 = arith.addf %8, %10 : vector<64x128xf32>
    %c0_12 = arith.constant 0 : index
    %c0_13 = arith.constant 0 : index
    %12 = vector.load %arg13[%c0_12, %c0_13] : memref<64x128xf32, #tpu.memory_space<vmem>>, vector<64x128xf32>
    tpu.vector_store %arg13[%c0_12, %c0_13], %11 {strides = array<i32>} : memref<64x128xf32, #tpu.memory_space<vmem>>, vector<64x128xf32>,
    %cst_14 = arith.constant 0.000000e+00 : f32
    %13 = vector.broadcast %cst_14 : f32 to vector<8x32xf32>
    %c0_15 = arith.constant 0 : index
    %c0_16 = arith.constant 0 : index
    %14 = vector.load %arg16[%c0_15, %c0_16] : memref<8x32xf32, #tpu.memory_space<vmem>>, vector<8x32xf32>
    tpu.vector_store %arg16[%c0_15, %c0_16], %13 {strides = array<i32>} : memref<8x32xf32, #tpu.memory_space<vmem>>, vector<8x32xf32>,
    %cst_17 = arith.constant 0.000000e+00 : f32
    %15 = vector.broadcast %cst_17 : f32 to vector<8x32xf32>
    %c0_18 = arith.constant 0 : index
    %c0_19 = arith.constant 0 : index
    %16 = vector.load %arg17[%c0_18, %c0_19] : memref<8x32xf32, #tpu.memory_space<vmem>>, vector<8x32xf32>
    tpu.vector_store %arg17[%c0_18, %c0_19], %15 {strides = array<i32>} : memref<8x32xf32, #tpu.memory_space<vmem>>, vector<8x32xf32>,
    %cst_20 = arith.constant 0.000000e+00 : f32
    %17 = vector.broadcast %cst_20 : f32 to vector<8x32xf32>
    %c0_21 = arith.constant 0 : index
    %c0_22 = arith.constant 0 : index
    %18 = vector.load %arg18[%c0_21, %c0_22] : memref<8x32xf32, #tpu.memory_space<vmem>>, vector<8x32xf32>
    tpu.vector_store %arg18[%c0_21, %c0_22], %17 {strides = array<i32>} : memref<8x32xf32, #tpu.memory_space<vmem>>, vector<8x32xf32>,
    %cst_23 = arith.constant 0.000000e+00 : f32
    %19 = vector.broadcast %cst_23 : f32 to vector<8x32xf32>
    %c0_24 = arith.constant 0 : index
    %c0_25 = arith.constant 0 : index
    %20 = vector.load %arg19[%c0_24, %c0_25] : memref<8x32xf32, #tpu.memory_space<vmem>>, vector<8x32xf32>
    tpu.vector_store %arg19[%c0_24, %c0_25], %19 {strides = array<i32>} : memref<8x32xf32, #tpu.memory_space<vmem>>, vector<8x32xf32>,
    %c0_26 = arith.constant 0 : index
    %c0_27 = arith.constant 0 : index
    %21 = vector.load %arg12[%c0_26, %c0_27] : memref<64x128xf32, #tpu.memory_space<vmem>>, vector<8x128xf32>
    %c0_28 = arith.constant 0 : index
    %c0_29 = arith.constant 0 : index
    %22 = vector.load %arg16[%c0_28, %c0_29] : memref<8x32xf32, #tpu.memory_space<vmem>>, vector<8x32xf32>
    %23 = arith.truncf %22 : vector<8x32xf32> to vector<8x32xbf16>
    %c0_30 = arith.constant 0 : index
    %c0_31 = arith.constant 0 : index
    %24 = vector.load %arg2[%c0_30, %c0_31] : memref<32x128xbf16, #tpu.memory_space<vmem>>, vector<32x128xbf16>
    %cst_32 = arith.constant dense<0.000000e+00> : vector<8x128xf32>
    %25 = tpu.matmul %23, %24, %cst_32 {dimension_numbers = #tpu.dot_dimension_numbers<[1], [0], [0], [1], [0, 0, 1, 1], [], []>} : vector<8x32xbf16>, vector<32x128xbf16>, vector<8x128xf32> -> vector<8x128xf32>
    %26 = arith.addf %21, %25 : vector<8x128xf32>
    %c56 = arith.constant 56 : index
    %c0_33 = arith.constant 0 : index
    %27 = vector.load %arg13[%c56, %c0_33] : memref<64x128xf32, #tpu.memory_space<vmem>>, vector<8x128xf32>
    %c0_34 = arith.constant 0 : index
    %c0_35 = arith.constant 0 : index
    %28 = vector.load %arg18[%c0_34, %c0_35] : memref<8x32xf32, #tpu.memory_space<vmem>>, vector<8x32xf32>
    %29 = arith.truncf %28 : vector<8x32xf32> to vector<8x32xbf16>
    %c0_36 = arith.constant 0 : index
    %c0_37 = arith.constant 0 : index
    %30 = vector.load %arg5[%c0_36, %c0_37] : memref<32x128xbf16, #tpu.memory_space<vmem>>, vector<32x128xbf16>
    %cst_38 = arith.constant dense<0.000000e+00> : vector<8x128xf32>
    %31 = tpu.matmul %29, %30, %cst_38 {dimension_numbers = #tpu.dot_dimension_numbers<[1], [0], [0], [1], [0, 0, 1, 1], [], []>} : vector<8x32xbf16>, vector<32x128xbf16>, vector<8x128xf32> -> vector<8x128xf32>
    %32 = arith.addf %27, %31 : vector<8x128xf32>
    %c0_39 = arith.constant 0 : index
    %c0_40 = arith.constant 0 : index
    %33 = vector.load %arg17[%c0_39, %c0_40] : memref<8x32xf32, #tpu.memory_space<vmem>>, vector<8x32xf32>
    %34 = arith.negf %26 : vector<8x128xf32>
    %35 = math.exp %34 : vector<8x128xf32>
    %cst_41 = arith.constant 1.000000e+00 : f32
    %36 = vector.broadcast %cst_41 : f32 to vector<8x128xf32>
    %37 = arith.addf %36, %35 : vector<8x128xf32>
    %38 = arith.divf %36, %37 : vector<8x128xf32>
    %39 = math.tanh %26 : vector<8x128xf32>
    %40 = vector.extract_strided_slice %38 {offsets = [0, 0], sizes = [8, 32], strides = [1, 1]} : vector<8x128xf32> to vector<8x32xf32>
    %41 = vector.extract_strided_slice %38 {offsets = [0, 32], sizes = [8, 32], strides = [1, 1]} : vector<8x128xf32> to vector<8x32xf32>
    %42 = vector.extract_strided_slice %38 {offsets = [0, 64], sizes = [8, 32], strides = [1, 1]} : vector<8x128xf32> to vector<8x32xf32>
    %43 = vector.extract_strided_slice %39 {offsets = [0, 96], sizes = [8, 32], strides = [1, 1]} : vector<8x128xf32> to vector<8x32xf32>
    %44 = arith.mulf %41, %33 : vector<8x32xf32>
    %45 = arith.mulf %40, %43 : vector<8x32xf32>
    %46 = arith.addf %44, %45 : vector<8x32xf32>
    %47 = math.tanh %46 : vector<8x32xf32>
    %48 = arith.mulf %42, %47 : vector<8x32xf32>
    %c0_42 = arith.constant 0 : index
    %c0_43 = arith.constant 0 : index
    %49 = vector.load %arg19[%c0_42, %c0_43] : memref<8x32xf32, #tpu.memory_space<vmem>>, vector<8x32xf32>
    %50 = arith.negf %32 : vector<8x128xf32>
    %51 = math.exp %50 : vector<8x128xf32>
    %cst_44 = arith.constant 1.000000e+00 : f32
    %52 = vector.broadcast %cst_44 : f32 to vector<8x128xf32>
    %53 = arith.addf %52, %51 : vector<8x128xf32>
    %54 = arith.divf %52, %53 : vector<8x128xf32>
    %55 = math.tanh %32 : vector<8x128xf32>
    %56 = vector.extract_strided_slice %54 {offsets = [0, 0], sizes = [8, 32], strides = [1, 1]} : vector<8x128xf32> to vector<8x32xf32>
    %57 = vector.extract_strided_slice %54 {offsets = [0, 32], sizes = [8, 32], strides = [1, 1]} : vector<8x128xf32> to vector<8x32xf32>
    %58 = vector.extract_strided_slice %54 {offsets = [0, 64], sizes = [8, 32], strides = [1, 1]} : vector<8x128xf32> to vector<8x32xf32>
    %59 = vector.extract_strided_slice %55 {offsets = [0, 96], sizes = [8, 32], strides = [1, 1]} : vector<8x128xf32> to vector<8x32xf32>
    %60 = arith.mulf %57, %49 : vector<8x32xf32>
    %61 = arith.mulf %56, %59 : vector<8x32xf32>
    %62 = arith.addf %60, %61 : vector<8x32xf32>
    %63 = math.tanh %62 : vector<8x32xf32>
    %64 = arith.mulf %58, %63 : vector<8x32xf32>
    %c0_45 = arith.constant 0 : index
    %c0_46 = arith.constant 0 : index
    %65 = vector.load %arg16[%c0_45, %c0_46] : memref<8x32xf32, #tpu.memory_space<vmem>>, vector<8x32xf32>
    tpu.vector_store %arg16[%c0_45, %c0_46], %48 {strides = array<i32>} : memref<8x32xf32, #tpu.memory_space<vmem>>, vector<8x32xf32>,
    %c0_47 = arith.constant 0 : index
    %c0_48 = arith.constant 0 : index
    %66 = vector.load %arg17[%c0_47, %c0_48] : memref<8x32xf32, #tpu.memory_space<vmem>>, vector<8x32xf32>
    tpu.vector_store %arg17[%c0_47, %c0_48], %46 {strides = array<i32>} : memref<8x32xf32, #tpu.memory_space<vmem>>, vector<8x32xf32>,
    %c0_49 = arith.constant 0 : index
    %c0_50 = arith.constant 0 : index
    %67 = vector.load %arg18[%c0_49, %c0_50] : memref<8x32xf32, #tpu.memory_space<vmem>>, vector<8x32xf32>
    tpu.vector_store %arg18[%c0_49, %c0_50], %64 {strides = array<i32>} : memref<8x32xf32, #tpu.memory_space<vmem>>, vector<8x32xf32>,
    %c0_51 = arith.constant 0 : index
    %c0_52 = arith.constant 0 : index
    %68 = vector.load %arg19[%c0_51, %c0_52] : memref<8x32xf32, #tpu.memory_space<vmem>>, vector<8x32xf32>
    tpu.vector_store %arg19[%c0_51, %c0_52], %62 {strides = array<i32>} : memref<8x32xf32, #tpu.memory_space<vmem>>, vector<8x32xf32>,
    %c0_53 = arith.constant 0 : index
    %c0_54 = arith.constant 0 : index
    %69 = vector.load %arg14[%c0_53, %c0_54] : memref<64x32xf32, #tpu.memory_space<vmem>>, vector<8x32xf32>
    tpu.vector_store %arg14[%c0_53, %c0_54], %48 {strides = array<i32>} : memref<64x32xf32, #tpu.memory_space<vmem>>, vector<8x32xf32>,
    %c56_55 = arith.constant 56 : index
    %c0_56 = arith.constant 0 : index
    %70 = vector.load %arg15[%c56_55, %c0_56] : memref<64x32xf32, #tpu.memory_space<vmem>>, vector<8x32xf32>
    tpu.vector_store %arg15[%c56_55, %c0_56], %64 {strides = array<i32>} : memref<64x32xf32, #tpu.memory_space<vmem>>, vector<8x32xf32>,
    %c8 = arith.constant 8 : index
    %c0_57 = arith.constant 0 : index
    %71 = vector.load %arg12[%c8, %c0_57] : memref<64x128xf32, #tpu.memory_space<vmem>>, vector<8x128xf32>
    %c0_58 = arith.constant 0 : index
    %c0_59 = arith.constant 0 : index
    %72 = vector.load %arg16[%c0_58, %c0_59] : memref<8x32xf32, #tpu.memory_space<vmem>>, vector<8x32xf32>
    %73 = arith.truncf %72 : vector<8x32xf32> to vector<8x32xbf16>
    %c0_60 = arith.constant 0 : index
    %c0_61 = arith.constant 0 : index
    %74 = vector.load %arg2[%c0_60, %c0_61] : memref<32x128xbf16, #tpu.memory_space<vmem>>, vector<32x128xbf16>
    %cst_62 = arith.constant dense<0.000000e+00> : vector<8x128xf32>
    %75 = tpu.matmul %73, %74, %cst_62 {dimension_numbers = #tpu.dot_dimension_numbers<[1], [0], [0], [1], [0, 0, 1, 1], [], []>} : vector<8x32xbf16>, vector<32x128xbf16>, vector<8x128xf32> -> vector<8x128xf32>
    %76 = arith.addf %71, %75 : vector<8x128xf32>
    %c48 = arith.constant 48 : index
    %c0_63 = arith.constant 0 : index
    %77 = vector.load %arg13[%c48, %c0_63] : memref<64x128xf32, #tpu.memory_space<vmem>>, vector<8x128xf32>
    %c0_64 = arith.constant 0 : index
    %c0_65 = arith.constant 0 : index
    %78 = vector.load %arg18[%c0_64, %c0_65] : memref<8x32xf32, #tpu.memory_space<vmem>>, vector<8x32xf32>
    %79 = arith.truncf %78 : vector<8x32xf32> to vector<8x32xbf16>
    %c0_66 = arith.constant 0 : index
    %c0_67 = arith.constant 0 : index
    %80 = vector.load %arg5[%c0_66, %c0_67] : memref<32x128xbf16, #tpu.memory_space<vmem>>, vector<32x128xbf16>
    %cst_68 = arith.constant dense<0.000000e+00> : vector<8x128xf32>
    %81 = tpu.matmul %79, %80, %cst_68 {dimension_numbers = #tpu.dot_dimension_numbers<[1], [0], [0], [1], [0, 0, 1, 1], [], []>} : vector<8x32xbf16>, vector<32x128xbf16>, vector<8x128xf32> -> vector<8x128xf32>
    %82 = arith.addf %77, %81 : vector<8x128xf32>
    %c0_69 = arith.constant 0 : index
    %c0_70 = arith.constant 0 : index
    %83 = vector.load %arg17[%c0_69, %c0_70] : memref<8x32xf32, #tpu.memory_space<vmem>>, vector<8x32xf32>
    %84 = arith.negf %76 : vector<8x128xf32>
    %85 = math.exp %84 : vector<8x128xf32>
    %cst_71 = arith.constant 1.000000e+00 : f32
    %86 = vector.broadcast %cst_71 : f32 to vector<8x128xf32>
    %87 = arith.addf %86, %85 : vector<8x128xf32>
    %88 = arith.divf %86, %87 : vector<8x128xf32>
    %89 = math.tanh %76 : vector<8x128xf32>
    %90 = vector.extract_strided_slice %88 {offsets = [0, 0], sizes = [8, 32], strides = [1, 1]} : vector<8x128xf32> to vector<8x32xf32>
    %91 = vector.extract_strided_slice %88 {offsets = [0, 32], sizes = [8, 32], strides = [1, 1]} : vector<8x128xf32> to vector<8x32xf32>
    %92 = vector.extract_strided_slice %88 {offsets = [0, 64], sizes = [8, 32], strides = [1, 1]} : vector<8x128xf32> to vector<8x32xf32>
    %93 = vector.extract_strided_slice %89 {offsets = [0, 96], sizes = [8, 32], strides = [1, 1]} : vector<8x128xf32> to vector<8x32xf32>
    %94 = arith.mulf %91, %83 : vector<8x32xf32>
    %95 = arith.mulf %90, %93 : vector<8x32xf32>
    %96 = arith.addf %94, %95 : vector<8x32xf32>
    %97 = math.tanh %96 : vector<8x32xf32>
    %98 = arith.mulf %92, %97 : vector<8x32xf32>
    %c0_72 = arith.constant 0 : index
    %c0_73 = arith.constant 0 : index
    %99 = vector.load %arg19[%c0_72, %c0_73] : memref<8x32xf32, #tpu.memory_space<vmem>>, vector<8x32xf32>
    %100 = arith.negf %82 : vector<8x128xf32>
    %101 = math.exp %100 : vector<8x128xf32>
    %cst_74 = arith.constant 1.000000e+00 : f32
    %102 = vector.broadcast %cst_74 : f32 to vector<8x128xf32>
    %103 = arith.addf %102, %101 : vector<8x128xf32>
    %104 = arith.divf %102, %103 : vector<8x128xf32>
    %105 = math.tanh %82 : vector<8x128xf32>
    %106 = vector.extract_strided_slice %104 {offsets = [0, 0], sizes = [8, 32], strides = [1, 1]} : vector<8x128xf32> to vector<8x32xf32>
    %107 = vector.extract_strided_slice %104 {offsets = [0, 32], sizes = [8, 32], strides = [1, 1]} : vector<8x128xf32> to vector<8x32xf32>
    %108 = vector.extract_strided_slice %104 {offsets = [0, 64], sizes = [8, 32], strides = [1, 1]} : vector<8x128xf32> to vector<8x32xf32>
    %109 = vector.extract_strided_slice %105 {offsets = [0, 96], sizes = [8, 32], strides = [1, 1]} : vector<8x128xf32> to vector<8x32xf32>
    %110 = arith.mulf %107, %99 : vector<8x32xf32>
    %111 = arith.mulf %106, %109 : vector<8x32xf32>
    %112 = arith.addf %110, %111 : vector<8x32xf32>
    %113 = math.tanh %112 : vector<8x32xf32>
    %114 = arith.mulf %108, %113 : vector<8x32xf32>
    %c0_75 = arith.constant 0 : index
    %c0_76 = arith.constant 0 : index
    %115 = vector.load %arg16[%c0_75, %c0_76] : memref<8x32xf32, #tpu.memory_space<vmem>>, vector<8x32xf32>
    tpu.vector_store %arg16[%c0_75, %c0_76], %98 {strides = array<i32>} : memref<8x32xf32, #tpu.memory_space<vmem>>, vector<8x32xf32>,
    %c0_77 = arith.constant 0 : index
    %c0_78 = arith.constant 0 : index
    %116 = vector.load %arg17[%c0_77, %c0_78] : memref<8x32xf32, #tpu.memory_space<vmem>>, vector<8x32xf32>
    tpu.vector_store %arg17[%c0_77, %c0_78], %96 {strides = array<i32>} : memref<8x32xf32, #tpu.memory_space<vmem>>, vector<8x32xf32>,
    %c0_79 = arith.constant 0 : index
    %c0_80 = arith.constant 0 : index
    %117 = vector.load %arg18[%c0_79, %c0_80] : memref<8x32xf32, #tpu.memory_space<vmem>>, vector<8x32xf32>
    tpu.vector_store %arg18[%c0_79, %c0_80], %114 {strides = array<i32>} : memref<8x32xf32, #tpu.memory_space<vmem>>, vector<8x32xf32>,
    %c0_81 = arith.constant 0 : index
    %c0_82 = arith.constant 0 : index
    %118 = vector.load %arg19[%c0_81, %c0_82] : memref<8x32xf32, #tpu.memory_space<vmem>>, vector<8x32xf32>
    tpu.vector_store %arg19[%c0_81, %c0_82], %112 {strides = array<i32>} : memref<8x32xf32, #tpu.memory_space<vmem>>, vector<8x32xf32>,
    %c8_83 = arith.constant 8 : index
    %c0_84 = arith.constant 0 : index
    %119 = vector.load %arg14[%c8_83, %c0_84] : memref<64x32xf32, #tpu.memory_space<vmem>>, vector<8x32xf32>
    tpu.vector_store %arg14[%c8_83, %c0_84], %98 {strides = array<i32>} : memref<64x32xf32, #tpu.memory_space<vmem>>, vector<8x32xf32>,
    %c48_85 = arith.constant 48 : index
    %c0_86 = arith.constant 0 : index
    %120 = vector.load %arg15[%c48_85, %c0_86] : memref<64x32xf32, #tpu.memory_space<vmem>>, vector<8x32xf32>
    tpu.vector_store %arg15[%c48_85, %c0_86], %114 {strides = array<i32>} : memref<64x32xf32, #tpu.memory_space<vmem>>, vector<8x32xf32>,
    %c16 = arith.constant 16 : index
    %c0_87 = arith.constant 0 : index
    %121 = vector.load %arg12[%c16, %c0_87] : memref<64x128xf32, #tpu.memory_space<vmem>>, vector<8x128xf32>
    %c0_88 = arith.constant 0 : index
    %c0_89 = arith.constant 0 : index
    %122 = vector.load %arg16[%c0_88, %c0_89] : memref<8x32xf32, #tpu.memory_space<vmem>>, vector<8x32xf32>
    %123 = arith.truncf %122 : vector<8x32xf32> to vector<8x32xbf16>
    %c0_90 = arith.constant 0 : index
    %c0_91 = arith.constant 0 : index
    %124 = vector.load %arg2[%c0_90, %c0_91] : memref<32x128xbf16, #tpu.memory_space<vmem>>, vector<32x128xbf16>
    %cst_92 = arith.constant dense<0.000000e+00> : vector<8x128xf32>
    %125 = tpu.matmul %123, %124, %cst_92 {dimension_numbers = #tpu.dot_dimension_numbers<[1], [0], [0], [1], [0, 0, 1, 1], [], []>} : vector<8x32xbf16>, vector<32x128xbf16>, vector<8x128xf32> -> vector<8x128xf32>
    %126 = arith.addf %121, %125 : vector<8x128xf32>
    %c40 = arith.constant 40 : index
    %c0_93 = arith.constant 0 : index
    %127 = vector.load %arg13[%c40, %c0_93] : memref<64x128xf32, #tpu.memory_space<vmem>>, vector<8x128xf32>
    %c0_94 = arith.constant 0 : index
    %c0_95 = arith.constant 0 : index
    %128 = vector.load %arg18[%c0_94, %c0_95] : memref<8x32xf32, #tpu.memory_space<vmem>>, vector<8x32xf32>
    %129 = arith.truncf %128 : vector<8x32xf32> to vector<8x32xbf16>
    %c0_96 = arith.constant 0 : index
    %c0_97 = arith.constant 0 : index
    %130 = vector.load %arg5[%c0_96, %c0_97] : memref<32x128xbf16, #tpu.memory_space<vmem>>, vector<32x128xbf16>
    %cst_98 = arith.constant dense<0.000000e+00> : vector<8x128xf32>
    %131 = tpu.matmul %129, %130, %cst_98 {dimension_numbers = #tpu.dot_dimension_numbers<[1], [0], [0], [1], [0, 0, 1, 1], [], []>} : vector<8x32xbf16>, vector<32x128xbf16>, vector<8x128xf32> -> vector<8x128xf32>
    %132 = arith.addf %127, %131 : vector<8x128xf32>
    %c0_99 = arith.constant 0 : index
    %c0_100 = arith.constant 0 : index
    %133 = vector.load %arg17[%c0_99, %c0_100] : memref<8x32xf32, #tpu.memory_space<vmem>>, vector<8x32xf32>
    %134 = arith.negf %126 : vector<8x128xf32>
    %135 = math.exp %134 : vector<8x128xf32>
    %cst_101 = arith.constant 1.000000e+00 : f32
    %136 = vector.broadcast %cst_101 : f32 to vector<8x128xf32>
    %137 = arith.addf %136, %135 : vector<8x128xf32>
    %138 = arith.divf %136, %137 : vector<8x128xf32>
    %139 = math.tanh %126 : vector<8x128xf32>
    %140 = vector.extract_strided_slice %138 {offsets = [0, 0], sizes = [8, 32], strides = [1, 1]} : vector<8x128xf32> to vector<8x32xf32>
    %141 = vector.extract_strided_slice %138 {offsets = [0, 32], sizes = [8, 32], strides = [1, 1]} : vector<8x128xf32> to vector<8x32xf32>
    %142 = vector.extract_strided_slice %138 {offsets = [0, 64], sizes = [8, 32], strides = [1, 1]} : vector<8x128xf32> to vector<8x32xf32>
    %143 = vector.extract_strided_slice %139 {offsets = [0, 96], sizes = [8, 32], strides = [1, 1]} : vector<8x128xf32> to vector<8x32xf32>
    %144 = arith.mulf %141, %133 : vector<8x32xf32>
    %145 = arith.mulf %140, %143 : vector<8x32xf32>
    %146 = arith.addf %144, %145 : vector<8x32xf32>
    %147 = math.tanh %146 : vector<8x32xf32>
    %148 = arith.mulf %142, %147 : vector<8x32xf32>
    %c0_102 = arith.constant 0 : index
    %c0_103 = arith.constant 0 : index
    %149 = vector.load %arg19[%c0_102, %c0_103] : memref<8x32xf32, #tpu.memory_space<vmem>>, vector<8x32xf32>
    %150 = arith.negf %132 : vector<8x128xf32>
    %151 = math.exp %150 : vector<8x128xf32>
    %cst_104 = arith.constant 1.000000e+00 : f32
    %152 = vector.broadcast %cst_104 : f32 to vector<8x128xf32>
    %153 = arith.addf %152, %151 : vector<8x128xf32>
    %154 = arith.divf %152, %153 : vector<8x128xf32>
    %155 = math.tanh %132 : vector<8x128xf32>
    %156 = vector.extract_strided_slice %154 {offsets = [0, 0], sizes = [8, 32], strides = [1, 1]} : vector<8x128xf32> to vector<8x32xf32>
    %157 = vector.extract_strided_slice %154 {offsets = [0, 32], sizes = [8, 32], strides = [1, 1]} : vector<8x128xf32> to vector<8x32xf32>
    %158 = vector.extract_strided_slice %154 {offsets = [0, 64], sizes = [8, 32], strides = [1, 1]} : vector<8x128xf32> to vector<8x32xf32>
    %159 = vector.extract_strided_slice %155 {offsets = [0, 96], sizes = [8, 32], strides = [1, 1]} : vector<8x128xf32> to vector<8x32xf32>
    %160 = arith.mulf %157, %149 : vector<8x32xf32>
    %161 = arith.mulf %156, %159 : vector<8x32xf32>
    %162 = arith.addf %160, %161 : vector<8x32xf32>
    %163 = math.tanh %162 : vector<8x32xf32>
    %164 = arith.mulf %158, %163 : vector<8x32xf32>
    %c0_105 = arith.constant 0 : index
    %c0_106 = arith.constant 0 : index
    %165 = vector.load %arg16[%c0_105, %c0_106] : memref<8x32xf32, #tpu.memory_space<vmem>>, vector<8x32xf32>
    tpu.vector_store %arg16[%c0_105, %c0_106], %148 {strides = array<i32>} : memref<8x32xf32, #tpu.memory_space<vmem>>, vector<8x32xf32>,
    %c0_107 = arith.constant 0 : index
    %c0_108 = arith.constant 0 : index
    %166 = vector.load %arg17[%c0_107, %c0_108] : memref<8x32xf32, #tpu.memory_space<vmem>>, vector<8x32xf32>
    tpu.vector_store %arg17[%c0_107, %c0_108], %146 {strides = array<i32>} : memref<8x32xf32, #tpu.memory_space<vmem>>, vector<8x32xf32>,
    %c0_109 = arith.constant 0 : index
    %c0_110 = arith.constant 0 : index
    %167 = vector.load %arg18[%c0_109, %c0_110] : memref<8x32xf32, #tpu.memory_space<vmem>>, vector<8x32xf32>
    tpu.vector_store %arg18[%c0_109, %c0_110], %164 {strides = array<i32>} : memref<8x32xf32, #tpu.memory_space<vmem>>, vector<8x32xf32>,
    %c0_111 = arith.constant 0 : index
    %c0_112 = arith.constant 0 : index
    %168 = vector.load %arg19[%c0_111, %c0_112] : memref<8x32xf32, #tpu.memory_space<vmem>>, vector<8x32xf32>
    tpu.vector_store %arg19[%c0_111, %c0_112], %162 {strides = array<i32>} : memref<8x32xf32, #tpu.memory_space<vmem>>, vector<8x32xf32>,
    %c16_113 = arith.constant 16 : index
    %c0_114 = arith.constant 0 : index
    %169 = vector.load %arg14[%c16_113, %c0_114] : memref<64x32xf32, #tpu.memory_space<vmem>>, vector<8x32xf32>
    tpu.vector_store %arg14[%c16_113, %c0_114], %148 {strides = array<i32>} : memref<64x32xf32, #tpu.memory_space<vmem>>, vector<8x32xf32>,
    %c40_115 = arith.constant 40 : index
    %c0_116 = arith.constant 0 : index
    %170 = vector.load %arg15[%c40_115, %c0_116] : memref<64x32xf32, #tpu.memory_space<vmem>>, vector<8x32xf32>
    tpu.vector_store %arg15[%c40_115, %c0_116], %164 {strides = array<i32>} : memref<64x32xf32, #tpu.memory_space<vmem>>, vector<8x32xf32>,
    %c24 = arith.constant 24 : index
    %c0_117 = arith.constant 0 : index
    %171 = vector.load %arg12[%c24, %c0_117] : memref<64x128xf32, #tpu.memory_space<vmem>>, vector<8x128xf32>
    %c0_118 = arith.constant 0 : index
    %c0_119 = arith.constant 0 : index
    %172 = vector.load %arg16[%c0_118, %c0_119] : memref<8x32xf32, #tpu.memory_space<vmem>>, vector<8x32xf32>
    %173 = arith.truncf %172 : vector<8x32xf32> to vector<8x32xbf16>
    %c0_120 = arith.constant 0 : index
    %c0_121 = arith.constant 0 : index
    %174 = vector.load %arg2[%c0_120, %c0_121] : memref<32x128xbf16, #tpu.memory_space<vmem>>, vector<32x128xbf16>
    %cst_122 = arith.constant dense<0.000000e+00> : vector<8x128xf32>
    %175 = tpu.matmul %173, %174, %cst_122 {dimension_numbers = #tpu.dot_dimension_numbers<[1], [0], [0], [1], [0, 0, 1, 1], [], []>} : vector<8x32xbf16>, vector<32x128xbf16>, vector<8x128xf32> -> vector<8x128xf32>
    %176 = arith.addf %171, %175 : vector<8x128xf32>
    %c32 = arith.constant 32 : index
    %c0_123 = arith.constant 0 : index
    %177 = vector.load %arg13[%c32, %c0_123] : memref<64x128xf32, #tpu.memory_space<vmem>>, vector<8x128xf32>
    %c0_124 = arith.constant 0 : index
    %c0_125 = arith.constant 0 : index
    %178 = vector.load %arg18[%c0_124, %c0_125] : memref<8x32xf32, #tpu.memory_space<vmem>>, vector<8x32xf32>
    %179 = arith.truncf %178 : vector<8x32xf32> to vector<8x32xbf16>
    %c0_126 = arith.constant 0 : index
    %c0_127 = arith.constant 0 : index
    %180 = vector.load %arg5[%c0_126, %c0_127] : memref<32x128xbf16, #tpu.memory_space<vmem>>, vector<32x128xbf16>
    %cst_128 = arith.constant dense<0.000000e+00> : vector<8x128xf32>
    %181 = tpu.matmul %179, %180, %cst_128 {dimension_numbers = #tpu.dot_dimension_numbers<[1], [0], [0], [1], [0, 0, 1, 1], [], []>} : vector<8x32xbf16>, vector<32x128xbf16>, vector<8x128xf32> -> vector<8x128xf32>
    %182 = arith.addf %177, %181 : vector<8x128xf32>
    %c0_129 = arith.constant 0 : index
    %c0_130 = arith.constant 0 : index
    %183 = vector.load %arg17[%c0_129, %c0_130] : memref<8x32xf32, #tpu.memory_space<vmem>>, vector<8x32xf32>
    %184 = arith.negf %176 : vector<8x128xf32>
    %185 = math.exp %184 : vector<8x128xf32>
    %cst_131 = arith.constant 1.000000e+00 : f32
    %186 = vector.broadcast %cst_131 : f32 to vector<8x128xf32>
    %187 = arith.addf %186, %185 : vector<8x128xf32>
    %188 = arith.divf %186, %187 : vector<8x128xf32>
    %189 = math.tanh %176 : vector<8x128xf32>
    %190 = vector.extract_strided_slice %188 {offsets = [0, 0], sizes = [8, 32], strides = [1, 1]} : vector<8x128xf32> to vector<8x32xf32>
    %191 = vector.extract_strided_slice %188 {offsets = [0, 32], sizes = [8, 32], strides = [1, 1]} : vector<8x128xf32> to vector<8x32xf32>
    %192 = vector.extract_strided_slice %188 {offsets = [0, 64], sizes = [8, 32], strides = [1, 1]} : vector<8x128xf32> to vector<8x32xf32>
    %193 = vector.extract_strided_slice %189 {offsets = [0, 96], sizes = [8, 32], strides = [1, 1]} : vector<8x128xf32> to vector<8x32xf32>
    %194 = arith.mulf %191, %183 : vector<8x32xf32>
    %195 = arith.mulf %190, %193 : vector<8x32xf32>
    %196 = arith.addf %194, %195 : vector<8x32xf32>
    %197 = math.tanh %196 : vector<8x32xf32>
    %198 = arith.mulf %192, %197 : vector<8x32xf32>
    %c0_132 = arith.constant 0 : index
    %c0_133 = arith.constant 0 : index
    %199 = vector.load %arg19[%c0_132, %c0_133] : memref<8x32xf32, #tpu.memory_space<vmem>>, vector<8x32xf32>
    %200 = arith.negf %182 : vector<8x128xf32>
    %201 = math.exp %200 : vector<8x128xf32>
    %cst_134 = arith.constant 1.000000e+00 : f32
    %202 = vector.broadcast %cst_134 : f32 to vector<8x128xf32>
    %203 = arith.addf %202, %201 : vector<8x128xf32>
    %204 = arith.divf %202, %203 : vector<8x128xf32>
    %205 = math.tanh %182 : vector<8x128xf32>
    %206 = vector.extract_strided_slice %204 {offsets = [0, 0], sizes = [8, 32], strides = [1, 1]} : vector<8x128xf32> to vector<8x32xf32>
    %207 = vector.extract_strided_slice %204 {offsets = [0, 32], sizes = [8, 32], strides = [1, 1]} : vector<8x128xf32> to vector<8x32xf32>
    %208 = vector.extract_strided_slice %204 {offsets = [0, 64], sizes = [8, 32], strides = [1, 1]} : vector<8x128xf32> to vector<8x32xf32>
    %209 = vector.extract_strided_slice %205 {offsets = [0, 96], sizes = [8, 32], strides = [1, 1]} : vector<8x128xf32> to vector<8x32xf32>
    %210 = arith.mulf %207, %199 : vector<8x32xf32>
    %211 = arith.mulf %206, %209 : vector<8x32xf32>
    %212 = arith.addf %210, %211 : vector<8x32xf32>
    %213 = math.tanh %212 : vector<8x32xf32>
    %214 = arith.mulf %208, %213 : vector<8x32xf32>
    %c0_135 = arith.constant 0 : index
    %c0_136 = arith.constant 0 : index
    %215 = vector.load %arg16[%c0_135, %c0_136] : memref<8x32xf32, #tpu.memory_space<vmem>>, vector<8x32xf32>
    tpu.vector_store %arg16[%c0_135, %c0_136], %198 {strides = array<i32>} : memref<8x32xf32, #tpu.memory_space<vmem>>, vector<8x32xf32>,
    %c0_137 = arith.constant 0 : index
    %c0_138 = arith.constant 0 : index
    %216 = vector.load %arg17[%c0_137, %c0_138] : memref<8x32xf32, #tpu.memory_space<vmem>>, vector<8x32xf32>
    tpu.vector_store %arg17[%c0_137, %c0_138], %196 {strides = array<i32>} : memref<8x32xf32, #tpu.memory_space<vmem>>, vector<8x32xf32>,
    %c0_139 = arith.constant 0 : index
    %c0_140 = arith.constant 0 : index
    %217 = vector.load %arg18[%c0_139, %c0_140] : memref<8x32xf32, #tpu.memory_space<vmem>>, vector<8x32xf32>
    tpu.vector_store %arg18[%c0_139, %c0_140], %214 {strides = array<i32>} : memref<8x32xf32, #tpu.memory_space<vmem>>, vector<8x32xf32>,
    %c0_141 = arith.constant 0 : index
    %c0_142 = arith.constant 0 : index
    %218 = vector.load %arg19[%c0_141, %c0_142] : memref<8x32xf32, #tpu.memory_space<vmem>>, vector<8x32xf32>
    tpu.vector_store %arg19[%c0_141, %c0_142], %212 {strides = array<i32>} : memref<8x32xf32, #tpu.memory_space<vmem>>, vector<8x32xf32>,
    %c24_143 = arith.constant 24 : index
    %c0_144 = arith.constant 0 : index
    %219 = vector.load %arg14[%c24_143, %c0_144] : memref<64x32xf32, #tpu.memory_space<vmem>>, vector<8x32xf32>
    tpu.vector_store %arg14[%c24_143, %c0_144], %198 {strides = array<i32>} : memref<64x32xf32, #tpu.memory_space<vmem>>, vector<8x32xf32>,
    %c32_145 = arith.constant 32 : index
    %c0_146 = arith.constant 0 : index
    %220 = vector.load %arg15[%c32_145, %c0_146] : memref<64x32xf32, #tpu.memory_space<vmem>>, vector<8x32xf32>
    tpu.vector_store %arg15[%c32_145, %c0_146], %214 {strides = array<i32>} : memref<64x32xf32, #tpu.memory_space<vmem>>, vector<8x32xf32>,
    %c32_147 = arith.constant 32 : index
    %c0_148 = arith.constant 0 : index
    %221 = vector.load %arg12[%c32_147, %c0_148] : memref<64x128xf32, #tpu.memory_space<vmem>>, vector<8x128xf32>
    %c0_149 = arith.constant 0 : index
    %c0_150 = arith.constant 0 : index
    %222 = vector.load %arg16[%c0_149, %c0_150] : memref<8x32xf32, #tpu.memory_space<vmem>>, vector<8x32xf32>
    %223 = arith.truncf %222 : vector<8x32xf32> to vector<8x32xbf16>
    %c0_151 = arith.constant 0 : index
    %c0_152 = arith.constant 0 : index
    %224 = vector.load %arg2[%c0_151, %c0_152] : memref<32x128xbf16, #tpu.memory_space<vmem>>, vector<32x128xbf16>
    %cst_153 = arith.constant dense<0.000000e+00> : vector<8x128xf32>
    %225 = tpu.matmul %223, %224, %cst_153 {dimension_numbers = #tpu.dot_dimension_numbers<[1], [0], [0], [1], [0, 0, 1, 1], [], []>} : vector<8x32xbf16>, vector<32x128xbf16>, vector<8x128xf32> -> vector<8x128xf32>
    %226 = arith.addf %221, %225 : vector<8x128xf32>
    %c24_154 = arith.constant 24 : index
    %c0_155 = arith.constant 0 : index
    %227 = vector.load %arg13[%c24_154, %c0_155] : memref<64x128xf32, #tpu.memory_space<vmem>>, vector<8x128xf32>
    %c0_156 = arith.constant 0 : index
    %c0_157 = arith.constant 0 : index
    %228 = vector.load %arg18[%c0_156, %c0_157] : memref<8x32xf32, #tpu.memory_space<vmem>>, vector<8x32xf32>
    %229 = arith.truncf %228 : vector<8x32xf32> to vector<8x32xbf16>
    %c0_158 = arith.constant 0 : index
    %c0_159 = arith.constant 0 : index
    %230 = vector.load %arg5[%c0_158, %c0_159] : memref<32x128xbf16, #tpu.memory_space<vmem>>, vector<32x128xbf16>
    %cst_160 = arith.constant dense<0.000000e+00> : vector<8x128xf32>
    %231 = tpu.matmul %229, %230, %cst_160 {dimension_numbers = #tpu.dot_dimension_numbers<[1], [0], [0], [1], [0, 0, 1, 1], [], []>} : vector<8x32xbf16>, vector<32x128xbf16>, vector<8x128xf32> -> vector<8x128xf32>
    %232 = arith.addf %227, %231 : vector<8x128xf32>
    %c0_161 = arith.constant 0 : index
    %c0_162 = arith.constant 0 : index
    %233 = vector.load %arg17[%c0_161, %c0_162] : memref<8x32xf32, #tpu.memory_space<vmem>>, vector<8x32xf32>
    %234 = arith.negf %226 : vector<8x128xf32>
    %235 = math.exp %234 : vector<8x128xf32>
    %cst_163 = arith.constant 1.000000e+00 : f32
    %236 = vector.broadcast %cst_163 : f32 to vector<8x128xf32>
    %237 = arith.addf %236, %235 : vector<8x128xf32>
    %238 = arith.divf %236, %237 : vector<8x128xf32>
    %239 = math.tanh %226 : vector<8x128xf32>
    %240 = vector.extract_strided_slice %238 {offsets = [0, 0], sizes = [8, 32], strides = [1, 1]} : vector<8x128xf32> to vector<8x32xf32>
    %241 = vector.extract_strided_slice %238 {offsets = [0, 32], sizes = [8, 32], strides = [1, 1]} : vector<8x128xf32> to vector<8x32xf32>
    %242 = vector.extract_strided_slice %238 {offsets = [0, 64], sizes = [8, 32], strides = [1, 1]} : vector<8x128xf32> to vector<8x32xf32>
    %243 = vector.extract_strided_slice %239 {offsets = [0, 96], sizes = [8, 32], strides = [1, 1]} : vector<8x128xf32> to vector<8x32xf32>
    %244 = arith.mulf %241, %233 : vector<8x32xf32>
    %245 = arith.mulf %240, %243 : vector<8x32xf32>
    %246 = arith.addf %244, %245 : vector<8x32xf32>
    %247 = math.tanh %246 : vector<8x32xf32>
    %248 = arith.mulf %242, %247 : vector<8x32xf32>
    %c0_164 = arith.constant 0 : index
    %c0_165 = arith.constant 0 : index
    %249 = vector.load %arg19[%c0_164, %c0_165] : memref<8x32xf32, #tpu.memory_space<vmem>>, vector<8x32xf32>
    %250 = arith.negf %232 : vector<8x128xf32>
    %251 = math.exp %250 : vector<8x128xf32>
    %cst_166 = arith.constant 1.000000e+00 : f32
    %252 = vector.broadcast %cst_166 : f32 to vector<8x128xf32>
    %253 = arith.addf %252, %251 : vector<8x128xf32>
    %254 = arith.divf %252, %253 : vector<8x128xf32>
    %255 = math.tanh %232 : vector<8x128xf32>
    %256 = vector.extract_strided_slice %254 {offsets = [0, 0], sizes = [8, 32], strides = [1, 1]} : vector<8x128xf32> to vector<8x32xf32>
    %257 = vector.extract_strided_slice %254 {offsets = [0, 32], sizes = [8, 32], strides = [1, 1]} : vector<8x128xf32> to vector<8x32xf32>
    %258 = vector.extract_strided_slice %254 {offsets = [0, 64], sizes = [8, 32], strides = [1, 1]} : vector<8x128xf32> to vector<8x32xf32>
    %259 = vector.extract_strided_slice %255 {offsets = [0, 96], sizes = [8, 32], strides = [1, 1]} : vector<8x128xf32> to vector<8x32xf32>
    %260 = arith.mulf %257, %249 : vector<8x32xf32>
    %261 = arith.mulf %256, %259 : vector<8x32xf32>
    %262 = arith.addf %260, %261 : vector<8x32xf32>
    %263 = math.tanh %262 : vector<8x32xf32>
    %264 = arith.mulf %258, %263 : vector<8x32xf32>
    %c0_167 = arith.constant 0 : index
    %c0_168 = arith.constant 0 : index
    %265 = vector.load %arg16[%c0_167, %c0_168] : memref<8x32xf32, #tpu.memory_space<vmem>>, vector<8x32xf32>
    tpu.vector_store %arg16[%c0_167, %c0_168], %248 {strides = array<i32>} : memref<8x32xf32, #tpu.memory_space<vmem>>, vector<8x32xf32>,
    %c0_169 = arith.constant 0 : index
    %c0_170 = arith.constant 0 : index
    %266 = vector.load %arg17[%c0_169, %c0_170] : memref<8x32xf32, #tpu.memory_space<vmem>>, vector<8x32xf32>
    tpu.vector_store %arg17[%c0_169, %c0_170], %246 {strides = array<i32>} : memref<8x32xf32, #tpu.memory_space<vmem>>, vector<8x32xf32>,
    %c0_171 = arith.constant 0 : index
    %c0_172 = arith.constant 0 : index
    %267 = vector.load %arg18[%c0_171, %c0_172] : memref<8x32xf32, #tpu.memory_space<vmem>>, vector<8x32xf32>
    tpu.vector_store %arg18[%c0_171, %c0_172], %264 {strides = array<i32>} : memref<8x32xf32, #tpu.memory_space<vmem>>, vector<8x32xf32>,
    %c0_173 = arith.constant 0 : index
    %c0_174 = arith.constant 0 : index
    %268 = vector.load %arg19[%c0_173, %c0_174] : memref<8x32xf32, #tpu.memory_space<vmem>>, vector<8x32xf32>
    tpu.vector_store %arg19[%c0_173, %c0_174], %262 {strides = array<i32>} : memref<8x32xf32, #tpu.memory_space<vmem>>, vector<8x32xf32>,
    %c32_175 = arith.constant 32 : index
    %c0_176 = arith.constant 0 : index
    %269 = vector.load %arg14[%c32_175, %c0_176] : memref<64x32xf32, #tpu.memory_space<vmem>>, vector<8x32xf32>
    tpu.vector_store %arg14[%c32_175, %c0_176], %248 {strides = array<i32>} : memref<64x32xf32, #tpu.memory_space<vmem>>, vector<8x32xf32>,
    %c24_177 = arith.constant 24 : index
    %c0_178 = arith.constant 0 : index
    %270 = vector.load %arg15[%c24_177, %c0_178] : memref<64x32xf32, #tpu.memory_space<vmem>>, vector<8x32xf32>
    tpu.vector_store %arg15[%c24_177, %c0_178], %264 {strides = array<i32>} : memref<64x32xf32, #tpu.memory_space<vmem>>, vector<8x32xf32>,
    %c40_179 = arith.constant 40 : index
    %c0_180 = arith.constant 0 : index
    %271 = vector.load %arg12[%c40_179, %c0_180] : memref<64x128xf32, #tpu.memory_space<vmem>>, vector<8x128xf32>
    %c0_181 = arith.constant 0 : index
    %c0_182 = arith.constant 0 : index
    %272 = vector.load %arg16[%c0_181, %c0_182] : memref<8x32xf32, #tpu.memory_space<vmem>>, vector<8x32xf32>
    %273 = arith.truncf %272 : vector<8x32xf32> to vector<8x32xbf16>
    %c0_183 = arith.constant 0 : index
    %c0_184 = arith.constant 0 : index
    %274 = vector.load %arg2[%c0_183, %c0_184] : memref<32x128xbf16, #tpu.memory_space<vmem>>, vector<32x128xbf16>
    %cst_185 = arith.constant dense<0.000000e+00> : vector<8x128xf32>
    %275 = tpu.matmul %273, %274, %cst_185 {dimension_numbers = #tpu.dot_dimension_numbers<[1], [0], [0], [1], [0, 0, 1, 1], [], []>} : vector<8x32xbf16>, vector<32x128xbf16>, vector<8x128xf32> -> vector<8x128xf32>
    %276 = arith.addf %271, %275 : vector<8x128xf32>
    %c16_186 = arith.constant 16 : index
    %c0_187 = arith.constant 0 : index
    %277 = vector.load %arg13[%c16_186, %c0_187] : memref<64x128xf32, #tpu.memory_space<vmem>>, vector<8x128xf32>
    %c0_188 = arith.constant 0 : index
    %c0_189 = arith.constant 0 : index
    %278 = vector.load %arg18[%c0_188, %c0_189] : memref<8x32xf32, #tpu.memory_space<vmem>>, vector<8x32xf32>
    %279 = arith.truncf %278 : vector<8x32xf32> to vector<8x32xbf16>
    %c0_190 = arith.constant 0 : index
    %c0_191 = arith.constant 0 : index
    %280 = vector.load %arg5[%c0_190, %c0_191] : memref<32x128xbf16, #tpu.memory_space<vmem>>, vector<32x128xbf16>
    %cst_192 = arith.constant dense<0.000000e+00> : vector<8x128xf32>
    %281 = tpu.matmul %279, %280, %cst_192 {dimension_numbers = #tpu.dot_dimension_numbers<[1], [0], [0], [1], [0, 0, 1, 1], [], []>} : vector<8x32xbf16>, vector<32x128xbf16>, vector<8x128xf32> -> vector<8x128xf32>
    %282 = arith.addf %277, %281 : vector<8x128xf32>
    %c0_193 = arith.constant 0 : index
    %c0_194 = arith.constant 0 : index
    %283 = vector.load %arg17[%c0_193, %c0_194] : memref<8x32xf32, #tpu.memory_space<vmem>>, vector<8x32xf32>
    %284 = arith.negf %276 : vector<8x128xf32>
    %285 = math.exp %284 : vector<8x128xf32>
    %cst_195 = arith.constant 1.000000e+00 : f32
    %286 = vector.broadcast %cst_195 : f32 to vector<8x128xf32>
    %287 = arith.addf %286, %285 : vector<8x128xf32>
    %288 = arith.divf %286, %287 : vector<8x128xf32>
    %289 = math.tanh %276 : vector<8x128xf32>
    %290 = vector.extract_strided_slice %288 {offsets = [0, 0], sizes = [8, 32], strides = [1, 1]} : vector<8x128xf32> to vector<8x32xf32>
    %291 = vector.extract_strided_slice %288 {offsets = [0, 32], sizes = [8, 32], strides = [1, 1]} : vector<8x128xf32> to vector<8x32xf32>
    %292 = vector.extract_strided_slice %288 {offsets = [0, 64], sizes = [8, 32], strides = [1, 1]} : vector<8x128xf32> to vector<8x32xf32>
    %293 = vector.extract_strided_slice %289 {offsets = [0, 96], sizes = [8, 32], strides = [1, 1]} : vector<8x128xf32> to vector<8x32xf32>
    %294 = arith.mulf %291, %283 : vector<8x32xf32>
    %295 = arith.mulf %290, %293 : vector<8x32xf32>
    %296 = arith.addf %294, %295 : vector<8x32xf32>
    %297 = math.tanh %296 : vector<8x32xf32>
    %298 = arith.mulf %292, %297 : vector<8x32xf32>
    %c0_196 = arith.constant 0 : index
    %c0_197 = arith.constant 0 : index
    %299 = vector.load %arg19[%c0_196, %c0_197] : memref<8x32xf32, #tpu.memory_space<vmem>>, vector<8x32xf32>
    %300 = arith.negf %282 : vector<8x128xf32>
    %301 = math.exp %300 : vector<8x128xf32>
    %cst_198 = arith.constant 1.000000e+00 : f32
    %302 = vector.broadcast %cst_198 : f32 to vector<8x128xf32>
    %303 = arith.addf %302, %301 : vector<8x128xf32>
    %304 = arith.divf %302, %303 : vector<8x128xf32>
    %305 = math.tanh %282 : vector<8x128xf32>
    %306 = vector.extract_strided_slice %304 {offsets = [0, 0], sizes = [8, 32], strides = [1, 1]} : vector<8x128xf32> to vector<8x32xf32>
    %307 = vector.extract_strided_slice %304 {offsets = [0, 32], sizes = [8, 32], strides = [1, 1]} : vector<8x128xf32> to vector<8x32xf32>
    %308 = vector.extract_strided_slice %304 {offsets = [0, 64], sizes = [8, 32], strides = [1, 1]} : vector<8x128xf32> to vector<8x32xf32>
    %309 = vector.extract_strided_slice %305 {offsets = [0, 96], sizes = [8, 32], strides = [1, 1]} : vector<8x128xf32> to vector<8x32xf32>
    %310 = arith.mulf %307, %299 : vector<8x32xf32>
    %311 = arith.mulf %306, %309 : vector<8x32xf32>
    %312 = arith.addf %310, %311 : vector<8x32xf32>
    %313 = math.tanh %312 : vector<8x32xf32>
    %314 = arith.mulf %308, %313 : vector<8x32xf32>
    %c0_199 = arith.constant 0 : index
    %c0_200 = arith.constant 0 : index
    %315 = vector.load %arg16[%c0_199, %c0_200] : memref<8x32xf32, #tpu.memory_space<vmem>>, vector<8x32xf32>
    tpu.vector_store %arg16[%c0_199, %c0_200], %298 {strides = array<i32>} : memref<8x32xf32, #tpu.memory_space<vmem>>, vector<8x32xf32>,
    %c0_201 = arith.constant 0 : index
    %c0_202 = arith.constant 0 : index
    %316 = vector.load %arg17[%c0_201, %c0_202] : memref<8x32xf32, #tpu.memory_space<vmem>>, vector<8x32xf32>
    tpu.vector_store %arg17[%c0_201, %c0_202], %296 {strides = array<i32>} : memref<8x32xf32, #tpu.memory_space<vmem>>, vector<8x32xf32>,
    %c0_203 = arith.constant 0 : index
    %c0_204 = arith.constant 0 : index
    %317 = vector.load %arg18[%c0_203, %c0_204] : memref<8x32xf32, #tpu.memory_space<vmem>>, vector<8x32xf32>
    tpu.vector_store %arg18[%c0_203, %c0_204], %314 {strides = array<i32>} : memref<8x32xf32, #tpu.memory_space<vmem>>, vector<8x32xf32>,
    %c0_205 = arith.constant 0 : index
    %c0_206 = arith.constant 0 : index
    %318 = vector.load %arg19[%c0_205, %c0_206] : memref<8x32xf32, #tpu.memory_space<vmem>>, vector<8x32xf32>
    tpu.vector_store %arg19[%c0_205, %c0_206], %312 {strides = array<i32>} : memref<8x32xf32, #tpu.memory_space<vmem>>, vector<8x32xf32>,
    %c40_207 = arith.constant 40 : index
    %c0_208 = arith.constant 0 : index
    %319 = vector.load %arg14[%c40_207, %c0_208] : memref<64x32xf32, #tpu.memory_space<vmem>>, vector<8x32xf32>
    tpu.vector_store %arg14[%c40_207, %c0_208], %298 {strides = array<i32>} : memref<64x32xf32, #tpu.memory_space<vmem>>, vector<8x32xf32>,
    %c16_209 = arith.constant 16 : index
    %c0_210 = arith.constant 0 : index
    %320 = vector.load %arg15[%c16_209, %c0_210] : memref<64x32xf32, #tpu.memory_space<vmem>>, vector<8x32xf32>
    tpu.vector_store %arg15[%c16_209, %c0_210], %314 {strides = array<i32>} : memref<64x32xf32, #tpu.memory_space<vmem>>, vector<8x32xf32>,
    %c48_211 = arith.constant 48 : index
    %c0_212 = arith.constant 0 : index
    %321 = vector.load %arg12[%c48_211, %c0_212] : memref<64x128xf32, #tpu.memory_space<vmem>>, vector<8x128xf32>
    %c0_213 = arith.constant 0 : index
    %c0_214 = arith.constant 0 : index
    %322 = vector.load %arg16[%c0_213, %c0_214] : memref<8x32xf32, #tpu.memory_space<vmem>>, vector<8x32xf32>
    %323 = arith.truncf %322 : vector<8x32xf32> to vector<8x32xbf16>
    %c0_215 = arith.constant 0 : index
    %c0_216 = arith.constant 0 : index
    %324 = vector.load %arg2[%c0_215, %c0_216] : memref<32x128xbf16, #tpu.memory_space<vmem>>, vector<32x128xbf16>
    %cst_217 = arith.constant dense<0.000000e+00> : vector<8x128xf32>
    %325 = tpu.matmul %323, %324, %cst_217 {dimension_numbers = #tpu.dot_dimension_numbers<[1], [0], [0], [1], [0, 0, 1, 1], [], []>} : vector<8x32xbf16>, vector<32x128xbf16>, vector<8x128xf32> -> vector<8x128xf32>
    %326 = arith.addf %321, %325 : vector<8x128xf32>
    %c8_218 = arith.constant 8 : index
    %c0_219 = arith.constant 0 : index
    %327 = vector.load %arg13[%c8_218, %c0_219] : memref<64x128xf32, #tpu.memory_space<vmem>>, vector<8x128xf32>
    %c0_220 = arith.constant 0 : index
    %c0_221 = arith.constant 0 : index
    %328 = vector.load %arg18[%c0_220, %c0_221] : memref<8x32xf32, #tpu.memory_space<vmem>>, vector<8x32xf32>
    %329 = arith.truncf %328 : vector<8x32xf32> to vector<8x32xbf16>
    %c0_222 = arith.constant 0 : index
    %c0_223 = arith.constant 0 : index
    %330 = vector.load %arg5[%c0_222, %c0_223] : memref<32x128xbf16, #tpu.memory_space<vmem>>, vector<32x128xbf16>
    %cst_224 = arith.constant dense<0.000000e+00> : vector<8x128xf32>
    %331 = tpu.matmul %329, %330, %cst_224 {dimension_numbers = #tpu.dot_dimension_numbers<[1], [0], [0], [1], [0, 0, 1, 1], [], []>} : vector<8x32xbf16>, vector<32x128xbf16>, vector<8x128xf32> -> vector<8x128xf32>
    %332 = arith.addf %327, %331 : vector<8x128xf32>
    %c0_225 = arith.constant 0 : index
    %c0_226 = arith.constant 0 : index
    %333 = vector.load %arg17[%c0_225, %c0_226] : memref<8x32xf32, #tpu.memory_space<vmem>>, vector<8x32xf32>
    %334 = arith.negf %326 : vector<8x128xf32>
    %335 = math.exp %334 : vector<8x128xf32>
    %cst_227 = arith.constant 1.000000e+00 : f32
    %336 = vector.broadcast %cst_227 : f32 to vector<8x128xf32>
    %337 = arith.addf %336, %335 : vector<8x128xf32>
    %338 = arith.divf %336, %337 : vector<8x128xf32>
    %339 = math.tanh %326 : vector<8x128xf32>
    %340 = vector.extract_strided_slice %338 {offsets = [0, 0], sizes = [8, 32], strides = [1, 1]} : vector<8x128xf32> to vector<8x32xf32>
    %341 = vector.extract_strided_slice %338 {offsets = [0, 32], sizes = [8, 32], strides = [1, 1]} : vector<8x128xf32> to vector<8x32xf32>
    %342 = vector.extract_strided_slice %338 {offsets = [0, 64], sizes = [8, 32], strides = [1, 1]} : vector<8x128xf32> to vector<8x32xf32>
    %343 = vector.extract_strided_slice %339 {offsets = [0, 96], sizes = [8, 32], strides = [1, 1]} : vector<8x128xf32> to vector<8x32xf32>
    %344 = arith.mulf %341, %333 : vector<8x32xf32>
    %345 = arith.mulf %340, %343 : vector<8x32xf32>
    %346 = arith.addf %344, %345 : vector<8x32xf32>
    %347 = math.tanh %346 : vector<8x32xf32>
    %348 = arith.mulf %342, %347 : vector<8x32xf32>
    %c0_228 = arith.constant 0 : index
    %c0_229 = arith.constant 0 : index
    %349 = vector.load %arg19[%c0_228, %c0_229] : memref<8x32xf32, #tpu.memory_space<vmem>>, vector<8x32xf32>
    %350 = arith.negf %332 : vector<8x128xf32>
    %351 = math.exp %350 : vector<8x128xf32>
    %cst_230 = arith.constant 1.000000e+00 : f32
    %352 = vector.broadcast %cst_230 : f32 to vector<8x128xf32>
    %353 = arith.addf %352, %351 : vector<8x128xf32>
    %354 = arith.divf %352, %353 : vector<8x128xf32>
    %355 = math.tanh %332 : vector<8x128xf32>
    %356 = vector.extract_strided_slice %354 {offsets = [0, 0], sizes = [8, 32], strides = [1, 1]} : vector<8x128xf32> to vector<8x32xf32>
    %357 = vector.extract_strided_slice %354 {offsets = [0, 32], sizes = [8, 32], strides = [1, 1]} : vector<8x128xf32> to vector<8x32xf32>
    %358 = vector.extract_strided_slice %354 {offsets = [0, 64], sizes = [8, 32], strides = [1, 1]} : vector<8x128xf32> to vector<8x32xf32>
    %359 = vector.extract_strided_slice %355 {offsets = [0, 96], sizes = [8, 32], strides = [1, 1]} : vector<8x128xf32> to vector<8x32xf32>
    %360 = arith.mulf %357, %349 : vector<8x32xf32>
    %361 = arith.mulf %356, %359 : vector<8x32xf32>
    %362 = arith.addf %360, %361 : vector<8x32xf32>
    %363 = math.tanh %362 : vector<8x32xf32>
    %364 = arith.mulf %358, %363 : vector<8x32xf32>
    %c0_231 = arith.constant 0 : index
    %c0_232 = arith.constant 0 : index
    %365 = vector.load %arg16[%c0_231, %c0_232] : memref<8x32xf32, #tpu.memory_space<vmem>>, vector<8x32xf32>
    tpu.vector_store %arg16[%c0_231, %c0_232], %348 {strides = array<i32>} : memref<8x32xf32, #tpu.memory_space<vmem>>, vector<8x32xf32>,
    %c0_233 = arith.constant 0 : index
    %c0_234 = arith.constant 0 : index
    %366 = vector.load %arg17[%c0_233, %c0_234] : memref<8x32xf32, #tpu.memory_space<vmem>>, vector<8x32xf32>
    tpu.vector_store %arg17[%c0_233, %c0_234], %346 {strides = array<i32>} : memref<8x32xf32, #tpu.memory_space<vmem>>, vector<8x32xf32>,
    %c0_235 = arith.constant 0 : index
    %c0_236 = arith.constant 0 : index
    %367 = vector.load %arg18[%c0_235, %c0_236] : memref<8x32xf32, #tpu.memory_space<vmem>>, vector<8x32xf32>
    tpu.vector_store %arg18[%c0_235, %c0_236], %364 {strides = array<i32>} : memref<8x32xf32, #tpu.memory_space<vmem>>, vector<8x32xf32>,
    %c0_237 = arith.constant 0 : index
    %c0_238 = arith.constant 0 : index
    %368 = vector.load %arg19[%c0_237, %c0_238] : memref<8x32xf32, #tpu.memory_space<vmem>>, vector<8x32xf32>
    tpu.vector_store %arg19[%c0_237, %c0_238], %362 {strides = array<i32>} : memref<8x32xf32, #tpu.memory_space<vmem>>, vector<8x32xf32>,
    %c48_239 = arith.constant 48 : index
    %c0_240 = arith.constant 0 : index
    %369 = vector.load %arg14[%c48_239, %c0_240] : memref<64x32xf32, #tpu.memory_space<vmem>>, vector<8x32xf32>
    tpu.vector_store %arg14[%c48_239, %c0_240], %348 {strides = array<i32>} : memref<64x32xf32, #tpu.memory_space<vmem>>, vector<8x32xf32>,
    %c8_241 = arith.constant 8 : index
    %c0_242 = arith.constant 0 : index
    %370 = vector.load %arg15[%c8_241, %c0_242] : memref<64x32xf32, #tpu.memory_space<vmem>>, vector<8x32xf32>
    tpu.vector_store %arg15[%c8_241, %c0_242], %364 {strides = array<i32>} : memref<64x32xf32, #tpu.memory_space<vmem>>, vector<8x32xf32>,
    %c56_243 = arith.constant 56 : index
    %c0_244 = arith.constant 0 : index
    %371 = vector.load %arg12[%c56_243, %c0_244] : memref<64x128xf32, #tpu.memory_space<vmem>>, vector<8x128xf32>
    %c0_245 = arith.constant 0 : index
    %c0_246 = arith.constant 0 : index
    %372 = vector.load %arg16[%c0_245, %c0_246] : memref<8x32xf32, #tpu.memory_space<vmem>>, vector<8x32xf32>
    %373 = arith.truncf %372 : vector<8x32xf32> to vector<8x32xbf16>
    %c0_247 = arith.constant 0 : index
    %c0_248 = arith.constant 0 : index
    %374 = vector.load %arg2[%c0_247, %c0_248] : memref<32x128xbf16, #tpu.memory_space<vmem>>, vector<32x128xbf16>
    %cst_249 = arith.constant dense<0.000000e+00> : vector<8x128xf32>
    %375 = tpu.matmul %373, %374, %cst_249 {dimension_numbers = #tpu.dot_dimension_numbers<[1], [0], [0], [1], [0, 0, 1, 1], [], []>} : vector<8x32xbf16>, vector<32x128xbf16>, vector<8x128xf32> -> vector<8x128xf32>
    %376 = arith.addf %371, %375 : vector<8x128xf32>
    %c0_250 = arith.constant 0 : index
    %c0_251 = arith.constant 0 : index
    %377 = vector.load %arg13[%c0_250, %c0_251] : memref<64x128xf32, #tpu.memory_space<vmem>>, vector<8x128xf32>
    %c0_252 = arith.constant 0 : index
    %c0_253 = arith.constant 0 : index
    %378 = vector.load %arg18[%c0_252, %c0_253] : memref<8x32xf32, #tpu.memory_space<vmem>>, vector<8x32xf32>
    %379 = arith.truncf %378 : vector<8x32xf32> to vector<8x32xbf16>
    %c0_254 = arith.constant 0 : index
    %c0_255 = arith.constant 0 : index
    %380 = vector.load %arg5[%c0_254, %c0_255] : memref<32x128xbf16, #tpu.memory_space<vmem>>, vector<32x128xbf16>
    %cst_256 = arith.constant dense<0.000000e+00> : vector<8x128xf32>
    %381 = tpu.matmul %379, %380, %cst_256 {dimension_numbers = #tpu.dot_dimension_numbers<[1], [0], [0], [1], [0, 0, 1, 1], [], []>} : vector<8x32xbf16>, vector<32x128xbf16>, vector<8x128xf32> -> vector<8x128xf32>
    %382 = arith.addf %377, %381 : vector<8x128xf32>
    %c0_257 = arith.constant 0 : index
    %c0_258 = arith.constant 0 : index
    %383 = vector.load %arg17[%c0_257, %c0_258] : memref<8x32xf32, #tpu.memory_space<vmem>>, vector<8x32xf32>
    %384 = arith.negf %376 : vector<8x128xf32>
    %385 = math.exp %384 : vector<8x128xf32>
    %cst_259 = arith.constant 1.000000e+00 : f32
    %386 = vector.broadcast %cst_259 : f32 to vector<8x128xf32>
    %387 = arith.addf %386, %385 : vector<8x128xf32>
    %388 = arith.divf %386, %387 : vector<8x128xf32>
    %389 = math.tanh %376 : vector<8x128xf32>
    %390 = vector.extract_strided_slice %388 {offsets = [0, 0], sizes = [8, 32], strides = [1, 1]} : vector<8x128xf32> to vector<8x32xf32>
    %391 = vector.extract_strided_slice %388 {offsets = [0, 32], sizes = [8, 32], strides = [1, 1]} : vector<8x128xf32> to vector<8x32xf32>
    %392 = vector.extract_strided_slice %388 {offsets = [0, 64], sizes = [8, 32], strides = [1, 1]} : vector<8x128xf32> to vector<8x32xf32>
    %393 = vector.extract_strided_slice %389 {offsets = [0, 96], sizes = [8, 32], strides = [1, 1]} : vector<8x128xf32> to vector<8x32xf32>
    %394 = arith.mulf %391, %383 : vector<8x32xf32>
    %395 = arith.mulf %390, %393 : vector<8x32xf32>
    %396 = arith.addf %394, %395 : vector<8x32xf32>
    %397 = math.tanh %396 : vector<8x32xf32>
    %398 = arith.mulf %392, %397 : vector<8x32xf32>
    %c0_260 = arith.constant 0 : index
    %c0_261 = arith.constant 0 : index
    %399 = vector.load %arg19[%c0_260, %c0_261] : memref<8x32xf32, #tpu.memory_space<vmem>>, vector<8x32xf32>
    %400 = arith.negf %382 : vector<8x128xf32>
    %401 = math.exp %400 : vector<8x128xf32>
    %cst_262 = arith.constant 1.000000e+00 : f32
    %402 = vector.broadcast %cst_262 : f32 to vector<8x128xf32>
    %403 = arith.addf %402, %401 : vector<8x128xf32>
    %404 = arith.divf %402, %403 : vector<8x128xf32>
    %405 = math.tanh %382 : vector<8x128xf32>
    %406 = vector.extract_strided_slice %404 {offsets = [0, 0], sizes = [8, 32], strides = [1, 1]} : vector<8x128xf32> to vector<8x32xf32>
    %407 = vector.extract_strided_slice %404 {offsets = [0, 32], sizes = [8, 32], strides = [1, 1]} : vector<8x128xf32> to vector<8x32xf32>
    %408 = vector.extract_strided_slice %404 {offsets = [0, 64], sizes = [8, 32], strides = [1, 1]} : vector<8x128xf32> to vector<8x32xf32>
    %409 = vector.extract_strided_slice %405 {offsets = [0, 96], sizes = [8, 32], strides = [1, 1]} : vector<8x128xf32> to vector<8x32xf32>
    %410 = arith.mulf %407, %399 : vector<8x32xf32>
    %411 = arith.mulf %406, %409 : vector<8x32xf32>
    %412 = arith.addf %410, %411 : vector<8x32xf32>
    %413 = math.tanh %412 : vector<8x32xf32>
    %414 = arith.mulf %408, %413 : vector<8x32xf32>
    %c0_263 = arith.constant 0 : index
    %c0_264 = arith.constant 0 : index
    %415 = vector.load %arg16[%c0_263, %c0_264] : memref<8x32xf32, #tpu.memory_space<vmem>>, vector<8x32xf32>
    tpu.vector_store %arg16[%c0_263, %c0_264], %398 {strides = array<i32>} : memref<8x32xf32, #tpu.memory_space<vmem>>, vector<8x32xf32>,
    %c0_265 = arith.constant 0 : index
    %c0_266 = arith.constant 0 : index
    %416 = vector.load %arg17[%c0_265, %c0_266] : memref<8x32xf32, #tpu.memory_space<vmem>>, vector<8x32xf32>
    tpu.vector_store %arg17[%c0_265, %c0_266], %396 {strides = array<i32>} : memref<8x32xf32, #tpu.memory_space<vmem>>, vector<8x32xf32>,
    %c0_267 = arith.constant 0 : index
    %c0_268 = arith.constant 0 : index
    %417 = vector.load %arg18[%c0_267, %c0_268] : memref<8x32xf32, #tpu.memory_space<vmem>>, vector<8x32xf32>
    tpu.vector_store %arg18[%c0_267, %c0_268], %414 {strides = array<i32>} : memref<8x32xf32, #tpu.memory_space<vmem>>, vector<8x32xf32>,
    %c0_269 = arith.constant 0 : index
    %c0_270 = arith.constant 0 : index
    %418 = vector.load %arg19[%c0_269, %c0_270] : memref<8x32xf32, #tpu.memory_space<vmem>>, vector<8x32xf32>
    tpu.vector_store %arg19[%c0_269, %c0_270], %412 {strides = array<i32>} : memref<8x32xf32, #tpu.memory_space<vmem>>, vector<8x32xf32>,
    %c56_271 = arith.constant 56 : index
    %c0_272 = arith.constant 0 : index
    %419 = vector.load %arg14[%c56_271, %c0_272] : memref<64x32xf32, #tpu.memory_space<vmem>>, vector<8x32xf32>
    tpu.vector_store %arg14[%c56_271, %c0_272], %398 {strides = array<i32>} : memref<64x32xf32, #tpu.memory_space<vmem>>, vector<8x32xf32>,
    %c0_273 = arith.constant 0 : index
    %c0_274 = arith.constant 0 : index
    %420 = vector.load %arg15[%c0_273, %c0_274] : memref<64x32xf32, #tpu.memory_space<vmem>>, vector<8x32xf32>
    tpu.vector_store %arg15[%c0_273, %c0_274], %414 {strides = array<i32>} : memref<64x32xf32, #tpu.memory_space<vmem>>, vector<8x32xf32>,
    %c0_275 = arith.constant 0 : index
    %c0_276 = arith.constant 0 : index
    %421 = vector.load %arg14[%c0_275, %c0_276] : memref<64x32xf32, #tpu.memory_space<vmem>>, vector<64x32xf32>
    %422 = arith.truncf %421 : vector<64x32xf32> to vector<64x32xbf16>
    %c0_277 = arith.constant 0 : index
    %c0_278 = arith.constant 0 : index
    %423 = vector.load %arg7[%c0_277, %c0_278] : memref<32x128xbf16, #tpu.memory_space<vmem>>, vector<32x128xbf16>
    %cst_279 = arith.constant dense<0.000000e+00> : vector<64x128xf32>
    %424 = tpu.matmul %422, %423, %cst_279 {dimension_numbers = #tpu.dot_dimension_numbers<[1], [0], [0], [1], [0, 0, 1, 1], [], []>} : vector<64x32xbf16>, vector<32x128xbf16>, vector<64x128xf32> -> vector<64x128xf32>
    %c0_280 = arith.constant 0 : index
    %c0_281 = arith.constant 0 : index
    %425 = vector.load %arg15[%c0_280, %c0_281] : memref<64x32xf32, #tpu.memory_space<vmem>>, vector<64x32xf32>
    %426 = arith.truncf %425 : vector<64x32xf32> to vector<64x32xbf16>
    %c0_282 = arith.constant 0 : index
    %c0_283 = arith.constant 0 : index
    %427 = vector.load %arg8[%c0_282, %c0_283] : memref<32x128xbf16, #tpu.memory_space<vmem>>, vector<32x128xbf16>
    %cst_284 = arith.constant dense<0.000000e+00> : vector<64x128xf32>
    %428 = tpu.matmul %426, %427, %cst_284 {dimension_numbers = #tpu.dot_dimension_numbers<[1], [0], [0], [1], [0, 0, 1, 1], [], []>} : vector<64x32xbf16>, vector<32x128xbf16>, vector<64x128xf32> -> vector<64x128xf32>
    %429 = arith.addf %424, %428 : vector<64x128xf32>
    %c0_285 = arith.constant 0 : index
    %c0_286 = arith.constant 0 : index
    %430 = vector.load %arg10[%c0_285, %c0_286] : memref<1x128xf32, #tpu.memory_space<vmem>>, vector<1x128xf32>
    %431 = vector.broadcast %430 : vector<1x128xf32> to vector<64x128xf32>
    %432 = arith.addf %429, %431 : vector<64x128xf32>
    %c0_287 = arith.constant 0 : index
    %c0_288 = arith.constant 0 : index
    %433 = vector.load %arg12[%c0_287, %c0_288] : memref<64x128xf32, #tpu.memory_space<vmem>>, vector<64x128xf32>
    tpu.vector_store %arg12[%c0_287, %c0_288], %432 {strides = array<i32>} : memref<64x128xf32, #tpu.memory_space<vmem>>, vector<64x128xf32>,
    %cst_289 = arith.constant 0.000000e+00 : f32
    %434 = vector.broadcast %cst_289 : f32 to vector<8x32xf32>
    %c0_290 = arith.constant 0 : index
    %c0_291 = arith.constant 0 : index
    %435 = vector.load %arg16[%c0_290, %c0_291] : memref<8x32xf32, #tpu.memory_space<vmem>>, vector<8x32xf32>
    tpu.vector_store %arg16[%c0_290, %c0_291], %434 {strides = array<i32>} : memref<8x32xf32, #tpu.memory_space<vmem>>, vector<8x32xf32>,
    %cst_292 = arith.constant 0.000000e+00 : f32
    %436 = vector.broadcast %cst_292 : f32 to vector<8x32xf32>
    %c0_293 = arith.constant 0 : index
    %c0_294 = arith.constant 0 : index
    %437 = vector.load %arg17[%c0_293, %c0_294] : memref<8x32xf32, #tpu.memory_space<vmem>>, vector<8x32xf32>
    tpu.vector_store %arg17[%c0_293, %c0_294], %436 {strides = array<i32>} : memref<8x32xf32, #tpu.memory_space<vmem>>, vector<8x32xf32>,
    %c56_295 = arith.constant 56 : index
    %c0_296 = arith.constant 0 : index
    %438 = vector.load %arg12[%c56_295, %c0_296] : memref<64x128xf32, #tpu.memory_space<vmem>>, vector<8x128xf32>
    %c0_297 = arith.constant 0 : index
    %c0_298 = arith.constant 0 : index
    %439 = vector.load %arg16[%c0_297, %c0_298] : memref<8x32xf32, #tpu.memory_space<vmem>>, vector<8x32xf32>
    %440 = arith.truncf %439 : vector<8x32xf32> to vector<8x32xbf16>
    %c0_299 = arith.constant 0 : index
    %c0_300 = arith.constant 0 : index
    %441 = vector.load %arg9[%c0_299, %c0_300] : memref<32x128xbf16, #tpu.memory_space<vmem>>, vector<32x128xbf16>
    %cst_301 = arith.constant dense<0.000000e+00> : vector<8x128xf32>
    %442 = tpu.matmul %440, %441, %cst_301 {dimension_numbers = #tpu.dot_dimension_numbers<[1], [0], [0], [1], [0, 0, 1, 1], [], []>} : vector<8x32xbf16>, vector<32x128xbf16>, vector<8x128xf32> -> vector<8x128xf32>
    %443 = arith.addf %438, %442 : vector<8x128xf32>
    %c0_302 = arith.constant 0 : index
    %c0_303 = arith.constant 0 : index
    %444 = vector.load %arg17[%c0_302, %c0_303] : memref<8x32xf32, #tpu.memory_space<vmem>>, vector<8x32xf32>
    %445 = arith.negf %443 : vector<8x128xf32>
    %446 = math.exp %445 : vector<8x128xf32>
    %cst_304 = arith.constant 1.000000e+00 : f32
    %447 = vector.broadcast %cst_304 : f32 to vector<8x128xf32>
    %448 = arith.addf %447, %446 : vector<8x128xf32>
    %449 = arith.divf %447, %448 : vector<8x128xf32>
    %450 = math.tanh %443 : vector<8x128xf32>
    %451 = vector.extract_strided_slice %449 {offsets = [0, 0], sizes = [8, 32], strides = [1, 1]} : vector<8x128xf32> to vector<8x32xf32>
    %452 = vector.extract_strided_slice %449 {offsets = [0, 32], sizes = [8, 32], strides = [1, 1]} : vector<8x128xf32> to vector<8x32xf32>
    %453 = vector.extract_strided_slice %449 {offsets = [0, 64], sizes = [8, 32], strides = [1, 1]} : vector<8x128xf32> to vector<8x32xf32>
    %454 = vector.extract_strided_slice %450 {offsets = [0, 96], sizes = [8, 32], strides = [1, 1]} : vector<8x128xf32> to vector<8x32xf32>
    %455 = arith.mulf %452, %444 : vector<8x32xf32>
    %456 = arith.mulf %451, %454 : vector<8x32xf32>
    %457 = arith.addf %455, %456 : vector<8x32xf32>
    %458 = math.tanh %457 : vector<8x32xf32>
    %459 = arith.mulf %453, %458 : vector<8x32xf32>
    %c0_305 = arith.constant 0 : index
    %c0_306 = arith.constant 0 : index
    %460 = vector.load %arg16[%c0_305, %c0_306] : memref<8x32xf32, #tpu.memory_space<vmem>>, vector<8x32xf32>
    tpu.vector_store %arg16[%c0_305, %c0_306], %459 {strides = array<i32>} : memref<8x32xf32, #tpu.memory_space<vmem>>, vector<8x32xf32>,
    %c0_307 = arith.constant 0 : index
    %c0_308 = arith.constant 0 : index
    %461 = vector.load %arg17[%c0_307, %c0_308] : memref<8x32xf32, #tpu.memory_space<vmem>>, vector<8x32xf32>
    tpu.vector_store %arg17[%c0_307, %c0_308], %457 {strides = array<i32>} : memref<8x32xf32, #tpu.memory_space<vmem>>, vector<8x32xf32>,
    %c48_309 = arith.constant 48 : index
    %c0_310 = arith.constant 0 : index
    %462 = vector.load %arg12[%c48_309, %c0_310] : memref<64x128xf32, #tpu.memory_space<vmem>>, vector<8x128xf32>
    %c0_311 = arith.constant 0 : index
    %c0_312 = arith.constant 0 : index
    %463 = vector.load %arg16[%c0_311, %c0_312] : memref<8x32xf32, #tpu.memory_space<vmem>>, vector<8x32xf32>
    %464 = arith.truncf %463 : vector<8x32xf32> to vector<8x32xbf16>
    %c0_313 = arith.constant 0 : index
    %c0_314 = arith.constant 0 : index
    %465 = vector.load %arg9[%c0_313, %c0_314] : memref<32x128xbf16, #tpu.memory_space<vmem>>, vector<32x128xbf16>
    %cst_315 = arith.constant dense<0.000000e+00> : vector<8x128xf32>
    %466 = tpu.matmul %464, %465, %cst_315 {dimension_numbers = #tpu.dot_dimension_numbers<[1], [0], [0], [1], [0, 0, 1, 1], [], []>} : vector<8x32xbf16>, vector<32x128xbf16>, vector<8x128xf32> -> vector<8x128xf32>
    %467 = arith.addf %462, %466 : vector<8x128xf32>
    %c0_316 = arith.constant 0 : index
    %c0_317 = arith.constant 0 : index
    %468 = vector.load %arg17[%c0_316, %c0_317] : memref<8x32xf32, #tpu.memory_space<vmem>>, vector<8x32xf32>
    %469 = arith.negf %467 : vector<8x128xf32>
    %470 = math.exp %469 : vector<8x128xf32>
    %cst_318 = arith.constant 1.000000e+00 : f32
    %471 = vector.broadcast %cst_318 : f32 to vector<8x128xf32>
    %472 = arith.addf %471, %470 : vector<8x128xf32>
    %473 = arith.divf %471, %472 : vector<8x128xf32>
    %474 = math.tanh %467 : vector<8x128xf32>
    %475 = vector.extract_strided_slice %473 {offsets = [0, 0], sizes = [8, 32], strides = [1, 1]} : vector<8x128xf32> to vector<8x32xf32>
    %476 = vector.extract_strided_slice %473 {offsets = [0, 32], sizes = [8, 32], strides = [1, 1]} : vector<8x128xf32> to vector<8x32xf32>
    %477 = vector.extract_strided_slice %473 {offsets = [0, 64], sizes = [8, 32], strides = [1, 1]} : vector<8x128xf32> to vector<8x32xf32>
    %478 = vector.extract_strided_slice %474 {offsets = [0, 96], sizes = [8, 32], strides = [1, 1]} : vector<8x128xf32> to vector<8x32xf32>
    %479 = arith.mulf %476, %468 : vector<8x32xf32>
    %480 = arith.mulf %475, %478 : vector<8x32xf32>
    %481 = arith.addf %479, %480 : vector<8x32xf32>
    %482 = math.tanh %481 : vector<8x32xf32>
    %483 = arith.mulf %477, %482 : vector<8x32xf32>
    %c0_319 = arith.constant 0 : index
    %c0_320 = arith.constant 0 : index
    %484 = vector.load %arg16[%c0_319, %c0_320] : memref<8x32xf32, #tpu.memory_space<vmem>>, vector<8x32xf32>
    tpu.vector_store %arg16[%c0_319, %c0_320], %483 {strides = array<i32>} : memref<8x32xf32, #tpu.memory_space<vmem>>, vector<8x32xf32>,
    %c0_321 = arith.constant 0 : index
    %c0_322 = arith.constant 0 : index
    %485 = vector.load %arg17[%c0_321, %c0_322] : memref<8x32xf32, #tpu.memory_space<vmem>>, vector<8x32xf32>
    tpu.vector_store %arg17[%c0_321, %c0_322], %481 {strides = array<i32>} : memref<8x32xf32, #tpu.memory_space<vmem>>, vector<8x32xf32>,
    %c40_323 = arith.constant 40 : index
    %c0_324 = arith.constant 0 : index
    %486 = vector.load %arg12[%c40_323, %c0_324] : memref<64x128xf32, #tpu.memory_space<vmem>>, vector<8x128xf32>
    %c0_325 = arith.constant 0 : index
    %c0_326 = arith.constant 0 : index
    %487 = vector.load %arg16[%c0_325, %c0_326] : memref<8x32xf32, #tpu.memory_space<vmem>>, vector<8x32xf32>
    %488 = arith.truncf %487 : vector<8x32xf32> to vector<8x32xbf16>
    %c0_327 = arith.constant 0 : index
    %c0_328 = arith.constant 0 : index
    %489 = vector.load %arg9[%c0_327, %c0_328] : memref<32x128xbf16, #tpu.memory_space<vmem>>, vector<32x128xbf16>
    %cst_329 = arith.constant dense<0.000000e+00> : vector<8x128xf32>
    %490 = tpu.matmul %488, %489, %cst_329 {dimension_numbers = #tpu.dot_dimension_numbers<[1], [0], [0], [1], [0, 0, 1, 1], [], []>} : vector<8x32xbf16>, vector<32x128xbf16>, vector<8x128xf32> -> vector<8x128xf32>
    %491 = arith.addf %486, %490 : vector<8x128xf32>
    %c0_330 = arith.constant 0 : index
    %c0_331 = arith.constant 0 : index
    %492 = vector.load %arg17[%c0_330, %c0_331] : memref<8x32xf32, #tpu.memory_space<vmem>>, vector<8x32xf32>
    %493 = arith.negf %491 : vector<8x128xf32>
    %494 = math.exp %493 : vector<8x128xf32>
    %cst_332 = arith.constant 1.000000e+00 : f32
    %495 = vector.broadcast %cst_332 : f32 to vector<8x128xf32>
    %496 = arith.addf %495, %494 : vector<8x128xf32>
    %497 = arith.divf %495, %496 : vector<8x128xf32>
    %498 = math.tanh %491 : vector<8x128xf32>
    %499 = vector.extract_strided_slice %497 {offsets = [0, 0], sizes = [8, 32], strides = [1, 1]} : vector<8x128xf32> to vector<8x32xf32>
    %500 = vector.extract_strided_slice %497 {offsets = [0, 32], sizes = [8, 32], strides = [1, 1]} : vector<8x128xf32> to vector<8x32xf32>
    %501 = vector.extract_strided_slice %497 {offsets = [0, 64], sizes = [8, 32], strides = [1, 1]} : vector<8x128xf32> to vector<8x32xf32>
    %502 = vector.extract_strided_slice %498 {offsets = [0, 96], sizes = [8, 32], strides = [1, 1]} : vector<8x128xf32> to vector<8x32xf32>
    %503 = arith.mulf %500, %492 : vector<8x32xf32>
    %504 = arith.mulf %499, %502 : vector<8x32xf32>
    %505 = arith.addf %503, %504 : vector<8x32xf32>
    %506 = math.tanh %505 : vector<8x32xf32>
    %507 = arith.mulf %501, %506 : vector<8x32xf32>
    %c0_333 = arith.constant 0 : index
    %c0_334 = arith.constant 0 : index
    %508 = vector.load %arg16[%c0_333, %c0_334] : memref<8x32xf32, #tpu.memory_space<vmem>>, vector<8x32xf32>
    tpu.vector_store %arg16[%c0_333, %c0_334], %507 {strides = array<i32>} : memref<8x32xf32, #tpu.memory_space<vmem>>, vector<8x32xf32>,
    %c0_335 = arith.constant 0 : index
    %c0_336 = arith.constant 0 : index
    %509 = vector.load %arg17[%c0_335, %c0_336] : memref<8x32xf32, #tpu.memory_space<vmem>>, vector<8x32xf32>
    tpu.vector_store %arg17[%c0_335, %c0_336], %505 {strides = array<i32>} : memref<8x32xf32, #tpu.memory_space<vmem>>, vector<8x32xf32>,
    %c32_337 = arith.constant 32 : index
    %c0_338 = arith.constant 0 : index
    %510 = vector.load %arg12[%c32_337, %c0_338] : memref<64x128xf32, #tpu.memory_space<vmem>>, vector<8x128xf32>
    %c0_339 = arith.constant 0 : index
    %c0_340 = arith.constant 0 : index
    %511 = vector.load %arg16[%c0_339, %c0_340] : memref<8x32xf32, #tpu.memory_space<vmem>>, vector<8x32xf32>
    %512 = arith.truncf %511 : vector<8x32xf32> to vector<8x32xbf16>
    %c0_341 = arith.constant 0 : index
    %c0_342 = arith.constant 0 : index
    %513 = vector.load %arg9[%c0_341, %c0_342] : memref<32x128xbf16, #tpu.memory_space<vmem>>, vector<32x128xbf16>
    %cst_343 = arith.constant dense<0.000000e+00> : vector<8x128xf32>
    %514 = tpu.matmul %512, %513, %cst_343 {dimension_numbers = #tpu.dot_dimension_numbers<[1], [0], [0], [1], [0, 0, 1, 1], [], []>} : vector<8x32xbf16>, vector<32x128xbf16>, vector<8x128xf32> -> vector<8x128xf32>
    %515 = arith.addf %510, %514 : vector<8x128xf32>
    %c0_344 = arith.constant 0 : index
    %c0_345 = arith.constant 0 : index
    %516 = vector.load %arg17[%c0_344, %c0_345] : memref<8x32xf32, #tpu.memory_space<vmem>>, vector<8x32xf32>
    %517 = arith.negf %515 : vector<8x128xf32>
    %518 = math.exp %517 : vector<8x128xf32>
    %cst_346 = arith.constant 1.000000e+00 : f32
    %519 = vector.broadcast %cst_346 : f32 to vector<8x128xf32>
    %520 = arith.addf %519, %518 : vector<8x128xf32>
    %521 = arith.divf %519, %520 : vector<8x128xf32>
    %522 = math.tanh %515 : vector<8x128xf32>
    %523 = vector.extract_strided_slice %521 {offsets = [0, 0], sizes = [8, 32], strides = [1, 1]} : vector<8x128xf32> to vector<8x32xf32>
    %524 = vector.extract_strided_slice %521 {offsets = [0, 32], sizes = [8, 32], strides = [1, 1]} : vector<8x128xf32> to vector<8x32xf32>
    %525 = vector.extract_strided_slice %521 {offsets = [0, 64], sizes = [8, 32], strides = [1, 1]} : vector<8x128xf32> to vector<8x32xf32>
    %526 = vector.extract_strided_slice %522 {offsets = [0, 96], sizes = [8, 32], strides = [1, 1]} : vector<8x128xf32> to vector<8x32xf32>
    %527 = arith.mulf %524, %516 : vector<8x32xf32>
    %528 = arith.mulf %523, %526 : vector<8x32xf32>
    %529 = arith.addf %527, %528 : vector<8x32xf32>
    %530 = math.tanh %529 : vector<8x32xf32>
    %531 = arith.mulf %525, %530 : vector<8x32xf32>
    %c0_347 = arith.constant 0 : index
    %c0_348 = arith.constant 0 : index
    %532 = vector.load %arg16[%c0_347, %c0_348] : memref<8x32xf32, #tpu.memory_space<vmem>>, vector<8x32xf32>
    tpu.vector_store %arg16[%c0_347, %c0_348], %531 {strides = array<i32>} : memref<8x32xf32, #tpu.memory_space<vmem>>, vector<8x32xf32>,
    %c0_349 = arith.constant 0 : index
    %c0_350 = arith.constant 0 : index
    %533 = vector.load %arg17[%c0_349, %c0_350] : memref<8x32xf32, #tpu.memory_space<vmem>>, vector<8x32xf32>
    tpu.vector_store %arg17[%c0_349, %c0_350], %529 {strides = array<i32>} : memref<8x32xf32, #tpu.memory_space<vmem>>, vector<8x32xf32>,
    %c24_351 = arith.constant 24 : index
    %c0_352 = arith.constant 0 : index
    %534 = vector.load %arg12[%c24_351, %c0_352] : memref<64x128xf32, #tpu.memory_space<vmem>>, vector<8x128xf32>
    %c0_353 = arith.constant 0 : index
    %c0_354 = arith.constant 0 : index
    %535 = vector.load %arg16[%c0_353, %c0_354] : memref<8x32xf32, #tpu.memory_space<vmem>>, vector<8x32xf32>
    %536 = arith.truncf %535 : vector<8x32xf32> to vector<8x32xbf16>
    %c0_355 = arith.constant 0 : index
    %c0_356 = arith.constant 0 : index
    %537 = vector.load %arg9[%c0_355, %c0_356] : memref<32x128xbf16, #tpu.memory_space<vmem>>, vector<32x128xbf16>
    %cst_357 = arith.constant dense<0.000000e+00> : vector<8x128xf32>
    %538 = tpu.matmul %536, %537, %cst_357 {dimension_numbers = #tpu.dot_dimension_numbers<[1], [0], [0], [1], [0, 0, 1, 1], [], []>} : vector<8x32xbf16>, vector<32x128xbf16>, vector<8x128xf32> -> vector<8x128xf32>
    %539 = arith.addf %534, %538 : vector<8x128xf32>
    %c0_358 = arith.constant 0 : index
    %c0_359 = arith.constant 0 : index
    %540 = vector.load %arg17[%c0_358, %c0_359] : memref<8x32xf32, #tpu.memory_space<vmem>>, vector<8x32xf32>
    %541 = arith.negf %539 : vector<8x128xf32>
    %542 = math.exp %541 : vector<8x128xf32>
    %cst_360 = arith.constant 1.000000e+00 : f32
    %543 = vector.broadcast %cst_360 : f32 to vector<8x128xf32>
    %544 = arith.addf %543, %542 : vector<8x128xf32>
    %545 = arith.divf %543, %544 : vector<8x128xf32>
    %546 = math.tanh %539 : vector<8x128xf32>
    %547 = vector.extract_strided_slice %545 {offsets = [0, 0], sizes = [8, 32], strides = [1, 1]} : vector<8x128xf32> to vector<8x32xf32>
    %548 = vector.extract_strided_slice %545 {offsets = [0, 32], sizes = [8, 32], strides = [1, 1]} : vector<8x128xf32> to vector<8x32xf32>
    %549 = vector.extract_strided_slice %545 {offsets = [0, 64], sizes = [8, 32], strides = [1, 1]} : vector<8x128xf32> to vector<8x32xf32>
    %550 = vector.extract_strided_slice %546 {offsets = [0, 96], sizes = [8, 32], strides = [1, 1]} : vector<8x128xf32> to vector<8x32xf32>
    %551 = arith.mulf %548, %540 : vector<8x32xf32>
    %552 = arith.mulf %547, %550 : vector<8x32xf32>
    %553 = arith.addf %551, %552 : vector<8x32xf32>
    %554 = math.tanh %553 : vector<8x32xf32>
    %555 = arith.mulf %549, %554 : vector<8x32xf32>
    %c0_361 = arith.constant 0 : index
    %c0_362 = arith.constant 0 : index
    %556 = vector.load %arg16[%c0_361, %c0_362] : memref<8x32xf32, #tpu.memory_space<vmem>>, vector<8x32xf32>
    tpu.vector_store %arg16[%c0_361, %c0_362], %555 {strides = array<i32>} : memref<8x32xf32, #tpu.memory_space<vmem>>, vector<8x32xf32>,
    %c0_363 = arith.constant 0 : index
    %c0_364 = arith.constant 0 : index
    %557 = vector.load %arg17[%c0_363, %c0_364] : memref<8x32xf32, #tpu.memory_space<vmem>>, vector<8x32xf32>
    tpu.vector_store %arg17[%c0_363, %c0_364], %553 {strides = array<i32>} : memref<8x32xf32, #tpu.memory_space<vmem>>, vector<8x32xf32>,
    %c16_365 = arith.constant 16 : index
    %c0_366 = arith.constant 0 : index
    %558 = vector.load %arg12[%c16_365, %c0_366] : memref<64x128xf32, #tpu.memory_space<vmem>>, vector<8x128xf32>
    %c0_367 = arith.constant 0 : index
    %c0_368 = arith.constant 0 : index
    %559 = vector.load %arg16[%c0_367, %c0_368] : memref<8x32xf32, #tpu.memory_space<vmem>>, vector<8x32xf32>
    %560 = arith.truncf %559 : vector<8x32xf32> to vector<8x32xbf16>
    %c0_369 = arith.constant 0 : index
    %c0_370 = arith.constant 0 : index
    %561 = vector.load %arg9[%c0_369, %c0_370] : memref<32x128xbf16, #tpu.memory_space<vmem>>, vector<32x128xbf16>
    %cst_371 = arith.constant dense<0.000000e+00> : vector<8x128xf32>
    %562 = tpu.matmul %560, %561, %cst_371 {dimension_numbers = #tpu.dot_dimension_numbers<[1], [0], [0], [1], [0, 0, 1, 1], [], []>} : vector<8x32xbf16>, vector<32x128xbf16>, vector<8x128xf32> -> vector<8x128xf32>
    %563 = arith.addf %558, %562 : vector<8x128xf32>
    %c0_372 = arith.constant 0 : index
    %c0_373 = arith.constant 0 : index
    %564 = vector.load %arg17[%c0_372, %c0_373] : memref<8x32xf32, #tpu.memory_space<vmem>>, vector<8x32xf32>
    %565 = arith.negf %563 : vector<8x128xf32>
    %566 = math.exp %565 : vector<8x128xf32>
    %cst_374 = arith.constant 1.000000e+00 : f32
    %567 = vector.broadcast %cst_374 : f32 to vector<8x128xf32>
    %568 = arith.addf %567, %566 : vector<8x128xf32>
    %569 = arith.divf %567, %568 : vector<8x128xf32>
    %570 = math.tanh %563 : vector<8x128xf32>
    %571 = vector.extract_strided_slice %569 {offsets = [0, 0], sizes = [8, 32], strides = [1, 1]} : vector<8x128xf32> to vector<8x32xf32>
    %572 = vector.extract_strided_slice %569 {offsets = [0, 32], sizes = [8, 32], strides = [1, 1]} : vector<8x128xf32> to vector<8x32xf32>
    %573 = vector.extract_strided_slice %569 {offsets = [0, 64], sizes = [8, 32], strides = [1, 1]} : vector<8x128xf32> to vector<8x32xf32>
    %574 = vector.extract_strided_slice %570 {offsets = [0, 96], sizes = [8, 32], strides = [1, 1]} : vector<8x128xf32> to vector<8x32xf32>
    %575 = arith.mulf %572, %564 : vector<8x32xf32>
    %576 = arith.mulf %571, %574 : vector<8x32xf32>
    %577 = arith.addf %575, %576 : vector<8x32xf32>
    %578 = math.tanh %577 : vector<8x32xf32>
    %579 = arith.mulf %573, %578 : vector<8x32xf32>
    %c0_375 = arith.constant 0 : index
    %c0_376 = arith.constant 0 : index
    %580 = vector.load %arg16[%c0_375, %c0_376] : memref<8x32xf32, #tpu.memory_space<vmem>>, vector<8x32xf32>
    tpu.vector_store %arg16[%c0_375, %c0_376], %579 {strides = array<i32>} : memref<8x32xf32, #tpu.memory_space<vmem>>, vector<8x32xf32>,
    %c0_377 = arith.constant 0 : index
    %c0_378 = arith.constant 0 : index
    %581 = vector.load %arg17[%c0_377, %c0_378] : memref<8x32xf32, #tpu.memory_space<vmem>>, vector<8x32xf32>
    tpu.vector_store %arg17[%c0_377, %c0_378], %577 {strides = array<i32>} : memref<8x32xf32, #tpu.memory_space<vmem>>, vector<8x32xf32>,
    %c8_379 = arith.constant 8 : index
    %c0_380 = arith.constant 0 : index
    %582 = vector.load %arg12[%c8_379, %c0_380] : memref<64x128xf32, #tpu.memory_space<vmem>>, vector<8x128xf32>
    %c0_381 = arith.constant 0 : index
    %c0_382 = arith.constant 0 : index
    %583 = vector.load %arg16[%c0_381, %c0_382] : memref<8x32xf32, #tpu.memory_space<vmem>>, vector<8x32xf32>
    %584 = arith.truncf %583 : vector<8x32xf32> to vector<8x32xbf16>
    %c0_383 = arith.constant 0 : index
    %c0_384 = arith.constant 0 : index
    %585 = vector.load %arg9[%c0_383, %c0_384] : memref<32x128xbf16, #tpu.memory_space<vmem>>, vector<32x128xbf16>
    %cst_385 = arith.constant dense<0.000000e+00> : vector<8x128xf32>
    %586 = tpu.matmul %584, %585, %cst_385 {dimension_numbers = #tpu.dot_dimension_numbers<[1], [0], [0], [1], [0, 0, 1, 1], [], []>} : vector<8x32xbf16>, vector<32x128xbf16>, vector<8x128xf32> -> vector<8x128xf32>
    %587 = arith.addf %582, %586 : vector<8x128xf32>
    %c0_386 = arith.constant 0 : index
    %c0_387 = arith.constant 0 : index
    %588 = vector.load %arg17[%c0_386, %c0_387] : memref<8x32xf32, #tpu.memory_space<vmem>>, vector<8x32xf32>
    %589 = arith.negf %587 : vector<8x128xf32>
    %590 = math.exp %589 : vector<8x128xf32>
    %cst_388 = arith.constant 1.000000e+00 : f32
    %591 = vector.broadcast %cst_388 : f32 to vector<8x128xf32>
    %592 = arith.addf %591, %590 : vector<8x128xf32>
    %593 = arith.divf %591, %592 : vector<8x128xf32>
    %594 = math.tanh %587 : vector<8x128xf32>
    %595 = vector.extract_strided_slice %593 {offsets = [0, 0], sizes = [8, 32], strides = [1, 1]} : vector<8x128xf32> to vector<8x32xf32>
    %596 = vector.extract_strided_slice %593 {offsets = [0, 32], sizes = [8, 32], strides = [1, 1]} : vector<8x128xf32> to vector<8x32xf32>
    %597 = vector.extract_strided_slice %593 {offsets = [0, 64], sizes = [8, 32], strides = [1, 1]} : vector<8x128xf32> to vector<8x32xf32>
    %598 = vector.extract_strided_slice %594 {offsets = [0, 96], sizes = [8, 32], strides = [1, 1]} : vector<8x128xf32> to vector<8x32xf32>
    %599 = arith.mulf %596, %588 : vector<8x32xf32>
    %600 = arith.mulf %595, %598 : vector<8x32xf32>
    %601 = arith.addf %599, %600 : vector<8x32xf32>
    %602 = math.tanh %601 : vector<8x32xf32>
    %603 = arith.mulf %597, %602 : vector<8x32xf32>
    %c0_389 = arith.constant 0 : index
    %c0_390 = arith.constant 0 : index
    %604 = vector.load %arg16[%c0_389, %c0_390] : memref<8x32xf32, #tpu.memory_space<vmem>>, vector<8x32xf32>
    tpu.vector_store %arg16[%c0_389, %c0_390], %603 {strides = array<i32>} : memref<8x32xf32, #tpu.memory_space<vmem>>, vector<8x32xf32>,
    %c0_391 = arith.constant 0 : index
    %c0_392 = arith.constant 0 : index
    %605 = vector.load %arg17[%c0_391, %c0_392] : memref<8x32xf32, #tpu.memory_space<vmem>>, vector<8x32xf32>
    tpu.vector_store %arg17[%c0_391, %c0_392], %601 {strides = array<i32>} : memref<8x32xf32, #tpu.memory_space<vmem>>, vector<8x32xf32>,
    %c0_393 = arith.constant 0 : index
    %c0_394 = arith.constant 0 : index
    %606 = vector.load %arg12[%c0_393, %c0_394] : memref<64x128xf32, #tpu.memory_space<vmem>>, vector<8x128xf32>
    %c0_395 = arith.constant 0 : index
    %c0_396 = arith.constant 0 : index
    %607 = vector.load %arg16[%c0_395, %c0_396] : memref<8x32xf32, #tpu.memory_space<vmem>>, vector<8x32xf32>
    %608 = arith.truncf %607 : vector<8x32xf32> to vector<8x32xbf16>
    %c0_397 = arith.constant 0 : index
    %c0_398 = arith.constant 0 : index
    %609 = vector.load %arg9[%c0_397, %c0_398] : memref<32x128xbf16, #tpu.memory_space<vmem>>, vector<32x128xbf16>
    %cst_399 = arith.constant dense<0.000000e+00> : vector<8x128xf32>
    %610 = tpu.matmul %608, %609, %cst_399 {dimension_numbers = #tpu.dot_dimension_numbers<[1], [0], [0], [1], [0, 0, 1, 1], [], []>} : vector<8x32xbf16>, vector<32x128xbf16>, vector<8x128xf32> -> vector<8x128xf32>
    %611 = arith.addf %606, %610 : vector<8x128xf32>
    %c0_400 = arith.constant 0 : index
    %c0_401 = arith.constant 0 : index
    %612 = vector.load %arg17[%c0_400, %c0_401] : memref<8x32xf32, #tpu.memory_space<vmem>>, vector<8x32xf32>
    %613 = arith.negf %611 : vector<8x128xf32>
    %614 = math.exp %613 : vector<8x128xf32>
    %cst_402 = arith.constant 1.000000e+00 : f32
    %615 = vector.broadcast %cst_402 : f32 to vector<8x128xf32>
    %616 = arith.addf %615, %614 : vector<8x128xf32>
    %617 = arith.divf %615, %616 : vector<8x128xf32>
    %618 = math.tanh %611 : vector<8x128xf32>
    %619 = vector.extract_strided_slice %617 {offsets = [0, 0], sizes = [8, 32], strides = [1, 1]} : vector<8x128xf32> to vector<8x32xf32>
    %620 = vector.extract_strided_slice %617 {offsets = [0, 32], sizes = [8, 32], strides = [1, 1]} : vector<8x128xf32> to vector<8x32xf32>
    %621 = vector.extract_strided_slice %617 {offsets = [0, 64], sizes = [8, 32], strides = [1, 1]} : vector<8x128xf32> to vector<8x32xf32>
    %622 = vector.extract_strided_slice %618 {offsets = [0, 96], sizes = [8, 32], strides = [1, 1]} : vector<8x128xf32> to vector<8x32xf32>
    %623 = arith.mulf %620, %612 : vector<8x32xf32>
    %624 = arith.mulf %619, %622 : vector<8x32xf32>
    %625 = arith.addf %623, %624 : vector<8x32xf32>
    %626 = math.tanh %625 : vector<8x32xf32>
    %627 = arith.mulf %621, %626 : vector<8x32xf32>
    %c0_403 = arith.constant 0 : index
    %c0_404 = arith.constant 0 : index
    %628 = vector.load %arg16[%c0_403, %c0_404] : memref<8x32xf32, #tpu.memory_space<vmem>>, vector<8x32xf32>
    tpu.vector_store %arg16[%c0_403, %c0_404], %627 {strides = array<i32>} : memref<8x32xf32, #tpu.memory_space<vmem>>, vector<8x32xf32>,
    %c0_405 = arith.constant 0 : index
    %c0_406 = arith.constant 0 : index
    %629 = vector.load %arg17[%c0_405, %c0_406] : memref<8x32xf32, #tpu.memory_space<vmem>>, vector<8x32xf32>
    tpu.vector_store %arg17[%c0_405, %c0_406], %625 {strides = array<i32>} : memref<8x32xf32, #tpu.memory_space<vmem>>, vector<8x32xf32>,
    %c0_407 = arith.constant 0 : index
    %c0_408 = arith.constant 0 : index
    %630 = vector.load %arg16[%c0_407, %c0_408] : memref<8x32xf32, #tpu.memory_space<vmem>>, vector<8x32xf32>
    %c0_409 = arith.constant 0 : index
    %c0_410 = arith.constant 0 : index
    %631 = vector.load %arg11[%c0_409, %c0_410] : memref<8x32xf32, #tpu.memory_space<vmem>>, vector<8x32xf32>
    tpu.vector_store %arg11[%c0_409, %c0_410], %630 {strides = array<i32>} : memref<8x32xf32, #tpu.memory_space<vmem>>, vector<8x32xf32>,
    return
  }
}

</mosaic_0001>

<llo_original>
// kernel: han_forward.1
$region0: #{han_forward.1}
  #allocation0 [shape = 'u32[]', space=smem, size = 0x4, offset = 0x4, fixed_abs, tag = 'smem constant byte address 0x4 - core index']
  #allocation1 [shape = 'u32[144,128]{1,0:T(1,128)}', space=vmem, size = 0x12000, scoped, tag = 'internal scratch']
  #allocation2 [shape = 'f32[64,128]{1,0:T(8,128)}', space=vmem, size = 0x8000, scoped, tag = 'scratch operand']
  #allocation3 [shape = 'f32[64,128]{1,0:T(8,128)}', space=vmem, size = 0x8000, scoped, tag = 'scratch operand']
  #allocation4 [shape = 'f32[64,32]{1,0:T(8,128)}', space=vmem, size = 0x8000, scoped, tag = 'scratch operand']
  #allocation5 [shape = 'f32[64,32]{1,0:T(8,128)}', space=vmem, size = 0x8000, scoped, tag = 'scratch operand']
  #allocation6 [shape = 'f32[8,32]{1,0:T(8,128)}', space=vmem, size = 0x1000, scoped, tag = 'scratch operand']
  #allocation7 [shape = 'f32[8,32]{1,0:T(8,128)}', space=vmem, size = 0x1000, scoped, tag = 'scratch operand']
  #allocation8 [shape = 'f32[8,32]{1,0:T(8,128)}', space=vmem, size = 0x1000, scoped, tag = 'scratch operand']
  #allocation9 [shape = 'f32[8,32]{1,0:T(8,128)}', space=vmem, size = 0x1000, scoped, tag = 'scratch operand']
  %s0 = inlined_call_operand.vmem [shape: bf16[64,32], index: 0, kind: input, shape index: {}]
  %s1 = inlined_call_operand.vmem [shape: bf16[32,128], index: 1, kind: input, shape index: {}]
  %s2 = inlined_call_operand.vmem [shape: bf16[32,128], index: 2, kind: input, shape index: {}]
  %s3 = inlined_call_operand.vmem [shape: f32[1,128], index: 3, kind: input, shape index: {}]
  %s4 = inlined_call_operand.vmem [shape: bf16[32,128], index: 4, kind: input, shape index: {}]
  %s5 = inlined_call_operand.vmem [shape: bf16[32,128], index: 5, kind: input, shape index: {}]
  %s6 = inlined_call_operand.vmem [shape: f32[1,128], index: 6, kind: input, shape index: {}]
  %s7 = inlined_call_operand.vmem [shape: bf16[32,128], index: 7, kind: input, shape index: {}]
  %s8 = inlined_call_operand.vmem [shape: bf16[32,128], index: 8, kind: input, shape index: {}]
  %s9 = inlined_call_operand.vmem [shape: bf16[32,128], index: 9, kind: input, shape index: {}]
  %s10 = inlined_call_operand.vmem [shape: f32[1,128], index: 10, kind: input, shape index: {}]
  %s11 = inlined_call_operand.vmem [shape: f32[8,32], index: 11, kind: output, shape index: {}]
  %s12 = sld [smem:[#allocation0]]
  $region54: #{han_forward.1} parent=0
    _
  %s14 = ssub.s32 1, %s12
  %s15 = scalar_select 0, %s14, %s12
  // Predicated region
  $region2: #{han_forward.1} parent=0 // pred_check
    _
  $region3: #{han_forward.1} parent=0 // pred_check_branch
    %17 = sbr.rel (0) target = $region5
  $region4: #{han_forward.1} parent=0 // pred_region
    _
  $region5: #{han_forward.1} parent=0 // pred_fallthru
    _
  // Predicated region
  $region6: #{han_forward.1} parent=0 // pred_check
    _
  $region7: #{han_forward.1} parent=0 // pred_check_branch
    %19 = sbr.rel (0) target = $region9
  $region8: #{han_forward.1} parent=0 // pred_region
    _
  $region9: #{han_forward.1} parent=0 // pred_fallthru
    _
  // Predicated region
  $region10: #{han_forward.1} parent=0 // pred_check
    _
  $region11: #{han_forward.1} parent=0 // pred_check_branch
    %21 = sbr.rel (0) target = $region13
  $region12: #{han_forward.1} parent=0 // pred_region
    _
  $region13: #{han_forward.1} parent=0 // pred_fallthru
    _
  // Predicated region
  $region14: #{han_forward.1} parent=0 // pred_check
    _
  $region15: #{han_forward.1} parent=0 // pred_check_branch
    %23 = sbr.rel (0) target = $region17
  $region16: #{han_forward.1} parent=0 // pred_region
    _
  $region17: #{han_forward.1} parent=0 // pred_fallthru
    _
  // Predicated region
  $region18: #{han_forward.1} parent=0 // pred_check
    _
  $region19: #{han_forward.1} parent=0 // pred_check_branch
    %25 = sbr.rel (0) target = $region21
  $region20: #{han_forward.1} parent=0 // pred_region
    _
  $region21: #{han_forward.1} parent=0 // pred_fallthru
    _
  // Predicated region
  $region22: #{han_forward.1} parent=0 // pred_check
    _
  $region23: #{han_forward.1} parent=0 // pred_check_branch
    %27 = sbr.rel (0) target = $region25
  $region24: #{han_forward.1} parent=0 // pred_region
    _
  $region25: #{han_forward.1} parent=0 // pred_fallthru
    _
  // Predicated region
  $region26: #{han_forward.1} parent=0 // pred_check
    _
  $region27: #{han_forward.1} parent=0 // pred_check_branch
    %29 = sbr.rel (0) target = $region29
  $region28: #{han_forward.1} parent=0 // pred_region
    _
  $region29: #{han_forward.1} parent=0 // pred_fallthru
    _
  // Predicated region
  $region30: #{han_forward.1} parent=0 // pred_check
    _
  $region31: #{han_forward.1} parent=0 // pred_check_branch
    %31 = sbr.rel (0) target = $region33
  $region32: #{han_forward.1} parent=0 // pred_region
    _
  $region33: #{han_forward.1} parent=0 // pred_fallthru
    _
  // Predicated region
  $region34: #{han_forward.1} parent=0 // pred_check
    _
  $region35: #{han_forward.1} parent=0 // pred_check_branch
    %33 = sbr.rel (0) target = $region37
  $region36: #{han_forward.1} parent=0 // pred_region
    _
  $region37: #{han_forward.1} parent=0 // pred_fallthru
    _
  // Predicated region
  $region38: #{han_forward.1} parent=0 // pred_check
    _
  $region39: #{han_forward.1} parent=0 // pred_check_branch
    %35 = sbr.rel (0) target = $region41
  $region40: #{han_forward.1} parent=0 // pred_region
    _
  $region41: #{han_forward.1} parent=0 // pred_fallthru
    _
  // Predicated region
  $region42: #{han_forward.1} parent=0 // pred_check
    _
  $region43: #{han_forward.1} parent=0 // pred_check_branch
    %37 = sbr.rel (0) target = $region45
  $region44: #{han_forward.1} parent=0 // pred_region
    _
  $region45: #{han_forward.1} parent=0 // pred_fallthru
    _
  %v39 = vld [vmem:[%s0] sm:$0xf]
  %v40 = vld [vmem:[%s0 + $0x4] sm:$0xf]
  %v41 = vld [vmem:[%s0 + $0x8] sm:$0xf]
  %v42 = vld [vmem:[%s0 + $0xc] sm:$0xf]
  %v43 = vld [vmem:[%s0 + $0x10] sm:$0xf]
  %v44 = vld [vmem:[%s0 + $0x14] sm:$0xf]
  %v45 = vld [vmem:[%s0 + $0x18] sm:$0xf]
  %v46 = vld [vmem:[%s0 + $0x1c] sm:$0xf]
  %v47 = vld [vmem:[%s1] sm:$0xf]
  %v48 = vld [vmem:[%s1 + $0x4] sm:$0xf]
  %v49 = vld [vmem:[%s1 + $0x8] sm:$0xf]
  %v50 = vld [vmem:[%s1 + $0xc] sm:$0xf]
  %v51 = vld [vmem:[%s3] sm:$0x1]
  %v53 = vlaneseq
  %v54 = vshrl.u32 %v53, 7
  %v55 = vsub.s32 0, %v54
  %v56 = vrot.slane %v51, %v55
  %v66 = vunpack.c.l.b16 %v39
  %v67 = vunpack.c.l.b16 %v40
  %v68 = vunpack.c.l.b16 %v41
  %v69 = vunpack.c.l.b16 %v42
  %v70 = vunpack.c.l.b16 %v43
  %v71 = vunpack.c.l.b16 %v44
  %v72 = vunpack.c.l.b16 %v45
  %v73 = vunpack.c.l.b16 %v46
  %v74 = vpack.c.b16 %v67, %v66
  %v75 = vpack.c.b16 %v69, %v68
  %v76 = vpack.c.b16 %v71, %v70
  %v77 = vpack.c.b16 %v73, %v72
  %v82 = vunpack.c.l.b16 %v47
  %v83 = vunpack.c.l.b16 %v48
  %v84 = vunpack.c.l.b16 %v49
  %v85 = vunpack.c.l.b16 %v50
  %v86 = vpack.c.b16 %v83, %v82
  %v87 = vpack.c.b16 %v85, %v84
  %vm90 = vcmask 261120
  %v92 = vsel %vm90, %v74, 0
  %v95 = vsel %vm90, %v75, 0
  %v98 = vsel %vm90, %v76, 0
  %v101 = vsel %vm90, %v77, 0
  %103 = vmatprep.subr.bf16.mxu0 0
  %104 = vmatpush1.bf16.msra.mxu0 %v86
  %105 = vmatprep.subr.bf16.mxu0 0
  %106 = vmatpush1.bf16.msra.mxu0 %v87
  %107 = vmatprep.subr.bf16.mxu0 0
  %108 = vmatpush1.bf16.msra.mxu0 0
  %109 = vmatprep.subr.bf16.mxu0 0
  %110 = vmatpush1.bf16.msra.mxu0 0
  %111 = vmatprep.subr.bf16.mxu0 0
  %112 = vmatpush1.bf16.msra.mxu0 0
  %113 = vmatprep.subr.bf16.mxu0 0
  %114 = vmatpush1.bf16.msra.mxu0 0
  %115 = vmatprep.subr.bf16.mxu0 0
  %116 = vmatpush1.bf16.msra.mxu0 0
  %117 = vmatprep.subr.bf16.mxu0 0
  %118 = vmatpush1.bf16.msra.mxu0 0
  %119 = vmatprep.subr.bf16.mxu0 0
  %120 = vmatpush1.bf16.msra.mxu0 0
  %121 = vmatprep.subr.bf16.mxu0 0
  %122 = vmatpush1.bf16.msra.mxu0 0
  %123 = vmatprep.subr.bf16.mxu0 0
  %124 = vmatpush1.bf16.msra.mxu0 0
  %125 = vmatprep.subr.bf16.mxu0 0
  %126 = vmatpush1.bf16.msra.mxu0 0
  %127 = vmatprep.subr.bf16.mxu0 0
  %128 = vmatpush1.bf16.msra.mxu0 0
  %129 = vmatprep.subr.bf16.mxu0 0
  %130 = vmatpush1.bf16.msra.mxu0 0
  %131 = vmatprep.subr.bf16.mxu0 0
  %132 = vmatpush1.bf16.msra.mxu0 0
  %133 = vmatprep.subr.bf16.mxu0 0
  %134 = vmatpush1.bf16.msra.mxu0 0
  %135 = vmatprep.mubr.bf16.mxu0 0
  %136 = vmatmul.mubr.bf16.gmra.mrb[0].mxu0 %v92
  %v137 = vpop.f32.mrb[0].mxu0
  %v138 = vadd.f32 %v56, %v137
  %v139 = vpop.f32.mrb[0].mxu0
  %v140 = vpop.f32.mrb[0].mxu0
  %v141 = vadd.f32 %v56, %v140
  %v142 = vpop.f32.mrb[0].mxu0
  %143 = vmatprep.mubr.bf16.mxu0 0
  %144 = vmatmul.mubr.bf16.gmra.mrb[0].mxu0 %v95
  %v145 = vpop.f32.mrb[0].mxu0
  %v146 = vadd.f32 %v56, %v145
  %v147 = vpop.f32.mrb[0].mxu0
  %v148 = vpop.f32.mrb[0].mxu0
  %v149 = vadd.f32 %v56, %v148
  %v150 = vpop.f32.mrb[0].mxu0
  %151 = vmatprep.mubr.bf16.mxu0 0
  %152 = vmatmul.mubr.bf16.gmra.mrb[0].mxu0 %v98
  %v153 = vpop.f32.mrb[0].mxu0
  %v154 = vadd.f32 %v56, %v153
  %v155 = vpop.f32.mrb[0].mxu0
  %v156 = vpop.f32.mrb[0].mxu0
  %v157 = vadd.f32 %v56, %v156
  %v158 = vpop.f32.mrb[0].mxu0
  %159 = vmatprep.mubr.bf16.mxu0 0
  %160 = vmatmul.mubr.bf16.gmra.mrb[0].mxu0 %v101
  %v161 = vpop.f32.mrb[0].mxu0
  %v162 = vadd.f32 %v56, %v161
  %v163 = vpop.f32.mrb[0].mxu0
  %v164 = vpop.f32.mrb[0].mxu0
  %v165 = vadd.f32 %v56, %v164
  %v166 = vpop.f32.mrb[0].mxu0
  %167 = vdwg.mxu0
  %168 = vst [vmem:[#allocation2] sm:$0xff] %v138
  %169 = vst [vmem:[#allocation2 + $0x8] sm:$0xff] %v141
  %170 = vst [vmem:[#allocation2 + $0x10] sm:$0xff] %v146
  %171 = vst [vmem:[#allocation2 + $0x18] sm:$0xff] %v149
  %172 = vst [vmem:[#allocation2 + $0x20] sm:$0xff] %v154
  %173 = vst [vmem:[#allocation2 + $0x28] sm:$0xff] %v157
  %174 = vst [vmem:[#allocation2 + $0x30] sm:$0xff] %v162
  %175 = vst [vmem:[#allocation2 + $0x38] sm:$0xff] %v165
  %v176 = vld [vmem:[%s4] sm:$0xf]
  %v177 = vld [vmem:[%s4 + $0x4] sm:$0xf]
  %v178 = vld [vmem:[%s4 + $0x8] sm:$0xf]
  %v179 = vld [vmem:[%s4 + $0xc] sm:$0xf]
  %v180 = vld [vmem:[%s6] sm:$0x1]
  %v182 = vlaneseq
  %v183 = vshrl.u32 %v182, 7
  %v184 = vsub.s32 0, %v183
  %v185 = vrot.slane %v180, %v184
  %v191 = vunpack.c.l.b16 %v176
  %v192 = vunpack.c.l.b16 %v177
  %v193 = vunpack.c.l.b16 %v178
  %v194 = vunpack.c.l.b16 %v179
  %v195 = vpack.c.b16 %v192, %v191
  %v196 = vpack.c.b16 %v194, %v193
  %199 = vmatprep.subr.bf16.mxu0 0
  %200 = vmatpush1.bf16.msra.mxu0 %v195
  %201 = vmatprep.subr.bf16.mxu0 0
  %202 = vmatpush1.bf16.msra.mxu0 %v196
  %203 = vmatprep.subr.bf16.mxu0 0
  %204 = vmatpush1.bf16.msra.mxu0 0
  %205 = vmatprep.subr.bf16.mxu0 0
  %206 = vmatpush1.bf16.msra.mxu0 0
  %207 = vmatprep.subr.bf16.mxu0 0
  %208 = vmatpush1.bf16.msra.mxu0 0
  %209 = vmatprep.subr.bf16.mxu0 0
  %210 = vmatpush1.bf16.msra.mxu0 0
  %211 = vmatprep.subr.bf16.mxu0 0
  %212 = vmatpush1.bf16.msra.mxu0 0
  %213 = vmatprep.subr.bf16.mxu0 0
  %214 = vmatpush1.bf16.msra.mxu0 0
  %215 = vmatprep.subr.bf16.mxu0 0
  %216 = vmatpush1.bf16.msra.mxu0 0
  %217 = vmatprep.subr.bf16.mxu0 0
  %218 = vmatpush1.bf16.msra.mxu0 0
  %219 = vmatprep.subr.bf16.mxu0 0
  %220 = vmatpush1.bf16.msra.mxu0 0
  %221 = vmatprep.subr.bf16.mxu0 0
  %222 = vmatpush1.bf16.msra.mxu0 0
  %223 = vmatprep.subr.bf16.mxu0 0
  %224 = vmatpush1.bf16.msra.mxu0 0
  %225 = vmatprep.subr.bf16.mxu0 0
  %226 = vmatpush1.bf16.msra.mxu0 0
  %227 = vmatprep.subr.bf16.mxu0 0
  %228 = vmatpush1.bf16.msra.mxu0 0
  %229 = vmatprep.subr.bf16.mxu0 0
  %230 = vmatpush1.bf16.msra.mxu0 0
  %231 = vmatprep.mubr.bf16.mxu0 0
  %232 = vmatmul.mubr.bf16.gmra.mrb[0].mxu0 %v92
  %v233 = vpop.f32.mrb[0].mxu0
  %v234 = vadd.f32 %v185, %v233
  %v235 = vpop.f32.mrb[0].mxu0
  %v236 = vpop.f32.mrb[0].mxu0
  %v237 = vadd.f32 %v185, %v236
  %v238 = vpop.f32.mrb[0].mxu0
  %239 = vmatprep.mubr.bf16.mxu0 0
  %240 = vmatmul.mubr.bf16.gmra.mrb[0].mxu0 %v95
  %v241 = vpop.f32.mrb[0].mxu0
  %v242 = vadd.f32 %v185, %v241
  %v243 = vpop.f32.mrb[0].mxu0
  %v244 = vpop.f32.mrb[0].mxu0
  %v245 = vadd.f32 %v185, %v244
  %v246 = vpop.f32.mrb[0].mxu0
  %247 = vmatprep.mubr.bf16.mxu0 0
  %248 = vmatmul.mubr.bf16.gmra.mrb[0].mxu0 %v98
  %v249 = vpop.f32.mrb[0].mxu0
  %v250 = vadd.f32 %v185, %v249
  %v251 = vpop.f32.mrb[0].mxu0
  %v252 = vpop.f32.mrb[0].mxu0
  %v253 = vadd.f32 %v185, %v252
  %v254 = vpop.f32.mrb[0].mxu0
  %255 = vmatprep.mubr.bf16.mxu0 0
  %256 = vmatmul.mubr.bf16.gmra.mrb[0].mxu0 %v101
  %v257 = vpop.f32.mrb[0].mxu0
  %v258 = vadd.f32 %v185, %v257
  %v259 = vpop.f32.mrb[0].mxu0
  %v260 = vpop.f32.mrb[0].mxu0
  %v261 = vadd.f32 %v185, %v260
  %v262 = vpop.f32.mrb[0].mxu0
  %263 = vdwg.mxu0
  %264 = vst [vmem:[#allocation3] sm:$0xff] %v234
  %265 = vst [vmem:[#allocation3 + $0x8] sm:$0xff] %v237
  %266 = vst [vmem:[#allocation3 + $0x10] sm:$0xff] %v242
  %267 = vst [vmem:[#allocation3 + $0x18] sm:$0xff] %v245
  %268 = vst [vmem:[#allocation3 + $0x20] sm:$0xff] %v250
  %269 = vst [vmem:[#allocation3 + $0x28] sm:$0xff] %v253
  %270 = vst [vmem:[#allocation3 + $0x30] sm:$0xff] %v258
  %271 = vst [vmem:[#allocation3 + $0x38] sm:$0xff] %v261
  %272 = vst.msk [vmem:[#allocation6] sm:$0xff] %vm90, 0.0
  %273 = vst.msk [vmem:[#allocation7] sm:$0xff] %vm90, 0.0
  %274 = vst.msk [vmem:[#allocation8] sm:$0xff] %vm90, 0.0
  %275 = vst.msk [vmem:[#allocation9] sm:$0xff] %vm90, 0.0
  %v276 = vld [vmem:[#allocation2] sm:$0xff]
  %v277 = vld [vmem:[#allocation6] sm:$0xff]
  %v278 = vpack.c.bf16 %v277, %v277
  %v279 = vld [vmem:[%s2] sm:$0xf]
  %v280 = vld [vmem:[%s2 + $0x4] sm:$0xf]
  %v281 = vld [vmem:[%s2 + $0x8] sm:$0xf]
  %v282 = vld [vmem:[%s2 + $0xc] sm:$0xf]
  %v287 = vunpack.c.l.b16 %v279
  %v288 = vunpack.c.l.b16 %v280
  %v289 = vunpack.c.l.b16 %v281
  %v290 = vunpack.c.l.b16 %v282
  %v291 = vpack.c.b16 %v288, %v287
  %v292 = vpack.c.b16 %v290, %v289
  %v296 = vsel %vm90, %v278, 0
  %298 = vmatprep.subr.bf16.mxu0 0
  %299 = vmatpush1.bf16.msra.mxu0 %v291
  %300 = vmatprep.subr.bf16.mxu0 0
  %301 = vmatpush1.bf16.msra.mxu0 %v292
  %302 = vmatprep.subr.bf16.mxu0 0
  %303 = vmatpush1.bf16.msra.mxu0 0
  %304 = vmatprep.subr.bf16.mxu0 0
  %305 = vmatpush1.bf16.msra.mxu0 0
  %306 = vmatprep.subr.bf16.mxu0 0
  %307 = vmatpush1.bf16.msra.mxu0 0
  %308 = vmatprep.subr.bf16.mxu0 0
  %309 = vmatpush1.bf16.msra.mxu0 0
  %310 = vmatprep.subr.bf16.mxu0 0
  %311 = vmatpush1.bf16.msra.mxu0 0
  %312 = vmatprep.subr.bf16.mxu0 0
  %313 = vmatpush1.bf16.msra.mxu0 0
  %314 = vmatprep.subr.bf16.mxu0 0
  %315 = vmatpush1.bf16.msra.mxu0 0
  %316 = vmatprep.subr.bf16.mxu0 0
  %317 = vmatpush1.bf16.msra.mxu0 0
  %318 = vmatprep.subr.bf16.mxu0 0
  %319 = vmatpush1.bf16.msra.mxu0 0
  %320 = vmatprep.subr.bf16.mxu0 0
  %321 = vmatpush1.bf16.msra.mxu0 0
  %322 = vmatprep.subr.bf16.mxu0 0
  %323 = vmatpush1.bf16.msra.mxu0 0
  %324 = vmatprep.subr.bf16.mxu0 0
  %325 = vmatpush1.bf16.msra.mxu0 0
  %326 = vmatprep.subr.bf16.mxu0 0
  %327 = vmatpush1.bf16.msra.mxu0 0
  %328 = vmatprep.subr.bf16.mxu0 0
  %329 = vmatpush1.bf16.msra.mxu0 0
  %330 = vmatprep.mubr.bf16.mxu0 0
  %331 = vmatmul.mubr.bf16.gmra.mrb[0].mxu0 %v296
  %v332 = vpop.f32.mrb[0].mxu0
  %v333 = vadd.f32 0.0, %v332
  %v334 = vpop.f32.mrb[0].mxu0
  %v335 = vpop.f32.mrb[0].mxu0
  %v336 = vpop.f32.mrb[0].mxu0
  %337 = vdwg.mxu0
  %v338 = vadd.f32 %v276, %v333
  %v339 = vld [vmem:[#allocation3 + $0x38] sm:$0xff]
  %v340 = vld [vmem:[#allocation8] sm:$0xff]
  %v341 = vpack.c.bf16 %v340, %v340
  %v342 = vld [vmem:[%s5] sm:$0xf]
  %v343 = vld [vmem:[%s5 + $0x4] sm:$0xf]
  %v344 = vld [vmem:[%s5 + $0x8] sm:$0xf]
  %v345 = vld [vmem:[%s5 + $0xc] sm:$0xf]
  %v350 = vunpack.c.l.b16 %v342
  %v351 = vunpack.c.l.b16 %v343
  %v352 = vunpack.c.l.b16 %v344
  %v353 = vunpack.c.l.b16 %v345
  %v354 = vpack.c.b16 %v351, %v350
  %v355 = vpack.c.b16 %v353, %v352
  %v359 = vsel %vm90, %v341, 0
  %361 = vmatprep.subr.bf16.mxu0 0
  %362 = vmatpush1.bf16.msra.mxu0 %v354
  %363 = vmatprep.subr.bf16.mxu0 0
  %364 = vmatpush1.bf16.msra.mxu0 %v355
  %365 = vmatprep.subr.bf16.mxu0 0
  %366 = vmatpush1.bf16.msra.mxu0 0
  %367 = vmatprep.subr.bf16.mxu0 0
  %368 = vmatpush1.bf16.msra.mxu0 0
  %369 = vmatprep.subr.bf16.mxu0 0
  %370 = vmatpush1.bf16.msra.mxu0 0
  %371 = vmatprep.subr.bf16.mxu0 0
  %372 = vmatpush1.bf16.msra.mxu0 0
  %373 = vmatprep.subr.bf16.mxu0 0
  %374 = vmatpush1.bf16.msra.mxu0 0
  %375 = vmatprep.subr.bf16.mxu0 0
  %376 = vmatpush1.bf16.msra.mxu0 0
  %377 = vmatprep.subr.bf16.mxu0 0
  %378 = vmatpush1.bf16.msra.mxu0 0
  %379 = vmatprep.subr.bf16.mxu0 0
  %380 = vmatpush1.bf16.msra.mxu0 0
  %381 = vmatprep.subr.bf16.mxu0 0
  %382 = vmatpush1.bf16.msra.mxu0 0
  %383 = vmatprep.subr.bf16.mxu0 0
  %384 = vmatpush1.bf16.msra.mxu0 0
  %385 = vmatprep.subr.bf16.mxu0 0
  %386 = vmatpush1.bf16.msra.mxu0 0
  %387 = vmatprep.subr.bf16.mxu0 0
  %388 = vmatpush1.bf16.msra.mxu0 0
  %389 = vmatprep.subr.bf16.mxu0 0
  %390 = vmatpush1.bf16.msra.mxu0 0
  %391 = vmatprep.subr.bf16.mxu0 0
  %392 = vmatpush1.bf16.msra.mxu0 0
  %393 = vmatprep.mubr.bf16.mxu0 0
  %394 = vmatmul.mubr.bf16.gmra.mrb[0].mxu0 %v359
  %v395 = vpop.f32.mrb[0].mxu0
  %v396 = vadd.f32 0.0, %v395
  %v397 = vpop.f32.mrb[0].mxu0
  %v398 = vpop.f32.mrb[0].mxu0
  %v399 = vpop.f32.mrb[0].mxu0
  %400 = vdwg.mxu0
  %v401 = vadd.f32 %v339, %v396
  %v402 = vld [vmem:[#allocation7] sm:$0xff]
  %v403 = vxor.u32 %v338, 2147483648
  %v404 = vmul.f32 %v403, 1.442695
  %v405 = vpow.pop %v404
  %v406 = vadd.f32 %v405, 1.0
  %v407 = vrcp.pop %v406
  %v408 = vmul.f32 1.0, %v407
  %v409 = vtanh.pop %v338
  %411 = vrot.lane.b32.xlu0 %v402, 32
  %v412 = vpop.permute.xlu0 %411
  %v414 = vmul.f32 %v408, %v412
  %416 = vrot.lane.b32.xlu0 %v409, 32
  %v417 = vpop.permute.xlu0 %416
  %v419 = vmul.f32 %v408, %v417
  %421 = vrot.lane.b32.xlu0 %v419, 32
  %v422 = vpop.permute.xlu0 %421
  %v424 = vadd.f32 %v414, %v422
  %v425 = vtanh.pop %v424
  %427 = vrot.lane.b32.xlu0 %v425, 32
  %v428 = vpop.permute.xlu0 %427
  %v430 = vmul.f32 %v408, %v428
  %v431 = vld [vmem:[#allocation9] sm:$0xff]
  %v432 = vxor.u32 %v401, 2147483648
  %v433 = vmul.f32 %v432, 1.442695
  %v434 = vpow.pop %v433
  %v435 = vadd.f32 %v434, 1.0
  %v436 = vrcp.pop %v435
  %v437 = vmul.f32 1.0, %v436
  %v438 = vtanh.pop %v401
  %440 = vrot.lane.b32.xlu0 %v431, 32
  %v441 = vpop.permute.xlu0 %440
  %v443 = vmul.f32 %v437, %v441
  %445 = vrot.lane.b32.xlu0 %v438, 32
  %v446 = vpop.permute.xlu0 %445
  %v448 = vmul.f32 %v437, %v446
  %450 = vrot.lane.b32.xlu0 %v448, 32
  %v451 = vpop.permute.xlu0 %450
  %v453 = vadd.f32 %v443, %v451
  %v454 = vtanh.pop %v453
  %456 = vrot.lane.b32.xlu0 %v454, 32
  %v457 = vpop.permute.xlu0 %456
  %v459 = vmul.f32 %v437, %v457
  %461 = vrot.lane.b32.xlu0 %v430, 64
  %v462 = vpop.permute.xlu0 %461
  %464 = vst.msk [vmem:[#allocation6] sm:$0xff] %vm90, %v462
  %466 = vrot.lane.b32.xlu0 %v424, 96
  %v467 = vpop.permute.xlu0 %466
  %469 = vst.msk [vmem:[#allocation7] sm:$0xff] %vm90, %v467
  %471 = vrot.lane.b32.xlu0 %v459, 64
  %v472 = vpop.permute.xlu0 %471
  %474 = vst.msk [vmem:[#allocation8] sm:$0xff] %vm90, %v472
  %476 = vrot.lane.b32.xlu0 %v453, 96
  %v477 = vpop.permute.xlu0 %476
  %479 = vst.msk [vmem:[#allocation9] sm:$0xff] %vm90, %v477
  %480 = vst.msk [vmem:[#allocation4] sm:$0xff] %vm90, %v462
  %481 = vst.msk [vmem:[#allocation5 + $0x38] sm:$0xff] %vm90, %v472
  %v482 = vld [vmem:[#allocation2 + $0x8] sm:$0xff]
  %v483 = vld [vmem:[#allocation6] sm:$0xff]
  %v484 = vpack.c.bf16 %v483, %v483
  %v485 = vld [vmem:[%s2] sm:$0xf]
  %v486 = vld [vmem:[%s2 + $0x4] sm:$0xf]
  %v487 = vld [vmem:[%s2 + $0x8] sm:$0xf]
  %v488 = vld [vmem:[%s2 + $0xc] sm:$0xf]
  %v493 = vunpack.c.l.b16 %v485
  %v494 = vunpack.c.l.b16 %v486
  %v495 = vunpack.c.l.b16 %v487
  %v496 = vunpack.c.l.b16 %v488
  %v497 = vpack.c.b16 %v494, %v493
  %v498 = vpack.c.b16 %v496, %v495
  %v502 = vsel %vm90, %v484, 0
  %504 = vmatprep.subr.bf16.mxu0 0
  %505 = vmatpush1.bf16.msra.mxu0 %v497
  %506 = vmatprep.subr.bf16.mxu0 0
  %507 = vmatpush1.bf16.msra.mxu0 %v498
  %508 = vmatprep.subr.bf16.mxu0 0
  %509 = vmatpush1.bf16.msra.mxu0 0
  %510 = vmatprep.subr.bf16.mxu0 0
  %511 = vmatpush1.bf16.msra.mxu0 0
  %512 = vmatprep.subr.bf16.mxu0 0
  %513 = vmatpush1.bf16.msra.mxu0 0
  %514 = vmatprep.subr.bf16.mxu0 0
  %515 = vmatpush1.bf16.msra.mxu0 0
  %516 = vmatprep.subr.bf16.mxu0 0
  %517 = vmatpush1.bf16.msra.mxu0 0
  %518 = vmatprep.subr.bf16.mxu0 0
  %519 = vmatpush1.bf16.msra.mxu0 0
  %520 = vmatprep.subr.bf16.mxu0 0
  %521 = vmatpush1.bf16.msra.mxu0 0
  %522 = vmatprep.subr.bf16.mxu0 0
  %523 = vmatpush1.bf16.msra.mxu0 0
  %524 = vmatprep.subr.bf16.mxu0 0
  %525 = vmatpush1.bf16.msra.mxu0 0
  %526 = vmatprep.subr.bf16.mxu0 0
  %527 = vmatpush1.bf16.msra.mxu0 0
  %528 = vmatprep.subr.bf16.mxu0 0
  %529 = vmatpush1.bf16.msra.mxu0 0
  %530 = vmatprep.subr.bf16.mxu0 0
  %531 = vmatpush1.bf16.msra.mxu0 0
  %532 = vmatprep.subr.bf16.mxu0 0
  %533 = vmatpush1.bf16.msra.mxu0 0
  %534 = vmatprep.subr.bf16.mxu0 0
  %535 = vmatpush1.bf16.msra.mxu0 0
  %536 = vmatprep.mubr.bf16.mxu0 0
  %537 = vmatmul.mubr.bf16.gmra.mrb[0].mxu0 %v502
  %v538 = vpop.f32.mrb[0].mxu0
  %v539 = vadd.f32 0.0, %v538
  %v540 = vpop.f32.mrb[0].mxu0
  %v541 = vpop.f32.mrb[0].mxu0
  %v542 = vpop.f32.mrb[0].mxu0
  %543 = vdwg.mxu0
  %v544 = vadd.f32 %v482, %v539
  %v545 = vld [vmem:[#allocation3 + $0x30] sm:$0xff]
  %v546 = vld [vmem:[#allocation8] sm:$0xff]
  %v547 = vpack.c.bf16 %v546, %v546
  %v548 = vld [vmem:[%s5] sm:$0xf]
  %v549 = vld [vmem:[%s5 + $0x4] sm:$0xf]
  %v550 = vld [vmem:[%s5 + $0x8] sm:$0xf]
  %v551 = vld [vmem:[%s5 + $0xc] sm:$0xf]
  %v556 = vunpack.c.l.b16 %v548
  %v557 = vunpack.c.l.b16 %v549
  %v558 = vunpack.c.l.b16 %v550
  %v559 = vunpack.c.l.b16 %v551
  %v560 = vpack.c.b16 %v557, %v556
  %v561 = vpack.c.b16 %v559, %v558
  %v565 = vsel %vm90, %v547, 0
  %567 = vmatprep.subr.bf16.mxu0 0
  %568 = vmatpush1.bf16.msra.mxu0 %v560
  %569 = vmatprep.subr.bf16.mxu0 0
  %570 = vmatpush1.bf16.msra.mxu0 %v561
  %571 = vmatprep.subr.bf16.mxu0 0
  %572 = vmatpush1.bf16.msra.mxu0 0
  %573 = vmatprep.subr.bf16.mxu0 0
  %574 = vmatpush1.bf16.msra.mxu0 0
  %575 = vmatprep.subr.bf16.mxu0 0
  %576 = vmatpush1.bf16.msra.mxu0 0
  %577 = vmatprep.subr.bf16.mxu0 0
  %578 = vmatpush1.bf16.msra.mxu0 0
  %579 = vmatprep.subr.bf16.mxu0 0
  %580 = vmatpush1.bf16.msra.mxu0 0
  %581 = vmatprep.subr.bf16.mxu0 0
  %582 = vmatpush1.bf16.msra.mxu0 0
  %583 = vmatprep.subr.bf16.mxu0 0
  %584 = vmatpush1.bf16.msra.mxu0 0
  %585 = vmatprep.subr.bf16.mxu0 0
  %586 = vmatpush1.bf16.msra.mxu0 0
  %587 = vmatprep.subr.bf16.mxu0 0
  %588 = vmatpush1.bf16.msra.mxu0 0
  %589 = vmatprep.subr.bf16.mxu0 0
  %590 = vmatpush1.bf16.msra.mxu0 0
  %591 = vmatprep.subr.bf16.mxu0 0
  %592 = vmatpush1.bf16.msra.mxu0 0
  %593 = vmatprep.subr.bf16.mxu0 0
  %594 = vmatpush1.bf16.msra.mxu0 0
  %595 = vmatprep.subr.bf16.mxu0 0
  %596 = vmatpush1.bf16.msra.mxu0 0
  %597 = vmatprep.subr.bf16.mxu0 0
  %598 = vmatpush1.bf16.msra.mxu0 0
  %599 = vmatprep.mubr.bf16.mxu0 0
  %600 = vmatmul.mubr.bf16.gmra.mrb[0].mxu0 %v565
  %v601 = vpop.f32.mrb[0].mxu0
  %v602 = vadd.f32 0.0, %v601
  %v603 = vpop.f32.mrb[0].mxu0
  %v604 = vpop.f32.mrb[0].mxu0
  %v605 = vpop.f32.mrb[0].mxu0
  %606 = vdwg.mxu0
  %v607 = vadd.f32 %v545, %v602
  %v608 = vld [vmem:[#allocation7] sm:$0xff]
  %v609 = vxor.u32 %v544, 2147483648
  %v610 = vmul.f32 %v609, 1.442695
  %v611 = vpow.pop %v610
  %v612 = vadd.f32 %v611, 1.0
  %v613 = vrcp.pop %v612
  %v614 = vmul.f32 1.0, %v613
  %v615 = vtanh.pop %v544
  %617 = vrot.lane.b32.xlu0 %v608, 32
  %v618 = vpop.permute.xlu0 %617
  %v620 = vmul.f32 %v614, %v618
  %622 = vrot.lane.b32.xlu0 %v615, 32
  %v623 = vpop.permute.xlu0 %622
  %v625 = vmul.f32 %v614, %v623
  %627 = vrot.lane.b32.xlu0 %v625, 32
  %v628 = vpop.permute.xlu0 %627
  %v630 = vadd.f32 %v620, %v628
  %v631 = vtanh.pop %v630
  %633 = vrot.lane.b32.xlu0 %v631, 32
  %v634 = vpop.permute.xlu0 %633
  %v636 = vmul.f32 %v614, %v634
  %v637 = vld [vmem:[#allocation9] sm:$0xff]
  %v638 = vxor.u32 %v607, 2147483648
  %v639 = vmul.f32 %v638, 1.442695
  %v640 = vpow.pop %v639
  %v641 = vadd.f32 %v640, 1.0
  %v642 = vrcp.pop %v641
  %v643 = vmul.f32 1.0, %v642
  %v644 = vtanh.pop %v607
  %646 = vrot.lane.b32.xlu0 %v637, 32
  %v647 = vpop.permute.xlu0 %646
  %v649 = vmul.f32 %v643, %v647
  %651 = vrot.lane.b32.xlu0 %v644, 32
  %v652 = vpop.permute.xlu0 %651
  %v654 = vmul.f32 %v643, %v652
  %656 = vrot.lane.b32.xlu0 %v654, 32
  %v657 = vpop.permute.xlu0 %656
  %v659 = vadd.f32 %v649, %v657
  %v660 = vtanh.pop %v659
  %662 = vrot.lane.b32.xlu0 %v660, 32
  %v663 = vpop.permute.xlu0 %662
  %v665 = vmul.f32 %v643, %v663
  %667 = vrot.lane.b32.xlu0 %v636, 64
  %v668 = vpop.permute.xlu0 %667
  %670 = vst.msk [vmem:[#allocation6] sm:$0xff] %vm90, %v668
  %672 = vrot.lane.b32.xlu0 %v630, 96
  %v673 = vpop.permute.xlu0 %672
  %675 = vst.msk [vmem:[#allocation7] sm:$0xff] %vm90, %v673
  %677 = vrot.lane.b32.xlu0 %v665, 64
  %v678 = vpop.permute.xlu0 %677
  %680 = vst.msk [vmem:[#allocation8] sm:$0xff] %vm90, %v678
  %682 = vrot.lane.b32.xlu0 %v659, 96
  %v683 = vpop.permute.xlu0 %682
  %685 = vst.msk [vmem:[#allocation9] sm:$0xff] %vm90, %v683
  %686 = vst.msk [vmem:[#allocation4 + $0x8] sm:$0xff] %vm90, %v668
  %687 = vst.msk [vmem:[#allocation5 + $0x30] sm:$0xff] %vm90, %v678
  %v688 = vld [vmem:[#allocation2 + $0x10] sm:$0xff]
  %v689 = vld [vmem:[#allocation6] sm:$0xff]
  %v690 = vpack.c.bf16 %v689, %v689
  %v691 = vld [vmem:[%s2] sm:$0xf]
  %v692 = vld [vmem:[%s2 + $0x4] sm:$0xf]
  %v693 = vld [vmem:[%s2 + $0x8] sm:$0xf]
  %v694 = vld [vmem:[%s2 + $0xc] sm:$0xf]
  %v699 = vunpack.c.l.b16 %v691
  %v700 = vunpack.c.l.b16 %v692
  %v701 = vunpack.c.l.b16 %v693
  %v702 = vunpack.c.l.b16 %v694
  %v703 = vpack.c.b16 %v700, %v699
  %v704 = vpack.c.b16 %v702, %v701
  %v708 = vsel %vm90, %v690, 0
  %710 = vmatprep.subr.bf16.mxu0 0
  %711 = vmatpush1.bf16.msra.mxu0 %v703
  %712 = vmatprep.subr.bf16.mxu0 0
  %713 = vmatpush1.bf16.msra.mxu0 %v704
  %714 = vmatprep.subr.bf16.mxu0 0
  %715 = vmatpush1.bf16.msra.mxu0 0
  %716 = vmatprep.subr.bf16.mxu0 0
  %717 = vmatpush1.bf16.msra.mxu0 0
  %718 = vmatprep.subr.bf16.mxu0 0
  %719 = vmatpush1.bf16.msra.mxu0 0
  %720 = vmatprep.subr.bf16.mxu0 0
  %721 = vmatpush1.bf16.msra.mxu0 0
  %722 = vmatprep.subr.bf16.mxu0 0
  %723 = vmatpush1.bf16.msra.mxu0 0
  %724 = vmatprep.subr.bf16.mxu0 0
  %725 = vmatpush1.bf16.msra.mxu0 0
  %726 = vmatprep.subr.bf16.mxu0 0
  %727 = vmatpush1.bf16.msra.mxu0 0
  %728 = vmatprep.subr.bf16.mxu0 0
  %729 = vmatpush1.bf16.msra.mxu0 0
  %730 = vmatprep.subr.bf16.mxu0 0
  %731 = vmatpush1.bf16.msra.mxu0 0
  %732 = vmatprep.subr.bf16.mxu0 0
  %733 = vmatpush1.bf16.msra.mxu0 0
  %734 = vmatprep.subr.bf16.mxu0 0
  %735 = vmatpush1.bf16.msra.mxu0 0
  %736 = vmatprep.subr.bf16.mxu0 0
  %737 = vmatpush1.bf16.msra.mxu0 0
  %738 = vmatprep.subr.bf16.mxu0 0
  %739 = vmatpush1.bf16.msra.mxu0 0
  %740 = vmatprep.subr.bf16.mxu0 0
  %741 = vmatpush1.bf16.msra.mxu0 0
  %742 = vmatprep.mubr.bf16.mxu0 0
  %743 = vmatmul.mubr.bf16.gmra.mrb[0].mxu0 %v708
  %v744 = vpop.f32.mrb[0].mxu0
  %v745 = vadd.f32 0.0, %v744
  %v746 = vpop.f32.mrb[0].mxu0
  %v747 = vpop.f32.mrb[0].mxu0
  %v748 = vpop.f32.mrb[0].mxu0
  %749 = vdwg.mxu0
  %v750 = vadd.f32 %v688, %v745
  %v751 = vld [vmem:[#allocation3 + $0x28] sm:$0xff]
  %v752 = vld [vmem:[#allocation8] sm:$0xff]
  %v753 = vpack.c.bf16 %v752, %v752
  %v754 = vld [vmem:[%s5] sm:$0xf]
  %v755 = vld [vmem:[%s5 + $0x4] sm:$0xf]
  %v756 = vld [vmem:[%s5 + $0x8] sm:$0xf]
  %v757 = vld [vmem:[%s5 + $0xc] sm:$0xf]
  %v762 = vunpack.c.l.b16 %v754
  %v763 = vunpack.c.l.b16 %v755
  %v764 = vunpack.c.l.b16 %v756
  %v765 = vunpack.c.l.b16 %v757
  %v766 = vpack.c.b16 %v763, %v762
  %v767 = vpack.c.b16 %v765, %v764
  %v771 = vsel %vm90, %v753, 0
  %773 = vmatprep.subr.bf16.mxu0 0
  %774 = vmatpush1.bf16.msra.mxu0 %v766
  %775 = vmatprep.subr.bf16.mxu0 0
  %776 = vmatpush1.bf16.msra.mxu0 %v767
  %777 = vmatprep.subr.bf16.mxu0 0
  %778 = vmatpush1.bf16.msra.mxu0 0
  %779 = vmatprep.subr.bf16.mxu0 0
  %780 = vmatpush1.bf16.msra.mxu0 0
  %781 = vmatprep.subr.bf16.mxu0 0
  %782 = vmatpush1.bf16.msra.mxu0 0
  %783 = vmatprep.subr.bf16.mxu0 0
  %784 = vmatpush1.bf16.msra.mxu0 0
  %785 = vmatprep.subr.bf16.mxu0 0
  %786 = vmatpush1.bf16.msra.mxu0 0
  %787 = vmatprep.subr.bf16.mxu0 0
  %788 = vmatpush1.bf16.msra.mxu0 0
  %789 = vmatprep.subr.bf16.mxu0 0
  %790 = vmatpush1.bf16.msra.mxu0 0
  %791 = vmatprep.subr.bf16.mxu0 0
  %792 = vmatpush1.bf16.msra.mxu0 0
  %793 = vmatprep.subr.bf16.mxu0 0
  %794 = vmatpush1.bf16.msra.mxu0 0
  %795 = vmatprep.subr.bf16.mxu0 0
  %796 = vmatpush1.bf16.msra.mxu0 0
  %797 = vmatprep.subr.bf16.mxu0 0
  %798 = vmatpush1.bf16.msra.mxu0 0
  %799 = vmatprep.subr.bf16.mxu0 0
  %800 = vmatpush1.bf16.msra.mxu0 0
  %801 = vmatprep.subr.bf16.mxu0 0
  %802 = vmatpush1.bf16.msra.mxu0 0
  %803 = vmatprep.subr.bf16.mxu0 0
  %804 = vmatpush1.bf16.msra.mxu0 0
  %805 = vmatprep.mubr.bf16.mxu0 0
  %806 = vmatmul.mubr.bf16.gmra.mrb[0].mxu0 %v771
  %v807 = vpop.f32.mrb[0].mxu0
  %v808 = vadd.f32 0.0, %v807
  %v809 = vpop.f32.mrb[0].mxu0
  %v810 = vpop.f32.mrb[0].mxu0
  %v811 = vpop.f32.mrb[0].mxu0
  %812 = vdwg.mxu0
  %v813 = vadd.f32 %v751, %v808
  %v814 = vld [vmem:[#allocation7] sm:$0xff]
  %v815 = vxor.u32 %v750, 2147483648
  %v816 = vmul.f32 %v815, 1.442695
  %v817 = vpow.pop %v816
  %v818 = vadd.f32 %v817, 1.0
  %v819 = vrcp.pop %v818
  %v820 = vmul.f32 1.0, %v819
  %v821 = vtanh.pop %v750
  %823 = vrot.lane.b32.xlu0 %v814, 32
  %v824 = vpop.permute.xlu0 %823
  %v826 = vmul.f32 %v820, %v824
  %828 = vrot.lane.b32.xlu0 %v821, 32
  %v829 = vpop.permute.xlu0 %828
  %v831 = vmul.f32 %v820, %v829
  %833 = vrot.lane.b32.xlu0 %v831, 32
  %v834 = vpop.permute.xlu0 %833
  %v836 = vadd.f32 %v826, %v834
  %v837 = vtanh.pop %v836
  %839 = vrot.lane.b32.xlu0 %v837, 32
  %v840 = vpop.permute.xlu0 %839
  %v842 = vmul.f32 %v820, %v840
  %v843 = vld [vmem:[#allocation9] sm:$0xff]
  %v844 = vxor.u32 %v813, 2147483648
  %v845 = vmul.f32 %v844, 1.442695
  %v846 = vpow.pop %v845
  %v847 = vadd.f32 %v846, 1.0
  %v848 = vrcp.pop %v847
  %v849 = vmul.f32 1.0, %v848
  %v850 = vtanh.pop %v813
  %852 = vrot.lane.b32.xlu0 %v843, 32
  %v853 = vpop.permute.xlu0 %852
  %v855 = vmul.f32 %v849, %v853
  %857 = vrot.lane.b32.xlu0 %v850, 32
  %v858 = vpop.permute.xlu0 %857
  %v860 = vmul.f32 %v849, %v858
  %862 = vrot.lane.b32.xlu0 %v860, 32
  %v863 = vpop.permute.xlu0 %862
  %v865 = vadd.f32 %v855, %v863
  %v866 = vtanh.pop %v865
  %868 = vrot.lane.b32.xlu0 %v866, 32
  %v869 = vpop.permute.xlu0 %868
  %v871 = vmul.f32 %v849, %v869
  %873 = vrot.lane.b32.xlu0 %v842, 64
  %v874 = vpop.permute.xlu0 %873
  %876 = vst.msk [vmem:[#allocation6] sm:$0xff] %vm90, %v874
  %878 = vrot.lane.b32.xlu0 %v836, 96
  %v879 = vpop.permute.xlu0 %878
  %881 = vst.msk [vmem:[#allocation7] sm:$0xff] %vm90, %v879
  %883 = vrot.lane.b32.xlu0 %v871, 64
  %v884 = vpop.permute.xlu0 %883
  %886 = vst.msk [vmem:[#allocation8] sm:$0xff] %vm90, %v884
  %888 = vrot.lane.b32.xlu0 %v865, 96
  %v889 = vpop.permute.xlu0 %888
  %891 = vst.msk [vmem:[#allocation9] sm:$0xff] %vm90, %v889
  %892 = vst.msk [vmem:[#allocation4 + $0x10] sm:$0xff] %vm90, %v874
  %893 = vst.msk [vmem:[#allocation5 + $0x28] sm:$0xff] %vm90, %v884
  %v894 = vld [vmem:[#allocation2 + $0x18] sm:$0xff]
  %v895 = vld [vmem:[#allocation6] sm:$0xff]
  %v896 = vpack.c.bf16 %v895, %v895
  %v897 = vld [vmem:[%s2] sm:$0xf]
  %v898 = vld [vmem:[%s2 + $0x4] sm:$0xf]
  %v899 = vld [vmem:[%s2 + $0x8] sm:$0xf]
  %v900 = vld [vmem:[%s2 + $0xc] sm:$0xf]
  %v905 = vunpack.c.l.b16 %v897
  %v906 = vunpack.c.l.b16 %v898
  %v907 = vunpack.c.l.b16 %v899
  %v908 = vunpack.c.l.b16 %v900
  %v909 = vpack.c.b16 %v906, %v905
  %v910 = vpack.c.b16 %v908, %v907
  %v914 = vsel %vm90, %v896, 0
  %916 = vmatprep.subr.bf16.mxu0 0
  %917 = vmatpush1.bf16.msra.mxu0 %v909
  %918 = vmatprep.subr.bf16.mxu0 0
  %919 = vmatpush1.bf16.msra.mxu0 %v910
  %920 = vmatprep.subr.bf16.mxu0 0
  %921 = vmatpush1.bf16.msra.mxu0 0
  %922 = vmatprep.subr.bf16.mxu0 0
  %923 = vmatpush1.bf16.msra.mxu0 0
  %924 = vmatprep.subr.bf16.mxu0 0
  %925 = vmatpush1.bf16.msra.mxu0 0
  %926 = vmatprep.subr.bf16.mxu0 0
  %927 = vmatpush1.bf16.msra.mxu0 0
  %928 = vmatprep.subr.bf16.mxu0 0
  %929 = vmatpush1.bf16.msra.mxu0 0
  %930 = vmatprep.subr.bf16.mxu0 0
  %931 = vmatpush1.bf16.msra.mxu0 0
  %932 = vmatprep.subr.bf16.mxu0 0
  %933 = vmatpush1.bf16.msra.mxu0 0
  %934 = vmatprep.subr.bf16.mxu0 0
  %935 = vmatpush1.bf16.msra.mxu0 0
  %936 = vmatprep.subr.bf16.mxu0 0
  %937 = vmatpush1.bf16.msra.mxu0 0
  %938 = vmatprep.subr.bf16.mxu0 0
  %939 = vmatpush1.bf16.msra.mxu0 0
  %940 = vmatprep.subr.bf16.mxu0 0
  %941 = vmatpush1.bf16.msra.mxu0 0
  %942 = vmatprep.subr.bf16.mxu0 0
  %943 = vmatpush1.bf16.msra.mxu0 0
  %944 = vmatprep.subr.bf16.mxu0 0
  %945 = vmatpush1.bf16.msra.mxu0 0
  %946 = vmatprep.subr.bf16.mxu0 0
  %947 = vmatpush1.bf16.msra.mxu0 0
  %948 = vmatprep.mubr.bf16.mxu0 0
  %949 = vmatmul.mubr.bf16.gmra.mrb[0].mxu0 %v914
  %v950 = vpop.f32.mrb[0].mxu0
  %v951 = vadd.f32 0.0, %v950
  %v952 = vpop.f32.mrb[0].mxu0
  %v953 = vpop.f32.mrb[0].mxu0
  %v954 = vpop.f32.mrb[0].mxu0
  %955 = vdwg.mxu0
  %v956 = vadd.f32 %v894, %v951
  %v957 = vld [vmem:[#allocation3 + $0x20] sm:$0xff]
  %v958 = vld [vmem:[#allocation8] sm:$0xff]
  %v959 = vpack.c.bf16 %v958, %v958
  %v960 = vld [vmem:[%s5] sm:$0xf]
  %v961 = vld [vmem:[%s5 + $0x4] sm:$0xf]
  %v962 = vld [vmem:[%s5 + $0x8] sm:$0xf]
  %v963 = vld [vmem:[%s5 + $0xc] sm:$0xf]
  %v968 = vunpack.c.l.b16 %v960
  %v969 = vunpack.c.l.b16 %v961
  %v970 = vunpack.c.l.b16 %v962
  %v971 = vunpack.c.l.b16 %v963
  %v972 = vpack.c.b16 %v969, %v968
  %v973 = vpack.c.b16 %v971, %v970
  %v977 = vsel %vm90, %v959, 0
  %979 = vmatprep.subr.bf16.mxu0 0
  %980 = vmatpush1.bf16.msra.mxu0 %v972
  %981 = vmatprep.subr.bf16.mxu0 0
  %982 = vmatpush1.bf16.msra.mxu0 %v973
  %983 = vmatprep.subr.bf16.mxu0 0
  %984 = vmatpush1.bf16.msra.mxu0 0
  %985 = vmatprep.subr.bf16.mxu0 0
  %986 = vmatpush1.bf16.msra.mxu0 0
  %987 = vmatprep.subr.bf16.mxu0 0
  %988 = vmatpush1.bf16.msra.mxu0 0
  %989 = vmatprep.subr.bf16.mxu0 0
  %990 = vmatpush1.bf16.msra.mxu0 0
  %991 = vmatprep.subr.bf16.mxu0 0
  %992 = vmatpush1.bf16.msra.mxu0 0
  %993 = vmatprep.subr.bf16.mxu0 0
  %994 = vmatpush1.bf16.msra.mxu0 0
  %995 = vmatprep.subr.bf16.mxu0 0
  %996 = vmatpush1.bf16.msra.mxu0 0
  %997 = vmatprep.subr.bf16.mxu0 0
  %998 = vmatpush1.bf16.msra.mxu0 0
  %999 = vmatprep.subr.bf16.mxu0 0
  %1000 = vmatpush1.bf16.msra.mxu0 0
  %1001 = vmatprep.subr.bf16.mxu0 0
  %1002 = vmatpush1.bf16.msra.mxu0 0
  %1003 = vmatprep.subr.bf16.mxu0 0
  %1004 = vmatpush1.bf16.msra.mxu0 0
  %1005 = vmatprep.subr.bf16.mxu0 0
  %1006 = vmatpush1.bf16.msra.mxu0 0
  %1007 = vmatprep.subr.bf16.mxu0 0
  %1008 = vmatpush1.bf16.msra.mxu0 0
  %1009 = vmatprep.subr.bf16.mxu0 0
  %1010 = vmatpush1.bf16.msra.mxu0 0
  %1011 = vmatprep.mubr.bf16.mxu0 0
  %1012 = vmatmul.mubr.bf16.gmra.mrb[0].mxu0 %v977
  %v1013 = vpop.f32.mrb[0].mxu0
  %v1014 = vadd.f32 0.0, %v1013
  %v1015 = vpop.f32.mrb[0].mxu0
  %v1016 = vpop.f32.mrb[0].mxu0
  %v1017 = vpop.f32.mrb[0].mxu0
  %1018 = vdwg.mxu0
  %v1019 = vadd.f32 %v957, %v1014
  %v1020 = vld [vmem:[#allocation7] sm:$0xff]
  %v1021 = vxor.u32 %v956, 2147483648
  %v1022 = vmul.f32 %v1021, 1.442695
  %v1023 = vpow.pop %v1022
  %v1024 = vadd.f32 %v1023, 1.0
  %v1025 = vrcp.pop %v1024
  %v1026 = vmul.f32 1.0, %v1025
  %v1027 = vtanh.pop %v956
  %1029 = vrot.lane.b32.xlu0 %v1020, 32
  %v1030 = vpop.permute.xlu0 %1029
  %v1032 = vmul.f32 %v1026, %v1030
  %1034 = vrot.lane.b32.xlu0 %v1027, 32
  %v1035 = vpop.permute.xlu0 %1034
  %v1037 = vmul.f32 %v1026, %v1035
  %1039 = vrot.lane.b32.xlu0 %v1037, 32
  %v1040 = vpop.permute.xlu0 %1039
  %v1042 = vadd.f32 %v1032, %v1040
  %v1043 = vtanh.pop %v1042
  %1045 = vrot.lane.b32.xlu0 %v1043, 32
  %v1046 = vpop.permute.xlu0 %1045
  %v1048 = vmul.f32 %v1026, %v1046
  %v1049 = vld [vmem:[#allocation9] sm:$0xff]
  %v1050 = vxor.u32 %v1019, 2147483648
  %v1051 = vmul.f32 %v1050, 1.442695
  %v1052 = vpow.pop %v1051
  %v1053 = vadd.f32 %v1052, 1.0
  %v1054 = vrcp.pop %v1053
  %v1055 = vmul.f32 1.0, %v1054
  %v1056 = vtanh.pop %v1019
  %1058 = vrot.lane.b32.xlu0 %v1049, 32
  %v1059 = vpop.permute.xlu0 %1058
  %v1061 = vmul.f32 %v1055, %v1059
  %1063 = vrot.lane.b32.xlu0 %v1056, 32
  %v1064 = vpop.permute.xlu0 %1063
  %v1066 = vmul.f32 %v1055, %v1064
  %1068 = vrot.lane.b32.xlu0 %v1066, 32
  %v1069 = vpop.permute.xlu0 %1068
  %v1071 = vadd.f32 %v1061, %v1069
  %v1072 = vtanh.pop %v1071
  %1074 = vrot.lane.b32.xlu0 %v1072, 32
  %v1075 = vpop.permute.xlu0 %1074
  %v1077 = vmul.f32 %v1055, %v1075
  %1079 = vrot.lane.b32.xlu0 %v1048, 64
  %v1080 = vpop.permute.xlu0 %1079
  %1082 = vst.msk [vmem:[#allocation6] sm:$0xff] %vm90, %v1080
  %1084 = vrot.lane.b32.xlu0 %v1042, 96
  %v1085 = vpop.permute.xlu0 %1084
  %1087 = vst.msk [vmem:[#allocation7] sm:$0xff] %vm90, %v1085
  %1089 = vrot.lane.b32.xlu0 %v1077, 64
  %v1090 = vpop.permute.xlu0 %1089
  %1092 = vst.msk [vmem:[#allocation8] sm:$0xff] %vm90, %v1090
  %1094 = vrot.lane.b32.xlu0 %v1071, 96
  %v1095 = vpop.permute.xlu0 %1094
  %1097 = vst.msk [vmem:[#allocation9] sm:$0xff] %vm90, %v1095
  %1098 = vst.msk [vmem:[#allocation4 + $0x18] sm:$0xff] %vm90, %v1080
  %1099 = vst.msk [vmem:[#allocation5 + $0x20] sm:$0xff] %vm90, %v1090
  %v1100 = vld [vmem:[#allocation2 + $0x20] sm:$0xff]
  %v1101 = vld [vmem:[#allocation6] sm:$0xff]
  %v1102 = vpack.c.bf16 %v1101, %v1101
  %v1103 = vld [vmem:[%s2] sm:$0xf]
  %v1104 = vld [vmem:[%s2 + $0x4] sm:$0xf]
  %v1105 = vld [vmem:[%s2 + $0x8] sm:$0xf]
  %v1106 = vld [vmem:[%s2 + $0xc] sm:$0xf]
  %v1111 = vunpack.c.l.b16 %v1103
  %v1112 = vunpack.c.l.b16 %v1104
  %v1113 = vunpack.c.l.b16 %v1105
  %v1114 = vunpack.c.l.b16 %v1106
  %v1115 = vpack.c.b16 %v1112, %v1111
  %v1116 = vpack.c.b16 %v1114, %v1113
  %v1120 = vsel %vm90, %v1102, 0
  %1122 = vmatprep.subr.bf16.mxu0 0
  %1123 = vmatpush1.bf16.msra.mxu0 %v1115
  %1124 = vmatprep.subr.bf16.mxu0 0
  %1125 = vmatpush1.bf16.msra.mxu0 %v1116
  %1126 = vmatprep.subr.bf16.mxu0 0
  %1127 = vmatpush1.bf16.msra.mxu0 0
  %1128 = vmatprep.subr.bf16.mxu0 0
  %1129 = vmatpush1.bf16.msra.mxu0 0
  %1130 = vmatprep.subr.bf16.mxu0 0
  %1131 = vmatpush1.bf16.msra.mxu0 0
  %1132 = vmatprep.subr.bf16.mxu0 0
  %1133 = vmatpush1.bf16.msra.mxu0 0
  %1134 = vmatprep.subr.bf16.mxu0 0
  %1135 = vmatpush1.bf16.msra.mxu0 0
  %1136 = vmatprep.subr.bf16.mxu0 0
  %1137 = vmatpush1.bf16.msra.mxu0 0
  %1138 = vmatprep.subr.bf16.mxu0 0
  %1139 = vmatpush1.bf16.msra.mxu0 0
  %1140 = vmatprep.subr.bf16.mxu0 0
  %1141 = vmatpush1.bf16.msra.mxu0 0
  %1142 = vmatprep.subr.bf16.mxu0 0
  %1143 = vmatpush1.bf16.msra.mxu0 0
  %1144 = vmatprep.subr.bf16.mxu0 0
  %1145 = vmatpush1.bf16.msra.mxu0 0
  %1146 = vmatprep.subr.bf16.mxu0 0
  %1147 = vmatpush1.bf16.msra.mxu0 0
  %1148 = vmatprep.subr.bf16.mxu0 0
  %1149 = vmatpush1.bf16.msra.mxu0 0
  %1150 = vmatprep.subr.bf16.mxu0 0
  %1151 = vmatpush1.bf16.msra.mxu0 0
  %1152 = vmatprep.subr.bf16.mxu0 0
  %1153 = vmatpush1.bf16.msra.mxu0 0
  %1154 = vmatprep.mubr.bf16.mxu0 0
  %1155 = vmatmul.mubr.bf16.gmra.mrb[0].mxu0 %v1120
  %v1156 = vpop.f32.mrb[0].mxu0
  %v1157 = vadd.f32 0.0, %v1156
  %v1158 = vpop.f32.mrb[0].mxu0
  %v1159 = vpop.f32.mrb[0].mxu0
  %v1160 = vpop.f32.mrb[0].mxu0
  %1161 = vdwg.mxu0
  %v1162 = vadd.f32 %v1100, %v1157
  %v1163 = vld [vmem:[#allocation3 + $0x18] sm:$0xff]
  %v1164 = vld [vmem:[#allocation8] sm:$0xff]
  %v1165 = vpack.c.bf16 %v1164, %v1164
  %v1166 = vld [vmem:[%s5] sm:$0xf]
  %v1167 = vld [vmem:[%s5 + $0x4] sm:$0xf]
  %v1168 = vld [vmem:[%s5 + $0x8] sm:$0xf]
  %v1169 = vld [vmem:[%s5 + $0xc] sm:$0xf]
  %v1174 = vunpack.c.l.b16 %v1166
  %v1175 = vunpack.c.l.b16 %v1167
  %v1176 = vunpack.c.l.b16 %v1168
  %v1177 = vunpack.c.l.b16 %v1169
  %v1178 = vpack.c.b16 %v1175, %v1174
  %v1179 = vpack.c.b16 %v1177, %v1176
  %v1183 = vsel %vm90, %v1165, 0
  %1185 = vmatprep.subr.bf16.mxu0 0
  %1186 = vmatpush1.bf16.msra.mxu0 %v1178
  %1187 = vmatprep.subr.bf16.mxu0 0
  %1188 = vmatpush1.bf16.msra.mxu0 %v1179
  %1189 = vmatprep.subr.bf16.mxu0 0
  %1190 = vmatpush1.bf16.msra.mxu0 0
  %1191 = vmatprep.subr.bf16.mxu0 0
  %1192 = vmatpush1.bf16.msra.mxu0 0
  %1193 = vmatprep.subr.bf16.mxu0 0
  %1194 = vmatpush1.bf16.msra.mxu0 0
  %1195 = vmatprep.subr.bf16.mxu0 0
  %1196 = vmatpush1.bf16.msra.mxu0 0
  %1197 = vmatprep.subr.bf16.mxu0 0
  %1198 = vmatpush1.bf16.msra.mxu0 0
  %1199 = vmatprep.subr.bf16.mxu0 0
  %1200 = vmatpush1.bf16.msra.mxu0 0
  %1201 = vmatprep.subr.bf16.mxu0 0
  %1202 = vmatpush1.bf16.msra.mxu0 0
  %1203 = vmatprep.subr.bf16.mxu0 0
  %1204 = vmatpush1.bf16.msra.mxu0 0
  %1205 = vmatprep.subr.bf16.mxu0 0
  %1206 = vmatpush1.bf16.msra.mxu0 0
  %1207 = vmatprep.subr.bf16.mxu0 0
  %1208 = vmatpush1.bf16.msra.mxu0 0
  %1209 = vmatprep.subr.bf16.mxu0 0
  %1210 = vmatpush1.bf16.msra.mxu0 0
  %1211 = vmatprep.subr.bf16.mxu0 0
  %1212 = vmatpush1.bf16.msra.mxu0 0
  %1213 = vmatprep.subr.bf16.mxu0 0
  %1214 = vmatpush1.bf16.msra.mxu0 0
  %1215 = vmatprep.subr.bf16.mxu0 0
  %1216 = vmatpush1.bf16.msra.mxu0 0
  %1217 = vmatprep.mubr.bf16.mxu0 0
  %1218 = vmatmul.mubr.bf16.gmra.mrb[0].mxu0 %v1183
  %v1219 = vpop.f32.mrb[0].mxu0
  %v1220 = vadd.f32 0.0, %v1219
  %v1221 = vpop.f32.mrb[0].mxu0
  %v1222 = vpop.f32.mrb[0].mxu0
  %v1223 = vpop.f32.mrb[0].mxu0
  %1224 = vdwg.mxu0
  %v1225 = vadd.f32 %v1163, %v1220
  %v1226 = vld [vmem:[#allocation7] sm:$0xff]
  %v1227 = vxor.u32 %v1162, 2147483648
  %v1228 = vmul.f32 %v1227, 1.442695
  %v1229 = vpow.pop %v1228
  %v1230 = vadd.f32 %v1229, 1.0
  %v1231 = vrcp.pop %v1230
  %v1232 = vmul.f32 1.0, %v1231
  %v1233 = vtanh.pop %v1162
  %1235 = vrot.lane.b32.xlu0 %v1226, 32
  %v1236 = vpop.permute.xlu0 %1235
  %v1238 = vmul.f32 %v1232, %v1236
  %1240 = vrot.lane.b32.xlu0 %v1233, 32
  %v1241 = vpop.permute.xlu0 %1240
  %v1243 = vmul.f32 %v1232, %v1241
  %1245 = vrot.lane.b32.xlu0 %v1243, 32
  %v1246 = vpop.permute.xlu0 %1245
  %v1248 = vadd.f32 %v1238, %v1246
  %v1249 = vtanh.pop %v1248
  %1251 = vrot.lane.b32.xlu0 %v1249, 32
  %v1252 = vpop.permute.xlu0 %1251
  %v1254 = vmul.f32 %v1232, %v1252
  %v1255 = vld [vmem:[#allocation9] sm:$0xff]
  %v1256 = vxor.u32 %v1225, 2147483648
  %v1257 = vmul.f32 %v1256, 1.442695
  %v1258 = vpow.pop %v1257
  %v1259 = vadd.f32 %v1258, 1.0
  %v1260 = vrcp.pop %v1259
  %v1261 = vmul.f32 1.0, %v1260
  %v1262 = vtanh.pop %v1225
  %1264 = vrot.lane.b32.xlu0 %v1255, 32
  %v1265 = vpop.permute.xlu0 %1264
  %v1267 = vmul.f32 %v1261, %v1265
  %1269 = vrot.lane.b32.xlu0 %v1262, 32
  %v1270 = vpop.permute.xlu0 %1269
  %v1272 = vmul.f32 %v1261, %v1270
  %1274 = vrot.lane.b32.xlu0 %v1272, 32
  %v1275 = vpop.permute.xlu0 %1274
  %v1277 = vadd.f32 %v1267, %v1275
  %v1278 = vtanh.pop %v1277
  %1280 = vrot.lane.b32.xlu0 %v1278, 32
  %v1281 = vpop.permute.xlu0 %1280
  %v1283 = vmul.f32 %v1261, %v1281
  %1285 = vrot.lane.b32.xlu0 %v1254, 64
  %v1286 = vpop.permute.xlu0 %1285
  %1288 = vst.msk [vmem:[#allocation6] sm:$0xff] %vm90, %v1286
  %1290 = vrot.lane.b32.xlu0 %v1248, 96
  %v1291 = vpop.permute.xlu0 %1290
  %1293 = vst.msk [vmem:[#allocation7] sm:$0xff] %vm90, %v1291
  %1295 = vrot.lane.b32.xlu0 %v1283, 64
  %v1296 = vpop.permute.xlu0 %1295
  %1298 = vst.msk [vmem:[#allocation8] sm:$0xff] %vm90, %v1296
  %1300 = vrot.lane.b32.xlu0 %v1277, 96
  %v1301 = vpop.permute.xlu0 %1300
  %1303 = vst.msk [vmem:[#allocation9] sm:$0xff] %vm90, %v1301
  %1304 = vst.msk [vmem:[#allocation4 + $0x20] sm:$0xff] %vm90, %v1286
  %1305 = vst.msk [vmem:[#allocation5 + $0x18] sm:$0xff] %vm90, %v1296
  %v1306 = vld [vmem:[#allocation2 + $0x28] sm:$0xff]
  %v1307 = vld [vmem:[#allocation6] sm:$0xff]
  %v1308 = vpack.c.bf16 %v1307, %v1307
  %v1309 = vld [vmem:[%s2] sm:$0xf]
  %v1310 = vld [vmem:[%s2 + $0x4] sm:$0xf]
  %v1311 = vld [vmem:[%s2 + $0x8] sm:$0xf]
  %v1312 = vld [vmem:[%s2 + $0xc] sm:$0xf]
  %v1317 = vunpack.c.l.b16 %v1309
  %v1318 = vunpack.c.l.b16 %v1310
  %v1319 = vunpack.c.l.b16 %v1311
  %v1320 = vunpack.c.l.b16 %v1312
  %v1321 = vpack.c.b16 %v1318, %v1317
  %v1322 = vpack.c.b16 %v1320, %v1319
  %v1326 = vsel %vm90, %v1308, 0
  %1328 = vmatprep.subr.bf16.mxu0 0
  %1329 = vmatpush1.bf16.msra.mxu0 %v1321
  %1330 = vmatprep.subr.bf16.mxu0 0
  %1331 = vmatpush1.bf16.msra.mxu0 %v1322
  %1332 = vmatprep.subr.bf16.mxu0 0
  %1333 = vmatpush1.bf16.msra.mxu0 0
  %1334 = vmatprep.subr.bf16.mxu0 0
  %1335 = vmatpush1.bf16.msra.mxu0 0
  %1336 = vmatprep.subr.bf16.mxu0 0
  %1337 = vmatpush1.bf16.msra.mxu0 0
  %1338 = vmatprep.subr.bf16.mxu0 0
  %1339 = vmatpush1.bf16.msra.mxu0 0
  %1340 = vmatprep.subr.bf16.mxu0 0
  %1341 = vmatpush1.bf16.msra.mxu0 0
  %1342 = vmatprep.subr.bf16.mxu0 0
  %1343 = vmatpush1.bf16.msra.mxu0 0
  %1344 = vmatprep.subr.bf16.mxu0 0
  %1345 = vmatpush1.bf16.msra.mxu0 0
  %1346 = vmatprep.subr.bf16.mxu0 0
  %1347 = vmatpush1.bf16.msra.mxu0 0
  %1348 = vmatprep.subr.bf16.mxu0 0
  %1349 = vmatpush1.bf16.msra.mxu0 0
  %1350 = vmatprep.subr.bf16.mxu0 0
  %1351 = vmatpush1.bf16.msra.mxu0 0
  %1352 = vmatprep.subr.bf16.mxu0 0
  %1353 = vmatpush1.bf16.msra.mxu0 0
  %1354 = vmatprep.subr.bf16.mxu0 0
  %1355 = vmatpush1.bf16.msra.mxu0 0
  %1356 = vmatprep.subr.bf16.mxu0 0
  %1357 = vmatpush1.bf16.msra.mxu0 0
  %1358 = vmatprep.subr.bf16.mxu0 0
  %1359 = vmatpush1.bf16.msra.mxu0 0
  %1360 = vmatprep.mubr.bf16.mxu0 0
  %1361 = vmatmul.mubr.bf16.gmra.mrb[0].mxu0 %v1326
  %v1362 = vpop.f32.mrb[0].mxu0
  %v1363 = vadd.f32 0.0, %v1362
  %v1364 = vpop.f32.mrb[0].mxu0
  %v1365 = vpop.f32.mrb[0].mxu0
  %v1366 = vpop.f32.mrb[0].mxu0
  %1367 = vdwg.mxu0
  %v1368 = vadd.f32 %v1306, %v1363
  %v1369 = vld [vmem:[#allocation3 + $0x10] sm:$0xff]
  %v1370 = vld [vmem:[#allocation8] sm:$0xff]
  %v1371 = vpack.c.bf16 %v1370, %v1370
  %v1372 = vld [vmem:[%s5] sm:$0xf]
  %v1373 = vld [vmem:[%s5 + $0x4] sm:$0xf]
  %v1374 = vld [vmem:[%s5 + $0x8] sm:$0xf]
  %v1375 = vld [vmem:[%s5 + $0xc] sm:$0xf]
  %v1380 = vunpack.c.l.b16 %v1372
  %v1381 = vunpack.c.l.b16 %v1373
  %v1382 = vunpack.c.l.b16 %v1374
  %v1383 = vunpack.c.l.b16 %v1375
  %v1384 = vpack.c.b16 %v1381, %v1380
  %v1385 = vpack.c.b16 %v1383, %v1382
  %v1389 = vsel %vm90, %v1371, 0
  %1391 = vmatprep.subr.bf16.mxu0 0
  %1392 = vmatpush1.bf16.msra.mxu0 %v1384
  %1393 = vmatprep.subr.bf16.mxu0 0
  %1394 = vmatpush1.bf16.msra.mxu0 %v1385
  %1395 = vmatprep.subr.bf16.mxu0 0
  %1396 = vmatpush1.bf16.msra.mxu0 0
  %1397 = vmatprep.subr.bf16.mxu0 0
  %1398 = vmatpush1.bf16.msra.mxu0 0
  %1399 = vmatprep.subr.bf16.mxu0 0
  %1400 = vmatpush1.bf16.msra.mxu0 0
  %1401 = vmatprep.subr.bf16.mxu0 0
  %1402 = vmatpush1.bf16.msra.mxu0 0
  %1403 = vmatprep.subr.bf16.mxu0 0
  %1404 = vmatpush1.bf16.msra.mxu0 0
  %1405 = vmatprep.subr.bf16.mxu0 0
  %1406 = vmatpush1.bf16.msra.mxu0 0
  %1407 = vmatprep.subr.bf16.mxu0 0
  %1408 = vmatpush1.bf16.msra.mxu0 0
  %1409 = vmatprep.subr.bf16.mxu0 0
  %1410 = vmatpush1.bf16.msra.mxu0 0
  %1411 = vmatprep.subr.bf16.mxu0 0
  %1412 = vmatpush1.bf16.msra.mxu0 0
  %1413 = vmatprep.subr.bf16.mxu0 0
  %1414 = vmatpush1.bf16.msra.mxu0 0
  %1415 = vmatprep.subr.bf16.mxu0 0
  %1416 = vmatpush1.bf16.msra.mxu0 0
  %1417 = vmatprep.subr.bf16.mxu0 0
  %1418 = vmatpush1.bf16.msra.mxu0 0
  %1419 = vmatprep.subr.bf16.mxu0 0
  %1420 = vmatpush1.bf16.msra.mxu0 0
  %1421 = vmatprep.subr.bf16.mxu0 0
  %1422 = vmatpush1.bf16.msra.mxu0 0
  %1423 = vmatprep.mubr.bf16.mxu0 0
  %1424 = vmatmul.mubr.bf16.gmra.mrb[0].mxu0 %v1389
  %v1425 = vpop.f32.mrb[0].mxu0
  %v1426 = vadd.f32 0.0, %v1425
  %v1427 = vpop.f32.mrb[0].mxu0
  %v1428 = vpop.f32.mrb[0].mxu0
  %v1429 = vpop.f32.mrb[0].mxu0
  %1430 = vdwg.mxu0
  %v1431 = vadd.f32 %v1369, %v1426
  %v1432 = vld [vmem:[#allocation7] sm:$0xff]
  %v1433 = vxor.u32 %v1368, 2147483648
  %v1434 = vmul.f32 %v1433, 1.442695
  %v1435 = vpow.pop %v1434
  %v1436 = vadd.f32 %v1435, 1.0
  %v1437 = vrcp.pop %v1436
  %v1438 = vmul.f32 1.0, %v1437
  %v1439 = vtanh.pop %v1368
  %1441 = vrot.lane.b32.xlu0 %v1432, 32
  %v1442 = vpop.permute.xlu0 %1441
  %v1444 = vmul.f32 %v1438, %v1442
  %1446 = vrot.lane.b32.xlu0 %v1439, 32
  %v1447 = vpop.permute.xlu0 %1446
  %v1449 = vmul.f32 %v1438, %v1447
  %1451 = vrot.lane.b32.xlu0 %v1449, 32
  %v1452 = vpop.permute.xlu0 %1451
  %v1454 = vadd.f32 %v1444, %v1452
  %v1455 = vtanh.pop %v1454
  %1457 = vrot.lane.b32.xlu0 %v1455, 32
  %v1458 = vpop.permute.xlu0 %1457
  %v1460 = vmul.f32 %v1438, %v1458
  %v1461 = vld [vmem:[#allocation9] sm:$0xff]
  %v1462 = vxor.u32 %v1431, 2147483648
  %v1463 = vmul.f32 %v1462, 1.442695
  %v1464 = vpow.pop %v1463
  %v1465 = vadd.f32 %v1464, 1.0
  %v1466 = vrcp.pop %v1465
  %v1467 = vmul.f32 1.0, %v1466
  %v1468 = vtanh.pop %v1431
  %1470 = vrot.lane.b32.xlu0 %v1461, 32
  %v1471 = vpop.permute.xlu0 %1470
  %v1473 = vmul.f32 %v1467, %v1471
  %1475 = vrot.lane.b32.xlu0 %v1468, 32
  %v1476 = vpop.permute.xlu0 %1475
  %v1478 = vmul.f32 %v1467, %v1476
  %1480 = vrot.lane.b32.xlu0 %v1478, 32
  %v1481 = vpop.permute.xlu0 %1480
  %v1483 = vadd.f32 %v1473, %v1481
  %v1484 = vtanh.pop %v1483
  %1486 = vrot.lane.b32.xlu0 %v1484, 32
  %v1487 = vpop.permute.xlu0 %1486
  %v1489 = vmul.f32 %v1467, %v1487
  %1491 = vrot.lane.b32.xlu0 %v1460, 64
  %v1492 = vpop.permute.xlu0 %1491
  %1494 = vst.msk [vmem:[#allocation6] sm:$0xff] %vm90, %v1492
  %1496 = vrot.lane.b32.xlu0 %v1454, 96
  %v1497 = vpop.permute.xlu0 %1496
  %1499 = vst.msk [vmem:[#allocation7] sm:$0xff] %vm90, %v1497
  %1501 = vrot.lane.b32.xlu0 %v1489, 64
  %v1502 = vpop.permute.xlu0 %1501
  %1504 = vst.msk [vmem:[#allocation8] sm:$0xff] %vm90, %v1502
  %1506 = vrot.lane.b32.xlu0 %v1483, 96
  %v1507 = vpop.permute.xlu0 %1506
  %1509 = vst.msk [vmem:[#allocation9] sm:$0xff] %vm90, %v1507
  %1510 = vst.msk [vmem:[#allocation4 + $0x28] sm:$0xff] %vm90, %v1492
  %1511 = vst.msk [vmem:[#allocation5 + $0x10] sm:$0xff] %vm90, %v1502
  %v1512 = vld [vmem:[#allocation2 + $0x30] sm:$0xff]
  %v1513 = vld [vmem:[#allocation6] sm:$0xff]
  %v1514 = vpack.c.bf16 %v1513, %v1513
  %v1515 = vld [vmem:[%s2] sm:$0xf]
  %v1516 = vld [vmem:[%s2 + $0x4] sm:$0xf]
  %v1517 = vld [vmem:[%s2 + $0x8] sm:$0xf]
  %v1518 = vld [vmem:[%s2 + $0xc] sm:$0xf]
  %v1523 = vunpack.c.l.b16 %v1515
  %v1524 = vunpack.c.l.b16 %v1516
  %v1525 = vunpack.c.l.b16 %v1517
  %v1526 = vunpack.c.l.b16 %v1518
  %v1527 = vpack.c.b16 %v1524, %v1523
  %v1528 = vpack.c.b16 %v1526, %v1525
  %v1532 = vsel %vm90, %v1514, 0
  %1534 = vmatprep.subr.bf16.mxu0 0
  %1535 = vmatpush1.bf16.msra.mxu0 %v1527
  %1536 = vmatprep.subr.bf16.mxu0 0
  %1537 = vmatpush1.bf16.msra.mxu0 %v1528
  %1538 = vmatprep.subr.bf16.mxu0 0
  %1539 = vmatpush1.bf16.msra.mxu0 0
  %1540 = vmatprep.subr.bf16.mxu0 0
  %1541 = vmatpush1.bf16.msra.mxu0 0
  %1542 = vmatprep.subr.bf16.mxu0 0
  %1543 = vmatpush1.bf16.msra.mxu0 0
  %1544 = vmatprep.subr.bf16.mxu0 0
  %1545 = vmatpush1.bf16.msra.mxu0 0
  %1546 = vmatprep.subr.bf16.mxu0 0
  %1547 = vmatpush1.bf16.msra.mxu0 0
  %1548 = vmatprep.subr.bf16.mxu0 0
  %1549 = vmatpush1.bf16.msra.mxu0 0
  %1550 = vmatprep.subr.bf16.mxu0 0
  %1551 = vmatpush1.bf16.msra.mxu0 0
  %1552 = vmatprep.subr.bf16.mxu0 0
  %1553 = vmatpush1.bf16.msra.mxu0 0
  %1554 = vmatprep.subr.bf16.mxu0 0
  %1555 = vmatpush1.bf16.msra.mxu0 0
  %1556 = vmatprep.subr.bf16.mxu0 0
  %1557 = vmatpush1.bf16.msra.mxu0 0
  %1558 = vmatprep.subr.bf16.mxu0 0
  %1559 = vmatpush1.bf16.msra.mxu0 0
  %1560 = vmatprep.subr.bf16.mxu0 0
  %1561 = vmatpush1.bf16.msra.mxu0 0
  %1562 = vmatprep.subr.bf16.mxu0 0
  %1563 = vmatpush1.bf16.msra.mxu0 0
  %1564 = vmatprep.subr.bf16.mxu0 0
  %1565 = vmatpush1.bf16.msra.mxu0 0
  %1566 = vmatprep.mubr.bf16.mxu0 0
  %1567 = vmatmul.mubr.bf16.gmra.mrb[0].mxu0 %v1532
  %v1568 = vpop.f32.mrb[0].mxu0
  %v1569 = vadd.f32 0.0, %v1568
  %v1570 = vpop.f32.mrb[0].mxu0
  %v1571 = vpop.f32.mrb[0].mxu0
  %v1572 = vpop.f32.mrb[0].mxu0
  %1573 = vdwg.mxu0
  %v1574 = vadd.f32 %v1512, %v1569
  %v1575 = vld [vmem:[#allocation3 + $0x8] sm:$0xff]
  %v1576 = vld [vmem:[#allocation8] sm:$0xff]
  %v1577 = vpack.c.bf16 %v1576, %v1576
  %v1578 = vld [vmem:[%s5] sm:$0xf]
  %v1579 = vld [vmem:[%s5 + $0x4] sm:$0xf]
  %v1580 = vld [vmem:[%s5 + $0x8] sm:$0xf]
  %v1581 = vld [vmem:[%s5 + $0xc] sm:$0xf]
  %v1586 = vunpack.c.l.b16 %v1578
  %v1587 = vunpack.c.l.b16 %v1579
  %v1588 = vunpack.c.l.b16 %v1580
  %v1589 = vunpack.c.l.b16 %v1581
  %v1590 = vpack.c.b16 %v1587, %v1586
  %v1591 = vpack.c.b16 %v1589, %v1588
  %v1595 = vsel %vm90, %v1577, 0
  %1597 = vmatprep.subr.bf16.mxu0 0
  %1598 = vmatpush1.bf16.msra.mxu0 %v1590
  %1599 = vmatprep.subr.bf16.mxu0 0
  %1600 = vmatpush1.bf16.msra.mxu0 %v1591
  %1601 = vmatprep.subr.bf16.mxu0 0
  %1602 = vmatpush1.bf16.msra.mxu0 0
  %1603 = vmatprep.subr.bf16.mxu0 0
  %1604 = vmatpush1.bf16.msra.mxu0 0
  %1605 = vmatprep.subr.bf16.mxu0 0
  %1606 = vmatpush1.bf16.msra.mxu0 0
  %1607 = vmatprep.subr.bf16.mxu0 0
  %1608 = vmatpush1.bf16.msra.mxu0 0
  %1609 = vmatprep.subr.bf16.mxu0 0
  %1610 = vmatpush1.bf16.msra.mxu0 0
  %1611 = vmatprep.subr.bf16.mxu0 0
  %1612 = vmatpush1.bf16.msra.mxu0 0
  %1613 = vmatprep.subr.bf16.mxu0 0
  %1614 = vmatpush1.bf16.msra.mxu0 0
  %1615 = vmatprep.subr.bf16.mxu0 0
  %1616 = vmatpush1.bf16.msra.mxu0 0
  %1617 = vmatprep.subr.bf16.mxu0 0
  %1618 = vmatpush1.bf16.msra.mxu0 0
  %1619 = vmatprep.subr.bf16.mxu0 0
  %1620 = vmatpush1.bf16.msra.mxu0 0
  %1621 = vmatprep.subr.bf16.mxu0 0
  %1622 = vmatpush1.bf16.msra.mxu0 0
  %1623 = vmatprep.subr.bf16.mxu0 0
  %1624 = vmatpush1.bf16.msra.mxu0 0
  %1625 = vmatprep.subr.bf16.mxu0 0
  %1626 = vmatpush1.bf16.msra.mxu0 0
  %1627 = vmatprep.subr.bf16.mxu0 0
  %1628 = vmatpush1.bf16.msra.mxu0 0
  %1629 = vmatprep.mubr.bf16.mxu0 0
  %1630 = vmatmul.mubr.bf16.gmra.mrb[0].mxu0 %v1595
  %v1631 = vpop.f32.mrb[0].mxu0
  %v1632 = vadd.f32 0.0, %v1631
  %v1633 = vpop.f32.mrb[0].mxu0
  %v1634 = vpop.f32.mrb[0].mxu0
  %v1635 = vpop.f32.mrb[0].mxu0
  %1636 = vdwg.mxu0
  %v1637 = vadd.f32 %v1575, %v1632
  %v1638 = vld [vmem:[#allocation7] sm:$0xff]
  %v1639 = vxor.u32 %v1574, 2147483648
  %v1640 = vmul.f32 %v1639, 1.442695
  %v1641 = vpow.pop %v1640
  %v1642 = vadd.f32 %v1641, 1.0
  %v1643 = vrcp.pop %v1642
  %v1644 = vmul.f32 1.0, %v1643
  %v1645 = vtanh.pop %v1574
  %1647 = vrot.lane.b32.xlu0 %v1638, 32
  %v1648 = vpop.permute.xlu0 %1647
  %v1650 = vmul.f32 %v1644, %v1648
  %1652 = vrot.lane.b32.xlu0 %v1645, 32
  %v1653 = vpop.permute.xlu0 %1652
  %v1655 = vmul.f32 %v1644, %v1653
  %1657 = vrot.lane.b32.xlu0 %v1655, 32
  %v1658 = vpop.permute.xlu0 %1657
  %v1660 = vadd.f32 %v1650, %v1658
  %v1661 = vtanh.pop %v1660
  %1663 = vrot.lane.b32.xlu0 %v1661, 32
  %v1664 = vpop.permute.xlu0 %1663
  %v1666 = vmul.f32 %v1644, %v1664
  %v1667 = vld [vmem:[#allocation9] sm:$0xff]
  %v1668 = vxor.u32 %v1637, 2147483648
  %v1669 = vmul.f32 %v1668, 1.442695
  %v1670 = vpow.pop %v1669
  %v1671 = vadd.f32 %v1670, 1.0
  %v1672 = vrcp.pop %v1671
  %v1673 = vmul.f32 1.0, %v1672
  %v1674 = vtanh.pop %v1637
  %1676 = vrot.lane.b32.xlu0 %v1667, 32
  %v1677 = vpop.permute.xlu0 %1676
  %v1679 = vmul.f32 %v1673, %v1677
  %1681 = vrot.lane.b32.xlu0 %v1674, 32
  %v1682 = vpop.permute.xlu0 %1681
  %v1684 = vmul.f32 %v1673, %v1682
  %1686 = vrot.lane.b32.xlu0 %v1684, 32
  %v1687 = vpop.permute.xlu0 %1686
  %v1689 = vadd.f32 %v1679, %v1687
  %v1690 = vtanh.pop %v1689
  %1692 = vrot.lane.b32.xlu0 %v1690, 32
  %v1693 = vpop.permute.xlu0 %1692
  %v1695 = vmul.f32 %v1673, %v1693
  %1697 = vrot.lane.b32.xlu0 %v1666, 64
  %v1698 = vpop.permute.xlu0 %1697
  %1700 = vst.msk [vmem:[#allocation6] sm:$0xff] %vm90, %v1698
  %1702 = vrot.lane.b32.xlu0 %v1660, 96
  %v1703 = vpop.permute.xlu0 %1702
  %1705 = vst.msk [vmem:[#allocation7] sm:$0xff] %vm90, %v1703
  %1707 = vrot.lane.b32.xlu0 %v1695, 64
  %v1708 = vpop.permute.xlu0 %1707
  %1710 = vst.msk [vmem:[#allocation8] sm:$0xff] %vm90, %v1708
  %1712 = vrot.lane.b32.xlu0 %v1689, 96
  %v1713 = vpop.permute.xlu0 %1712
  %1715 = vst.msk [vmem:[#allocation9] sm:$0xff] %vm90, %v1713
  %1716 = vst.msk [vmem:[#allocation4 + $0x30] sm:$0xff] %vm90, %v1698
  %1717 = vst.msk [vmem:[#allocation5 + $0x8] sm:$0xff] %vm90, %v1708
  %v1718 = vld [vmem:[#allocation2 + $0x38] sm:$0xff]
  %v1719 = vld [vmem:[#allocation6] sm:$0xff]
  %v1720 = vpack.c.bf16 %v1719, %v1719
  %v1721 = vld [vmem:[%s2] sm:$0xf]
  %v1722 = vld [vmem:[%s2 + $0x4] sm:$0xf]
  %v1723 = vld [vmem:[%s2 + $0x8] sm:$0xf]
  %v1724 = vld [vmem:[%s2 + $0xc] sm:$0xf]
  %v1729 = vunpack.c.l.b16 %v1721
  %v1730 = vunpack.c.l.b16 %v1722
  %v1731 = vunpack.c.l.b16 %v1723
  %v1732 = vunpack.c.l.b16 %v1724
  %v1733 = vpack.c.b16 %v1730, %v1729
  %v1734 = vpack.c.b16 %v1732, %v1731
  %v1738 = vsel %vm90, %v1720, 0
  %1740 = vmatprep.subr.bf16.mxu0 0
  %1741 = vmatpush1.bf16.msra.mxu0 %v1733
  %1742 = vmatprep.subr.bf16.mxu0 0
  %1743 = vmatpush1.bf16.msra.mxu0 %v1734
  %1744 = vmatprep.subr.bf16.mxu0 0
  %1745 = vmatpush1.bf16.msra.mxu0 0
  %1746 = vmatprep.subr.bf16.mxu0 0
  %1747 = vmatpush1.bf16.msra.mxu0 0
  %1748 = vmatprep.subr.bf16.mxu0 0
  %1749 = vmatpush1.bf16.msra.mxu0 0
  %1750 = vmatprep.subr.bf16.mxu0 0
  %1751 = vmatpush1.bf16.msra.mxu0 0
  %1752 = vmatprep.subr.bf16.mxu0 0
  %1753 = vmatpush1.bf16.msra.mxu0 0
  %1754 = vmatprep.subr.bf16.mxu0 0
  %1755 = vmatpush1.bf16.msra.mxu0 0
  %1756 = vmatprep.subr.bf16.mxu0 0
  %1757 = vmatpush1.bf16.msra.mxu0 0
  %1758 = vmatprep.subr.bf16.mxu0 0
  %1759 = vmatpush1.bf16.msra.mxu0 0
  %1760 = vmatprep.subr.bf16.mxu0 0
  %1761 = vmatpush1.bf16.msra.mxu0 0
  %1762 = vmatprep.subr.bf16.mxu0 0
  %1763 = vmatpush1.bf16.msra.mxu0 0
  %1764 = vmatprep.subr.bf16.mxu0 0
  %1765 = vmatpush1.bf16.msra.mxu0 0
  %1766 = vmatprep.subr.bf16.mxu0 0
  %1767 = vmatpush1.bf16.msra.mxu0 0
  %1768 = vmatprep.subr.bf16.mxu0 0
  %1769 = vmatpush1.bf16.msra.mxu0 0
  %1770 = vmatprep.subr.bf16.mxu0 0
  %1771 = vmatpush1.bf16.msra.mxu0 0
  %1772 = vmatprep.mubr.bf16.mxu0 0
  %1773 = vmatmul.mubr.bf16.gmra.mrb[0].mxu0 %v1738
  %v1774 = vpop.f32.mrb[0].mxu0
  %v1775 = vadd.f32 0.0, %v1774
  %v1776 = vpop.f32.mrb[0].mxu0
  %v1777 = vpop.f32.mrb[0].mxu0
  %v1778 = vpop.f32.mrb[0].mxu0
  %1779 = vdwg.mxu0
  %v1780 = vadd.f32 %v1718, %v1775
  %v1781 = vld [vmem:[#allocation3] sm:$0xff]
  %v1782 = vld [vmem:[#allocation8] sm:$0xff]
  %v1783 = vpack.c.bf16 %v1782, %v1782
  %v1784 = vld [vmem:[%s5] sm:$0xf]
  %v1785 = vld [vmem:[%s5 + $0x4] sm:$0xf]
  %v1786 = vld [vmem:[%s5 + $0x8] sm:$0xf]
  %v1787 = vld [vmem:[%s5 + $0xc] sm:$0xf]
  %v1792 = vunpack.c.l.b16 %v1784
  %v1793 = vunpack.c.l.b16 %v1785
  %v1794 = vunpack.c.l.b16 %v1786
  %v1795 = vunpack.c.l.b16 %v1787
  %v1796 = vpack.c.b16 %v1793, %v1792
  %v1797 = vpack.c.b16 %v1795, %v1794
  %v1801 = vsel %vm90, %v1783, 0
  %1803 = vmatprep.subr.bf16.mxu0 0
  %1804 = vmatpush1.bf16.msra.mxu0 %v1796
  %1805 = vmatprep.subr.bf16.mxu0 0
  %1806 = vmatpush1.bf16.msra.mxu0 %v1797
  %1807 = vmatprep.subr.bf16.mxu0 0
  %1808 = vmatpush1.bf16.msra.mxu0 0
  %1809 = vmatprep.subr.bf16.mxu0 0
  %1810 = vmatpush1.bf16.msra.mxu0 0
  %1811 = vmatprep.subr.bf16.mxu0 0
  %1812 = vmatpush1.bf16.msra.mxu0 0
  %1813 = vmatprep.subr.bf16.mxu0 0
  %1814 = vmatpush1.bf16.msra.mxu0 0
  %1815 = vmatprep.subr.bf16.mxu0 0
  %1816 = vmatpush1.bf16.msra.mxu0 0
  %1817 = vmatprep.subr.bf16.mxu0 0
  %1818 = vmatpush1.bf16.msra.mxu0 0
  %1819 = vmatprep.subr.bf16.mxu0 0
  %1820 = vmatpush1.bf16.msra.mxu0 0
  %1821 = vmatprep.subr.bf16.mxu0 0
  %1822 = vmatpush1.bf16.msra.mxu0 0
  %1823 = vmatprep.subr.bf16.mxu0 0
  %1824 = vmatpush1.bf16.msra.mxu0 0
  %1825 = vmatprep.subr.bf16.mxu0 0
  %1826 = vmatpush1.bf16.msra.mxu0 0
  %1827 = vmatprep.subr.bf16.mxu0 0
  %1828 = vmatpush1.bf16.msra.mxu0 0
  %1829 = vmatprep.subr.bf16.mxu0 0
  %1830 = vmatpush1.bf16.msra.mxu0 0
  %1831 = vmatprep.subr.bf16.mxu0 0
  %1832 = vmatpush1.bf16.msra.mxu0 0
  %1833 = vmatprep.subr.bf16.mxu0 0
  %1834 = vmatpush1.bf16.msra.mxu0 0
  %1835 = vmatprep.mubr.bf16.mxu0 0
  %1836 = vmatmul.mubr.bf16.gmra.mrb[0].mxu0 %v1801
  %v1837 = vpop.f32.mrb[0].mxu0
  %v1838 = vadd.f32 0.0, %v1837
  %v1839 = vpop.f32.mrb[0].mxu0
  %v1840 = vpop.f32.mrb[0].mxu0
  %v1841 = vpop.f32.mrb[0].mxu0
  %1842 = vdwg.mxu0
  %v1843 = vadd.f32 %v1781, %v1838
  %v1844 = vld [vmem:[#allocation7] sm:$0xff]
  %v1845 = vxor.u32 %v1780, 2147483648
  %v1846 = vmul.f32 %v1845, 1.442695
  %v1847 = vpow.pop %v1846
  %v1848 = vadd.f32 %v1847, 1.0
  %v1849 = vrcp.pop %v1848
  %v1850 = vmul.f32 1.0, %v1849
  %v1851 = vtanh.pop %v1780
  %1853 = vrot.lane.b32.xlu0 %v1844, 32
  %v1854 = vpop.permute.xlu0 %1853
  %v1856 = vmul.f32 %v1850, %v1854
  %1858 = vrot.lane.b32.xlu0 %v1851, 32
  %v1859 = vpop.permute.xlu0 %1858
  %v1861 = vmul.f32 %v1850, %v1859
  %1863 = vrot.lane.b32.xlu0 %v1861, 32
  %v1864 = vpop.permute.xlu0 %1863
  %v1866 = vadd.f32 %v1856, %v1864
  %v1867 = vtanh.pop %v1866
  %1869 = vrot.lane.b32.xlu0 %v1867, 32
  %v1870 = vpop.permute.xlu0 %1869
  %v1872 = vmul.f32 %v1850, %v1870
  %v1873 = vld [vmem:[#allocation9] sm:$0xff]
  %v1874 = vxor.u32 %v1843, 2147483648
  %v1875 = vmul.f32 %v1874, 1.442695
  %v1876 = vpow.pop %v1875
  %v1877 = vadd.f32 %v1876, 1.0
  %v1878 = vrcp.pop %v1877
  %v1879 = vmul.f32 1.0, %v1878
  %v1880 = vtanh.pop %v1843
  %1882 = vrot.lane.b32.xlu0 %v1873, 32
  %v1883 = vpop.permute.xlu0 %1882
  %v1885 = vmul.f32 %v1879, %v1883
  %1887 = vrot.lane.b32.xlu0 %v1880, 32
  %v1888 = vpop.permute.xlu0 %1887
  %v1890 = vmul.f32 %v1879, %v1888
  %1892 = vrot.lane.b32.xlu0 %v1890, 32
  %v1893 = vpop.permute.xlu0 %1892
  %v1895 = vadd.f32 %v1885, %v1893
  %v1896 = vtanh.pop %v1895
  %1898 = vrot.lane.b32.xlu0 %v1896, 32
  %v1899 = vpop.permute.xlu0 %1898
  %v1901 = vmul.f32 %v1879, %v1899
  %1903 = vrot.lane.b32.xlu0 %v1872, 64
  %v1904 = vpop.permute.xlu0 %1903
  %1906 = vst.msk [vmem:[#allocation6] sm:$0xff] %vm90, %v1904
  %1908 = vrot.lane.b32.xlu0 %v1866, 96
  %v1909 = vpop.permute.xlu0 %1908
  %1911 = vst.msk [vmem:[#allocation7] sm:$0xff] %vm90, %v1909
  %1913 = vrot.lane.b32.xlu0 %v1901, 64
  %v1914 = vpop.permute.xlu0 %1913
  %1916 = vst.msk [vmem:[#allocation8] sm:$0xff] %vm90, %v1914
  %1918 = vrot.lane.b32.xlu0 %v1895, 96
  %v1919 = vpop.permute.xlu0 %1918
  %1921 = vst.msk [vmem:[#allocation9] sm:$0xff] %vm90, %v1919
  %1922 = vst.msk [vmem:[#allocation4 + $0x38] sm:$0xff] %vm90, %v1904
  %1923 = vst.msk [vmem:[#allocation5] sm:$0xff] %vm90, %v1914
  %v1924 = vld [vmem:[#allocation4] sm:$0xff]
  %v1925 = vld [vmem:[#allocation4 + $0x8] sm:$0xff]
  %v1926 = vld [vmem:[#allocation4 + $0x10] sm:$0xff]
  %v1927 = vld [vmem:[#allocation4 + $0x18] sm:$0xff]
  %v1928 = vld [vmem:[#allocation4 + $0x20] sm:$0xff]
  %v1929 = vld [vmem:[#allocation4 + $0x28] sm:$0xff]
  %v1930 = vld [vmem:[#allocation4 + $0x30] sm:$0xff]
  %v1931 = vld [vmem:[#allocation4 + $0x38] sm:$0xff]
  %v1932 = vpack.c.bf16 %v1925, %v1924
  %v1933 = vpack.c.bf16 %v1927, %v1926
  %v1934 = vpack.c.bf16 %v1929, %v1928
  %v1935 = vpack.c.bf16 %v1931, %v1930
  %v1936 = vld [vmem:[%s7] sm:$0xf]
  %v1937 = vld [vmem:[%s7 + $0x4] sm:$0xf]
  %v1938 = vld [vmem:[%s7 + $0x8] sm:$0xf]
  %v1939 = vld [vmem:[%s7 + $0xc] sm:$0xf]
  %v1940 = vld [vmem:[#allocation5] sm:$0xff]
  %v1941 = vld [vmem:[#allocation5 + $0x8] sm:$0xff]
  %v1942 = vld [vmem:[#allocation5 + $0x10] sm:$0xff]
  %v1943 = vld [vmem:[#allocation5 + $0x18] sm:$0xff]
  %v1944 = vld [vmem:[#allocation5 + $0x20] sm:$0xff]
  %v1945 = vld [vmem:[#allocation5 + $0x28] sm:$0xff]
  %v1946 = vld [vmem:[#allocation5 + $0x30] sm:$0xff]
  %v1947 = vld [vmem:[#allocation5 + $0x38] sm:$0xff]
  %v1948 = vpack.c.bf16 %v1941, %v1940
  %v1949 = vpack.c.bf16 %v1943, %v1942
  %v1950 = vpack.c.bf16 %v1945, %v1944
  %v1951 = vpack.c.bf16 %v1947, %v1946
  %v1952 = vld [vmem:[%s8] sm:$0xf]
  %v1953 = vld [vmem:[%s8 + $0x4] sm:$0xf]
  %v1954 = vld [vmem:[%s8 + $0x8] sm:$0xf]
  %v1955 = vld [vmem:[%s8 + $0xc] sm:$0xf]
  %v1960 = vunpack.c.l.b16 %v1952
  %v1961 = vunpack.c.l.b16 %v1953
  %v1962 = vunpack.c.l.b16 %v1954
  %v1963 = vunpack.c.l.b16 %v1955
  %v1964 = vpack.c.b16 %v1961, %v1960
  %v1965 = vpack.c.b16 %v1963, %v1962
  %v1969 = vsel %vm90, %v1948, 0
  %v1972 = vsel %vm90, %v1949, 0
  %v1975 = vsel %vm90, %v1950, 0
  %v1978 = vsel %vm90, %v1951, 0
  %1980 = vmatprep.subr.bf16.mxu0 0
  %1981 = vmatpush1.bf16.msra.mxu0 %v1964
  %1982 = vmatprep.subr.bf16.mxu0 0
  %1983 = vmatpush1.bf16.msra.mxu0 %v1965
  %1984 = vmatprep.subr.bf16.mxu0 0
  %1985 = vmatpush1.bf16.msra.mxu0 0
  %1986 = vmatprep.subr.bf16.mxu0 0
  %1987 = vmatpush1.bf16.msra.mxu0 0
  %1988 = vmatprep.subr.bf16.mxu0 0
  %1989 = vmatpush1.bf16.msra.mxu0 0
  %1990 = vmatprep.subr.bf16.mxu0 0
  %1991 = vmatpush1.bf16.msra.mxu0 0
  %1992 = vmatprep.subr.bf16.mxu0 0
  %1993 = vmatpush1.bf16.msra.mxu0 0
  %1994 = vmatprep.subr.bf16.mxu0 0
  %1995 = vmatpush1.bf16.msra.mxu0 0
  %1996 = vmatprep.subr.bf16.mxu0 0
  %1997 = vmatpush1.bf16.msra.mxu0 0
  %1998 = vmatprep.subr.bf16.mxu0 0
  %1999 = vmatpush1.bf16.msra.mxu0 0
  %2000 = vmatprep.subr.bf16.mxu0 0
  %2001 = vmatpush1.bf16.msra.mxu0 0
  %2002 = vmatprep.subr.bf16.mxu0 0
  %2003 = vmatpush1.bf16.msra.mxu0 0
  %2004 = vmatprep.subr.bf16.mxu0 0
  %2005 = vmatpush1.bf16.msra.mxu0 0
  %2006 = vmatprep.subr.bf16.mxu0 0
  %2007 = vmatpush1.bf16.msra.mxu0 0
  %2008 = vmatprep.subr.bf16.mxu0 0
  %2009 = vmatpush1.bf16.msra.mxu0 0
  %2010 = vmatprep.subr.bf16.mxu0 0
  %2011 = vmatpush1.bf16.msra.mxu0 0
  %2012 = vmatprep.mubr.bf16.mxu0 0
  %2013 = vmatmul.mubr.bf16.gmra.mrb[0].mxu0 %v1969
  %v2014 = vpop.f32.mrb[0].mxu0
  %v2015 = vadd.f32 0.0, %v2014
  %v2016 = vpop.f32.mrb[0].mxu0
  %v2017 = vpop.f32.mrb[0].mxu0
  %v2018 = vadd.f32 0.0, %v2017
  %v2019 = vpop.f32.mrb[0].mxu0
  %2020 = vmatprep.mubr.bf16.mxu0 0
  %2021 = vmatmul.mubr.bf16.gmra.mrb[0].mxu0 %v1972
  %v2022 = vpop.f32.mrb[0].mxu0
  %v2023 = vadd.f32 0.0, %v2022
  %v2024 = vpop.f32.mrb[0].mxu0
  %v2025 = vpop.f32.mrb[0].mxu0
  %v2026 = vadd.f32 0.0, %v2025
  %v2027 = vpop.f32.mrb[0].mxu0
  %2028 = vmatprep.mubr.bf16.mxu0 0
  %2029 = vmatmul.mubr.bf16.gmra.mrb[0].mxu0 %v1975
  %v2030 = vpop.f32.mrb[0].mxu0
  %v2031 = vadd.f32 0.0, %v2030
  %v2032 = vpop.f32.mrb[0].mxu0
  %v2033 = vpop.f32.mrb[0].mxu0
  %v2034 = vadd.f32 0.0, %v2033
  %v2035 = vpop.f32.mrb[0].mxu0
  %2036 = vmatprep.mubr.bf16.mxu0 0
  %2037 = vmatmul.mubr.bf16.gmra.mrb[0].mxu0 %v1978
  %v2038 = vpop.f32.mrb[0].mxu0
  %v2039 = vadd.f32 0.0, %v2038
  %v2040 = vpop.f32.mrb[0].mxu0
  %v2041 = vpop.f32.mrb[0].mxu0
  %v2042 = vadd.f32 0.0, %v2041
  %v2043 = vpop.f32.mrb[0].mxu0
  %2044 = vdwg.mxu0
  %v2049 = vunpack.c.l.b16 %v1936
  %v2050 = vunpack.c.l.b16 %v1937
  %v2051 = vunpack.c.l.b16 %v1938
  %v2052 = vunpack.c.l.b16 %v1939
  %v2053 = vpack.c.b16 %v2050, %v2049
  %v2054 = vpack.c.b16 %v2052, %v2051
  %v2058 = vsel %vm90, %v1932, 0
  %v2061 = vsel %vm90, %v1933, 0
  %v2064 = vsel %vm90, %v1934, 0
  %v2067 = vsel %vm90, %v1935, 0
  %2069 = vmatprep.subr.bf16.mxu0 0
  %2070 = vmatpush1.bf16.msra.mxu0 %v2053
  %2071 = vmatprep.subr.bf16.mxu0 0
  %2072 = vmatpush1.bf16.msra.mxu0 %v2054
  %2073 = vmatprep.subr.bf16.mxu0 0
  %2074 = vmatpush1.bf16.msra.mxu0 0
  %2075 = vmatprep.subr.bf16.mxu0 0
  %2076 = vmatpush1.bf16.msra.mxu0 0
  %2077 = vmatprep.subr.bf16.mxu0 0
  %2078 = vmatpush1.bf16.msra.mxu0 0
  %2079 = vmatprep.subr.bf16.mxu0 0
  %2080 = vmatpush1.bf16.msra.mxu0 0
  %2081 = vmatprep.subr.bf16.mxu0 0
  %2082 = vmatpush1.bf16.msra.mxu0 0
  %2083 = vmatprep.subr.bf16.mxu0 0
  %2084 = vmatpush1.bf16.msra.mxu0 0
  %2085 = vmatprep.subr.bf16.mxu0 0
  %2086 = vmatpush1.bf16.msra.mxu0 0
  %2087 = vmatprep.subr.bf16.mxu0 0
  %2088 = vmatpush1.bf16.msra.mxu0 0
  %2089 = vmatprep.subr.bf16.mxu0 0
  %2090 = vmatpush1.bf16.msra.mxu0 0
  %2091 = vmatprep.subr.bf16.mxu0 0
  %2092 = vmatpush1.bf16.msra.mxu0 0
  %2093 = vmatprep.subr.bf16.mxu0 0
  %2094 = vmatpush1.bf16.msra.mxu0 0
  %2095 = vmatprep.subr.bf16.mxu0 0
  %2096 = vmatpush1.bf16.msra.mxu0 0
  %2097 = vmatprep.subr.bf16.mxu0 0
  %2098 = vmatpush1.bf16.msra.mxu0 0
  %2099 = vmatprep.subr.bf16.mxu0 0
  %2100 = vmatpush1.bf16.msra.mxu0 0
  %2101 = vmatprep.mubr.bf16.mxu0 0
  %2102 = vmatmul.mubr.bf16.gmra.mrb[0].mxu0 %v2058
  %v2103 = vpop.f32.mrb[0].mxu0
  %v2104 = vadd.f32 %v2015, %v2103
  %v2105 = vpop.f32.mrb[0].mxu0
  %v2106 = vpop.f32.mrb[0].mxu0
  %v2107 = vadd.f32 %v2018, %v2106
  %v2108 = vpop.f32.mrb[0].mxu0
  %2109 = vmatprep.mubr.bf16.mxu0 0
  %2110 = vmatmul.mubr.bf16.gmra.mrb[0].mxu0 %v2061
  %v2111 = vpop.f32.mrb[0].mxu0
  %v2112 = vadd.f32 %v2023, %v2111
  %v2113 = vpop.f32.mrb[0].mxu0
  %v2114 = vpop.f32.mrb[0].mxu0
  %v2115 = vadd.f32 %v2026, %v2114
  %v2116 = vpop.f32.mrb[0].mxu0
  %2117 = vmatprep.mubr.bf16.mxu0 0
  %2118 = vmatmul.mubr.bf16.gmra.mrb[0].mxu0 %v2064
  %v2119 = vpop.f32.mrb[0].mxu0
  %v2120 = vadd.f32 %v2031, %v2119
  %v2121 = vpop.f32.mrb[0].mxu0
  %v2122 = vpop.f32.mrb[0].mxu0
  %v2123 = vadd.f32 %v2034, %v2122
  %v2124 = vpop.f32.mrb[0].mxu0
  %2125 = vmatprep.mubr.bf16.mxu0 0
  %2126 = vmatmul.mubr.bf16.gmra.mrb[0].mxu0 %v2067
  %v2127 = vpop.f32.mrb[0].mxu0
  %v2128 = vadd.f32 %v2039, %v2127
  %v2129 = vpop.f32.mrb[0].mxu0
  %v2130 = vpop.f32.mrb[0].mxu0
  %v2131 = vadd.f32 %v2042, %v2130
  %v2132 = vpop.f32.mrb[0].mxu0
  %2133 = vdwg.mxu0
  %v2134 = vld [vmem:[%s10] sm:$0x1]
  %v2136 = vlaneseq
  %v2137 = vshrl.u32 %v2136, 7
  %v2138 = vsub.s32 0, %v2137
  %v2139 = vrot.slane %v2134, %v2138
  %v2141 = vadd.f32 %v2104, %v2139
  %v2142 = vadd.f32 %v2107, %v2139
  %v2143 = vadd.f32 %v2112, %v2139
  %v2144 = vadd.f32 %v2115, %v2139
  %v2145 = vadd.f32 %v2120, %v2139
  %v2146 = vadd.f32 %v2123, %v2139
  %v2147 = vadd.f32 %v2128, %v2139
  %v2148 = vadd.f32 %v2131, %v2139
  %2149 = vst [vmem:[#allocation2] sm:$0xff] %v2141
  %2150 = vst [vmem:[#allocation2 + $0x8] sm:$0xff] %v2142
  %2151 = vst [vmem:[#allocation2 + $0x10] sm:$0xff] %v2143
  %2152 = vst [vmem:[#allocation2 + $0x18] sm:$0xff] %v2144
  %2153 = vst [vmem:[#allocation2 + $0x20] sm:$0xff] %v2145
  %2154 = vst [vmem:[#allocation2 + $0x28] sm:$0xff] %v2146
  %2155 = vst [vmem:[#allocation2 + $0x30] sm:$0xff] %v2147
  %2156 = vst [vmem:[#allocation2 + $0x38] sm:$0xff] %v2148
  %2157 = vst.msk [vmem:[#allocation6] sm:$0xff] %vm90, 0.0
  %2158 = vst.msk [vmem:[#allocation7] sm:$0xff] %vm90, 0.0
  %v2159 = vld [vmem:[#allocation2 + $0x38] sm:$0xff]
  %v2160 = vld [vmem:[#allocation6] sm:$0xff]
  %v2161 = vpack.c.bf16 %v2160, %v2160
  %v2162 = vld [vmem:[%s9] sm:$0xf]
  %v2163 = vld [vmem:[%s9 + $0x4] sm:$0xf]
  %v2164 = vld [vmem:[%s9 + $0x8] sm:$0xf]
  %v2165 = vld [vmem:[%s9 + $0xc] sm:$0xf]
  %v2170 = vunpack.c.l.b16 %v2162
  %v2171 = vunpack.c.l.b16 %v2163
  %v2172 = vunpack.c.l.b16 %v2164
  %v2173 = vunpack.c.l.b16 %v2165
  %v2174 = vpack.c.b16 %v2171, %v2170
  %v2175 = vpack.c.b16 %v2173, %v2172
  %v2179 = vsel %vm90, %v2161, 0
  %2181 = vmatprep.subr.bf16.mxu0 0
  %2182 = vmatpush1.bf16.msra.mxu0 %v2174
  %2183 = vmatprep.subr.bf16.mxu0 0
  %2184 = vmatpush1.bf16.msra.mxu0 %v2175
  %2185 = vmatprep.subr.bf16.mxu0 0
  %2186 = vmatpush1.bf16.msra.mxu0 0
  %2187 = vmatprep.subr.bf16.mxu0 0
  %2188 = vmatpush1.bf16.msra.mxu0 0
  %2189 = vmatprep.subr.bf16.mxu0 0
  %2190 = vmatpush1.bf16.msra.mxu0 0
  %2191 = vmatprep.subr.bf16.mxu0 0
  %2192 = vmatpush1.bf16.msra.mxu0 0
  %2193 = vmatprep.subr.bf16.mxu0 0
  %2194 = vmatpush1.bf16.msra.mxu0 0
  %2195 = vmatprep.subr.bf16.mxu0 0
  %2196 = vmatpush1.bf16.msra.mxu0 0
  %2197 = vmatprep.subr.bf16.mxu0 0
  %2198 = vmatpush1.bf16.msra.mxu0 0
  %2199 = vmatprep.subr.bf16.mxu0 0
  %2200 = vmatpush1.bf16.msra.mxu0 0
  %2201 = vmatprep.subr.bf16.mxu0 0
  %2202 = vmatpush1.bf16.msra.mxu0 0
  %2203 = vmatprep.subr.bf16.mxu0 0
  %2204 = vmatpush1.bf16.msra.mxu0 0
  %2205 = vmatprep.subr.bf16.mxu0 0
  %2206 = vmatpush1.bf16.msra.mxu0 0
  %2207 = vmatprep.subr.bf16.mxu0 0
  %2208 = vmatpush1.bf16.msra.mxu0 0
  %2209 = vmatprep.subr.bf16.mxu0 0
  %2210 = vmatpush1.bf16.msra.mxu0 0
  %2211 = vmatprep.subr.bf16.mxu0 0
  %2212 = vmatpush1.bf16.msra.mxu0 0
  %2213 = vmatprep.mubr.bf16.mxu0 0
  %2214 = vmatmul.mubr.bf16.gmra.mrb[0].mxu0 %v2179
  %v2215 = vpop.f32.mrb[0].mxu0
  %v2216 = vadd.f32 0.0, %v2215
  %v2217 = vpop.f32.mrb[0].mxu0
  %v2218 = vpop.f32.mrb[0].mxu0
  %v2219 = vpop.f32.mrb[0].mxu0
  %2220 = vdwg.mxu0
  %v2221 = vadd.f32 %v2159, %v2216
  %v2222 = vld [vmem:[#allocation7] sm:$0xff]
  %v2223 = vxor.u32 %v2221, 2147483648
  %v2224 = vmul.f32 %v2223, 1.442695
  %v2225 = vpow.pop %v2224
  %v2226 = vadd.f32 %v2225, 1.0
  %v2227 = vrcp.pop %v2226
  %v2228 = vmul.f32 1.0, %v2227
  %v2229 = vtanh.pop %v2221
  %2231 = vrot.lane.b32.xlu0 %v2222, 32
  %v2232 = vpop.permute.xlu0 %2231
  %v2234 = vmul.f32 %v2228, %v2232
  %2236 = vrot.lane.b32.xlu0 %v2229, 32
  %v2237 = vpop.permute.xlu0 %2236
  %v2239 = vmul.f32 %v2228, %v2237
  %2241 = vrot.lane.b32.xlu0 %v2239, 32
  %v2242 = vpop.permute.xlu0 %2241
  %v2244 = vadd.f32 %v2234, %v2242
  %v2245 = vtanh.pop %v2244
  %2247 = vrot.lane.b32.xlu0 %v2245, 32
  %v2248 = vpop.permute.xlu0 %2247
  %v2250 = vmul.f32 %v2228, %v2248
  %2252 = vrot.lane.b32.xlu0 %v2250, 64
  %v2253 = vpop.permute.xlu0 %2252
  %2255 = vst.msk [vmem:[#allocation6] sm:$0xff] %vm90, %v2253
  %2257 = vrot.lane.b32.xlu0 %v2244, 96
  %v2258 = vpop.permute.xlu0 %2257
  %2260 = vst.msk [vmem:[#allocation7] sm:$0xff] %vm90, %v2258
  %v2261 = vld [vmem:[#allocation2 + $0x30] sm:$0xff]
  %v2262 = vld [vmem:[#allocation6] sm:$0xff]
  %v2263 = vpack.c.bf16 %v2262, %v2262
  %v2264 = vld [vmem:[%s9] sm:$0xf]
  %v2265 = vld [vmem:[%s9 + $0x4] sm:$0xf]
  %v2266 = vld [vmem:[%s9 + $0x8] sm:$0xf]
  %v2267 = vld [vmem:[%s9 + $0xc] sm:$0xf]
  %v2272 = vunpack.c.l.b16 %v2264
  %v2273 = vunpack.c.l.b16 %v2265
  %v2274 = vunpack.c.l.b16 %v2266
  %v2275 = vunpack.c.l.b16 %v2267
  %v2276 = vpack.c.b16 %v2273, %v2272
  %v2277 = vpack.c.b16 %v2275, %v2274
  %v2281 = vsel %vm90, %v2263, 0
  %2283 = vmatprep.subr.bf16.mxu0 0
  %2284 = vmatpush1.bf16.msra.mxu0 %v2276
  %2285 = vmatprep.subr.bf16.mxu0 0
  %2286 = vmatpush1.bf16.msra.mxu0 %v2277
  %2287 = vmatprep.subr.bf16.mxu0 0
  %2288 = vmatpush1.bf16.msra.mxu0 0
  %2289 = vmatprep.subr.bf16.mxu0 0
  %2290 = vmatpush1.bf16.msra.mxu0 0
  %2291 = vmatprep.subr.bf16.mxu0 0
  %2292 = vmatpush1.bf16.msra.mxu0 0
  %2293 = vmatprep.subr.bf16.mxu0 0
  %2294 = vmatpush1.bf16.msra.mxu0 0
  %2295 = vmatprep.subr.bf16.mxu0 0
  %2296 = vmatpush1.bf16.msra.mxu0 0
  %2297 = vmatprep.subr.bf16.mxu0 0
  %2298 = vmatpush1.bf16.msra.mxu0 0
  %2299 = vmatprep.subr.bf16.mxu0 0
  %2300 = vmatpush1.bf16.msra.mxu0 0
  %2301 = vmatprep.subr.bf16.mxu0 0
  %2302 = vmatpush1.bf16.msra.mxu0 0
  %2303 = vmatprep.subr.bf16.mxu0 0
  %2304 = vmatpush1.bf16.msra.mxu0 0
  %2305 = vmatprep.subr.bf16.mxu0 0
  %2306 = vmatpush1.bf16.msra.mxu0 0
  %2307 = vmatprep.subr.bf16.mxu0 0
  %2308 = vmatpush1.bf16.msra.mxu0 0
  %2309 = vmatprep.subr.bf16.mxu0 0
  %2310 = vmatpush1.bf16.msra.mxu0 0
  %2311 = vmatprep.subr.bf16.mxu0 0
  %2312 = vmatpush1.bf16.msra.mxu0 0
  %2313 = vmatprep.subr.bf16.mxu0 0
  %2314 = vmatpush1.bf16.msra.mxu0 0
  %2315 = vmatprep.mubr.bf16.mxu0 0
  %2316 = vmatmul.mubr.bf16.gmra.mrb[0].mxu0 %v2281
  %v2317 = vpop.f32.mrb[0].mxu0
  %v2318 = vadd.f32 0.0, %v2317
  %v2319 = vpop.f32.mrb[0].mxu0
  %v2320 = vpop.f32.mrb[0].mxu0
  %v2321 = vpop.f32.mrb[0].mxu0
  %2322 = vdwg.mxu0
  %v2323 = vadd.f32 %v2261, %v2318
  %v2324 = vld [vmem:[#allocation7] sm:$0xff]
  %v2325 = vxor.u32 %v2323, 2147483648
  %v2326 = vmul.f32 %v2325, 1.442695
  %v2327 = vpow.pop %v2326
  %v2328 = vadd.f32 %v2327, 1.0
  %v2329 = vrcp.pop %v2328
  %v2330 = vmul.f32 1.0, %v2329
  %v2331 = vtanh.pop %v2323
  %2333 = vrot.lane.b32.xlu0 %v2324, 32
  %v2334 = vpop.permute.xlu0 %2333
  %v2336 = vmul.f32 %v2330, %v2334
  %2338 = vrot.lane.b32.xlu0 %v2331, 32
  %v2339 = vpop.permute.xlu0 %2338
  %v2341 = vmul.f32 %v2330, %v2339
  %2343 = vrot.lane.b32.xlu0 %v2341, 32
  %v2344 = vpop.permute.xlu0 %2343
  %v2346 = vadd.f32 %v2336, %v2344
  %v2347 = vtanh.pop %v2346
  %2349 = vrot.lane.b32.xlu0 %v2347, 32
  %v2350 = vpop.permute.xlu0 %2349
  %v2352 = vmul.f32 %v2330, %v2350
  %2354 = vrot.lane.b32.xlu0 %v2352, 64
  %v2355 = vpop.permute.xlu0 %2354
  %2357 = vst.msk [vmem:[#allocation6] sm:$0xff] %vm90, %v2355
  %2359 = vrot.lane.b32.xlu0 %v2346, 96
  %v2360 = vpop.permute.xlu0 %2359
  %2362 = vst.msk [vmem:[#allocation7] sm:$0xff] %vm90, %v2360
  %v2363 = vld [vmem:[#allocation2 + $0x28] sm:$0xff]
  %v2364 = vld [vmem:[#allocation6] sm:$0xff]
  %v2365 = vpack.c.bf16 %v2364, %v2364
  %v2366 = vld [vmem:[%s9] sm:$0xf]
  %v2367 = vld [vmem:[%s9 + $0x4] sm:$0xf]
  %v2368 = vld [vmem:[%s9 + $0x8] sm:$0xf]
  %v2369 = vld [vmem:[%s9 + $0xc] sm:$0xf]
  %v2374 = vunpack.c.l.b16 %v2366
  %v2375 = vunpack.c.l.b16 %v2367
  %v2376 = vunpack.c.l.b16 %v2368
  %v2377 = vunpack.c.l.b16 %v2369
  %v2378 = vpack.c.b16 %v2375, %v2374
  %v2379 = vpack.c.b16 %v2377, %v2376
  %v2383 = vsel %vm90, %v2365, 0
  %2385 = vmatprep.subr.bf16.mxu0 0
  %2386 = vmatpush1.bf16.msra.mxu0 %v2378
  %2387 = vmatprep.subr.bf16.mxu0 0
  %2388 = vmatpush1.bf16.msra.mxu0 %v2379
  %2389 = vmatprep.subr.bf16.mxu0 0
  %2390 = vmatpush1.bf16.msra.mxu0 0
  %2391 = vmatprep.subr.bf16.mxu0 0
  %2392 = vmatpush1.bf16.msra.mxu0 0
  %2393 = vmatprep.subr.bf16.mxu0 0
  %2394 = vmatpush1.bf16.msra.mxu0 0
  %2395 = vmatprep.subr.bf16.mxu0 0
  %2396 = vmatpush1.bf16.msra.mxu0 0
  %2397 = vmatprep.subr.bf16.mxu0 0
  %2398 = vmatpush1.bf16.msra.mxu0 0
  %2399 = vmatprep.subr.bf16.mxu0 0
  %2400 = vmatpush1.bf16.msra.mxu0 0
  %2401 = vmatprep.subr.bf16.mxu0 0
  %2402 = vmatpush1.bf16.msra.mxu0 0
  %2403 = vmatprep.subr.bf16.mxu0 0
  %2404 = vmatpush1.bf16.msra.mxu0 0
  %2405 = vmatprep.subr.bf16.mxu0 0
  %2406 = vmatpush1.bf16.msra.mxu0 0
  %2407 = vmatprep.subr.bf16.mxu0 0
  %2408 = vmatpush1.bf16.msra.mxu0 0
  %2409 = vmatprep.subr.bf16.mxu0 0
  %2410 = vmatpush1.bf16.msra.mxu0 0
  %2411 = vmatprep.subr.bf16.mxu0 0
  %2412 = vmatpush1.bf16.msra.mxu0 0
  %2413 = vmatprep.subr.bf16.mxu0 0
  %2414 = vmatpush1.bf16.msra.mxu0 0
  %2415 = vmatprep.subr.bf16.mxu0 0
  %2416 = vmatpush1.bf16.msra.mxu0 0
  %2417 = vmatprep.mubr.bf16.mxu0 0
  %2418 = vmatmul.mubr.bf16.gmra.mrb[0].mxu0 %v2383
  %v2419 = vpop.f32.mrb[0].mxu0
  %v2420 = vadd.f32 0.0, %v2419
  %v2421 = vpop.f32.mrb[0].mxu0
  %v2422 = vpop.f32.mrb[0].mxu0
  %v2423 = vpop.f32.mrb[0].mxu0
  %2424 = vdwg.mxu0
  %v2425 = vadd.f32 %v2363, %v2420
  %v2426 = vld [vmem:[#allocation7] sm:$0xff]
  %v2427 = vxor.u32 %v2425, 2147483648
  %v2428 = vmul.f32 %v2427, 1.442695
  %v2429 = vpow.pop %v2428
  %v2430 = vadd.f32 %v2429, 1.0
  %v2431 = vrcp.pop %v2430
  %v2432 = vmul.f32 1.0, %v2431
  %v2433 = vtanh.pop %v2425
  %2435 = vrot.lane.b32.xlu0 %v2426, 32
  %v2436 = vpop.permute.xlu0 %2435
  %v2438 = vmul.f32 %v2432, %v2436
  %2440 = vrot.lane.b32.xlu0 %v2433, 32
  %v2441 = vpop.permute.xlu0 %2440
  %v2443 = vmul.f32 %v2432, %v2441
  %2445 = vrot.lane.b32.xlu0 %v2443, 32
  %v2446 = vpop.permute.xlu0 %2445
  %v2448 = vadd.f32 %v2438, %v2446
  %v2449 = vtanh.pop %v2448
  %2451 = vrot.lane.b32.xlu0 %v2449, 32
  %v2452 = vpop.permute.xlu0 %2451
  %v2454 = vmul.f32 %v2432, %v2452
  %2456 = vrot.lane.b32.xlu0 %v2454, 64
  %v2457 = vpop.permute.xlu0 %2456
  %2459 = vst.msk [vmem:[#allocation6] sm:$0xff] %vm90, %v2457
  %2461 = vrot.lane.b32.xlu0 %v2448, 96
  %v2462 = vpop.permute.xlu0 %2461
  %2464 = vst.msk [vmem:[#allocation7] sm:$0xff] %vm90, %v2462
  %v2465 = vld [vmem:[#allocation2 + $0x20] sm:$0xff]
  %v2466 = vld [vmem:[#allocation6] sm:$0xff]
  %v2467 = vpack.c.bf16 %v2466, %v2466
  %v2468 = vld [vmem:[%s9] sm:$0xf]
  %v2469 = vld [vmem:[%s9 + $0x4] sm:$0xf]
  %v2470 = vld [vmem:[%s9 + $0x8] sm:$0xf]
  %v2471 = vld [vmem:[%s9 + $0xc] sm:$0xf]
  %v2476 = vunpack.c.l.b16 %v2468
  %v2477 = vunpack.c.l.b16 %v2469
  %v2478 = vunpack.c.l.b16 %v2470
  %v2479 = vunpack.c.l.b16 %v2471
  %v2480 = vpack.c.b16 %v2477, %v2476
  %v2481 = vpack.c.b16 %v2479, %v2478
  %v2485 = vsel %vm90, %v2467, 0
  %2487 = vmatprep.subr.bf16.mxu0 0
  %2488 = vmatpush1.bf16.msra.mxu0 %v2480
  %2489 = vmatprep.subr.bf16.mxu0 0
  %2490 = vmatpush1.bf16.msra.mxu0 %v2481
  %2491 = vmatprep.subr.bf16.mxu0 0
  %2492 = vmatpush1.bf16.msra.mxu0 0
  %2493 = vmatprep.subr.bf16.mxu0 0
  %2494 = vmatpush1.bf16.msra.mxu0 0
  %2495 = vmatprep.subr.bf16.mxu0 0
  %2496 = vmatpush1.bf16.msra.mxu0 0
  %2497 = vmatprep.subr.bf16.mxu0 0
  %2498 = vmatpush1.bf16.msra.mxu0 0
  %2499 = vmatprep.subr.bf16.mxu0 0
  %2500 = vmatpush1.bf16.msra.mxu0 0
  %2501 = vmatprep.subr.bf16.mxu0 0
  %2502 = vmatpush1.bf16.msra.mxu0 0
  %2503 = vmatprep.subr.bf16.mxu0 0
  %2504 = vmatpush1.bf16.msra.mxu0 0
  %2505 = vmatprep.subr.bf16.mxu0 0
  %2506 = vmatpush1.bf16.msra.mxu0 0
  %2507 = vmatprep.subr.bf16.mxu0 0
  %2508 = vmatpush1.bf16.msra.mxu0 0
  %2509 = vmatprep.subr.bf16.mxu0 0
  %2510 = vmatpush1.bf16.msra.mxu0 0
  %2511 = vmatprep.subr.bf16.mxu0 0
  %2512 = vmatpush1.bf16.msra.mxu0 0
  %2513 = vmatprep.subr.bf16.mxu0 0
  %2514 = vmatpush1.bf16.msra.mxu0 0
  %2515 = vmatprep.subr.bf16.mxu0 0
  %2516 = vmatpush1.bf16.msra.mxu0 0
  %2517 = vmatprep.subr.bf16.mxu0 0
  %2518 = vmatpush1.bf16.msra.mxu0 0
  %2519 = vmatprep.mubr.bf16.mxu0 0
  %2520 = vmatmul.mubr.bf16.gmra.mrb[0].mxu0 %v2485
  %v2521 = vpop.f32.mrb[0].mxu0
  %v2522 = vadd.f32 0.0, %v2521
  %v2523 = vpop.f32.mrb[0].mxu0
  %v2524 = vpop.f32.mrb[0].mxu0
  %v2525 = vpop.f32.mrb[0].mxu0
  %2526 = vdwg.mxu0
  %v2527 = vadd.f32 %v2465, %v2522
  %v2528 = vld [vmem:[#allocation7] sm:$0xff]
  %v2529 = vxor.u32 %v2527, 2147483648
  %v2530 = vmul.f32 %v2529, 1.442695
  %v2531 = vpow.pop %v2530
  %v2532 = vadd.f32 %v2531, 1.0
  %v2533 = vrcp.pop %v2532
  %v2534 = vmul.f32 1.0, %v2533
  %v2535 = vtanh.pop %v2527
  %2537 = vrot.lane.b32.xlu0 %v2528, 32
  %v2538 = vpop.permute.xlu0 %2537
  %v2540 = vmul.f32 %v2534, %v2538
  %2542 = vrot.lane.b32.xlu0 %v2535, 32
  %v2543 = vpop.permute.xlu0 %2542
  %v2545 = vmul.f32 %v2534, %v2543
  %2547 = vrot.lane.b32.xlu0 %v2545, 32
  %v2548 = vpop.permute.xlu0 %2547
  %v2550 = vadd.f32 %v2540, %v2548
  %v2551 = vtanh.pop %v2550
  %2553 = vrot.lane.b32.xlu0 %v2551, 32
  %v2554 = vpop.permute.xlu0 %2553
  %v2556 = vmul.f32 %v2534, %v2554
  %2558 = vrot.lane.b32.xlu0 %v2556, 64
  %v2559 = vpop.permute.xlu0 %2558
  %2561 = vst.msk [vmem:[#allocation6] sm:$0xff] %vm90, %v2559
  %2563 = vrot.lane.b32.xlu0 %v2550, 96
  %v2564 = vpop.permute.xlu0 %2563
  %2566 = vst.msk [vmem:[#allocation7] sm:$0xff] %vm90, %v2564
  %v2567 = vld [vmem:[#allocation2 + $0x18] sm:$0xff]
  %v2568 = vld [vmem:[#allocation6] sm:$0xff]
  %v2569 = vpack.c.bf16 %v2568, %v2568
  %v2570 = vld [vmem:[%s9] sm:$0xf]
  %v2571 = vld [vmem:[%s9 + $0x4] sm:$0xf]
  %v2572 = vld [vmem:[%s9 + $0x8] sm:$0xf]
  %v2573 = vld [vmem:[%s9 + $0xc] sm:$0xf]
  %v2578 = vunpack.c.l.b16 %v2570
  %v2579 = vunpack.c.l.b16 %v2571
  %v2580 = vunpack.c.l.b16 %v2572
  %v2581 = vunpack.c.l.b16 %v2573
  %v2582 = vpack.c.b16 %v2579, %v2578
  %v2583 = vpack.c.b16 %v2581, %v2580
  %v2587 = vsel %vm90, %v2569, 0
  %2589 = vmatprep.subr.bf16.mxu0 0
  %2590 = vmatpush1.bf16.msra.mxu0 %v2582
  %2591 = vmatprep.subr.bf16.mxu0 0
  %2592 = vmatpush1.bf16.msra.mxu0 %v2583
  %2593 = vmatprep.subr.bf16.mxu0 0
  %2594 = vmatpush1.bf16.msra.mxu0 0
  %2595 = vmatprep.subr.bf16.mxu0 0
  %2596 = vmatpush1.bf16.msra.mxu0 0
  %2597 = vmatprep.subr.bf16.mxu0 0
  %2598 = vmatpush1.bf16.msra.mxu0 0
  %2599 = vmatprep.subr.bf16.mxu0 0
  %2600 = vmatpush1.bf16.msra.mxu0 0
  %2601 = vmatprep.subr.bf16.mxu0 0
  %2602 = vmatpush1.bf16.msra.mxu0 0
  %2603 = vmatprep.subr.bf16.mxu0 0
  %2604 = vmatpush1.bf16.msra.mxu0 0
  %2605 = vmatprep.subr.bf16.mxu0 0
  %2606 = vmatpush1.bf16.msra.mxu0 0
  %2607 = vmatprep.subr.bf16.mxu0 0
  %2608 = vmatpush1.bf16.msra.mxu0 0
  %2609 = vmatprep.subr.bf16.mxu0 0
  %2610 = vmatpush1.bf16.msra.mxu0 0
  %2611 = vmatprep.subr.bf16.mxu0 0
  %2612 = vmatpush1.bf16.msra.mxu0 0
  %2613 = vmatprep.subr.bf16.mxu0 0
  %2614 = vmatpush1.bf16.msra.mxu0 0
  %2615 = vmatprep.subr.bf16.mxu0 0
  %2616 = vmatpush1.bf16.msra.mxu0 0
  %2617 = vmatprep.subr.bf16.mxu0 0
  %2618 = vmatpush1.bf16.msra.mxu0 0
  %2619 = vmatprep.subr.bf16.mxu0 0
  %2620 = vmatpush1.bf16.msra.mxu0 0
  %2621 = vmatprep.mubr.bf16.mxu0 0
  %2622 = vmatmul.mubr.bf16.gmra.mrb[0].mxu0 %v2587
  %v2623 = vpop.f32.mrb[0].mxu0
  %v2624 = vadd.f32 0.0, %v2623
  %v2625 = vpop.f32.mrb[0].mxu0
  %v2626 = vpop.f32.mrb[0].mxu0
  %v2627 = vpop.f32.mrb[0].mxu0
  %2628 = vdwg.mxu0
  %v2629 = vadd.f32 %v2567, %v2624
  %v2630 = vld [vmem:[#allocation7] sm:$0xff]
  %v2631 = vxor.u32 %v2629, 2147483648
  %v2632 = vmul.f32 %v2631, 1.442695
  %v2633 = vpow.pop %v2632
  %v2634 = vadd.f32 %v2633, 1.0
  %v2635 = vrcp.pop %v2634
  %v2636 = vmul.f32 1.0, %v2635
  %v2637 = vtanh.pop %v2629
  %2639 = vrot.lane.b32.xlu0 %v2630, 32
  %v2640 = vpop.permute.xlu0 %2639
  %v2642 = vmul.f32 %v2636, %v2640
  %2644 = vrot.lane.b32.xlu0 %v2637, 32
  %v2645 = vpop.permute.xlu0 %2644
  %v2647 = vmul.f32 %v2636, %v2645
  %2649 = vrot.lane.b32.xlu0 %v2647, 32
  %v2650 = vpop.permute.xlu0 %2649
  %v2652 = vadd.f32 %v2642, %v2650
  %v2653 = vtanh.pop %v2652
  %2655 = vrot.lane.b32.xlu0 %v2653, 32
  %v2656 = vpop.permute.xlu0 %2655
  %v2658 = vmul.f32 %v2636, %v2656
  %2660 = vrot.lane.b32.xlu0 %v2658, 64
  %v2661 = vpop.permute.xlu0 %2660
  %2663 = vst.msk [vmem:[#allocation6] sm:$0xff] %vm90, %v2661
  %2665 = vrot.lane.b32.xlu0 %v2652, 96
  %v2666 = vpop.permute.xlu0 %2665
  %2668 = vst.msk [vmem:[#allocation7] sm:$0xff] %vm90, %v2666
  %v2669 = vld [vmem:[#allocation2 + $0x10] sm:$0xff]
  %v2670 = vld [vmem:[#allocation6] sm:$0xff]
  %v2671 = vpack.c.bf16 %v2670, %v2670
  %v2672 = vld [vmem:[%s9] sm:$0xf]
  %v2673 = vld [vmem:[%s9 + $0x4] sm:$0xf]
  %v2674 = vld [vmem:[%s9 + $0x8] sm:$0xf]
  %v2675 = vld [vmem:[%s9 + $0xc] sm:$0xf]
  %v2680 = vunpack.c.l.b16 %v2672
  %v2681 = vunpack.c.l.b16 %v2673
  %v2682 = vunpack.c.l.b16 %v2674
  %v2683 = vunpack.c.l.b16 %v2675
  %v2684 = vpack.c.b16 %v2681, %v2680
  %v2685 = vpack.c.b16 %v2683, %v2682
  %v2689 = vsel %vm90, %v2671, 0
  %2691 = vmatprep.subr.bf16.mxu0 0
  %2692 = vmatpush1.bf16.msra.mxu0 %v2684
  %2693 = vmatprep.subr.bf16.mxu0 0
  %2694 = vmatpush1.bf16.msra.mxu0 %v2685
  %2695 = vmatprep.subr.bf16.mxu0 0
  %2696 = vmatpush1.bf16.msra.mxu0 0
  %2697 = vmatprep.subr.bf16.mxu0 0
  %2698 = vmatpush1.bf16.msra.mxu0 0
  %2699 = vmatprep.subr.bf16.mxu0 0
  %2700 = vmatpush1.bf16.msra.mxu0 0
  %2701 = vmatprep.subr.bf16.mxu0 0
  %2702 = vmatpush1.bf16.msra.mxu0 0
  %2703 = vmatprep.subr.bf16.mxu0 0
  %2704 = vmatpush1.bf16.msra.mxu0 0
  %2705 = vmatprep.subr.bf16.mxu0 0
  %2706 = vmatpush1.bf16.msra.mxu0 0
  %2707 = vmatprep.subr.bf16.mxu0 0
  %2708 = vmatpush1.bf16.msra.mxu0 0
  %2709 = vmatprep.subr.bf16.mxu0 0
  %2710 = vmatpush1.bf16.msra.mxu0 0
  %2711 = vmatprep.subr.bf16.mxu0 0
  %2712 = vmatpush1.bf16.msra.mxu0 0
  %2713 = vmatprep.subr.bf16.mxu0 0
  %2714 = vmatpush1.bf16.msra.mxu0 0
  %2715 = vmatprep.subr.bf16.mxu0 0
  %2716 = vmatpush1.bf16.msra.mxu0 0
  %2717 = vmatprep.subr.bf16.mxu0 0
  %2718 = vmatpush1.bf16.msra.mxu0 0
  %2719 = vmatprep.subr.bf16.mxu0 0
  %2720 = vmatpush1.bf16.msra.mxu0 0
  %2721 = vmatprep.subr.bf16.mxu0 0
  %2722 = vmatpush1.bf16.msra.mxu0 0
  %2723 = vmatprep.mubr.bf16.mxu0 0
  %2724 = vmatmul.mubr.bf16.gmra.mrb[0].mxu0 %v2689
  %v2725 = vpop.f32.mrb[0].mxu0
  %v2726 = vadd.f32 0.0, %v2725
  %v2727 = vpop.f32.mrb[0].mxu0
  %v2728 = vpop.f32.mrb[0].mxu0
  %v2729 = vpop.f32.mrb[0].mxu0
  %2730 = vdwg.mxu0
  %v2731 = vadd.f32 %v2669, %v2726
  %v2732 = vld [vmem:[#allocation7] sm:$0xff]
  %v2733 = vxor.u32 %v2731, 2147483648
  %v2734 = vmul.f32 %v2733, 1.442695
  %v2735 = vpow.pop %v2734
  %v2736 = vadd.f32 %v2735, 1.0
  %v2737 = vrcp.pop %v2736
  %v2738 = vmul.f32 1.0, %v2737
  %v2739 = vtanh.pop %v2731
  %2741 = vrot.lane.b32.xlu0 %v2732, 32
  %v2742 = vpop.permute.xlu0 %2741
  %v2744 = vmul.f32 %v2738, %v2742
  %2746 = vrot.lane.b32.xlu0 %v2739, 32
  %v2747 = vpop.permute.xlu0 %2746
  %v2749 = vmul.f32 %v2738, %v2747
  %2751 = vrot.lane.b32.xlu0 %v2749, 32
  %v2752 = vpop.permute.xlu0 %2751
  %v2754 = vadd.f32 %v2744, %v2752
  %v2755 = vtanh.pop %v2754
  %2757 = vrot.lane.b32.xlu0 %v2755, 32
  %v2758 = vpop.permute.xlu0 %2757
  %v2760 = vmul.f32 %v2738, %v2758
  %2762 = vrot.lane.b32.xlu0 %v2760, 64
  %v2763 = vpop.permute.xlu0 %2762
  %2765 = vst.msk [vmem:[#allocation6] sm:$0xff] %vm90, %v2763
  %2767 = vrot.lane.b32.xlu0 %v2754, 96
  %v2768 = vpop.permute.xlu0 %2767
  %2770 = vst.msk [vmem:[#allocation7] sm:$0xff] %vm90, %v2768
  %v2771 = vld [vmem:[#allocation2 + $0x8] sm:$0xff]
  %v2772 = vld [vmem:[#allocation6] sm:$0xff]
  %v2773 = vpack.c.bf16 %v2772, %v2772
  %v2774 = vld [vmem:[%s9] sm:$0xf]
  %v2775 = vld [vmem:[%s9 + $0x4] sm:$0xf]
  %v2776 = vld [vmem:[%s9 + $0x8] sm:$0xf]
  %v2777 = vld [vmem:[%s9 + $0xc] sm:$0xf]
  %v2782 = vunpack.c.l.b16 %v2774
  %v2783 = vunpack.c.l.b16 %v2775
  %v2784 = vunpack.c.l.b16 %v2776
  %v2785 = vunpack.c.l.b16 %v2777
  %v2786 = vpack.c.b16 %v2783, %v2782
  %v2787 = vpack.c.b16 %v2785, %v2784
  %v2791 = vsel %vm90, %v2773, 0
  %2793 = vmatprep.subr.bf16.mxu0 0
  %2794 = vmatpush1.bf16.msra.mxu0 %v2786
  %2795 = vmatprep.subr.bf16.mxu0 0
  %2796 = vmatpush1.bf16.msra.mxu0 %v2787
  %2797 = vmatprep.subr.bf16.mxu0 0
  %2798 = vmatpush1.bf16.msra.mxu0 0
  %2799 = vmatprep.subr.bf16.mxu0 0
  %2800 = vmatpush1.bf16.msra.mxu0 0
  %2801 = vmatprep.subr.bf16.mxu0 0
  %2802 = vmatpush1.bf16.msra.mxu0 0
  %2803 = vmatprep.subr.bf16.mxu0 0
  %2804 = vmatpush1.bf16.msra.mxu0 0
  %2805 = vmatprep.subr.bf16.mxu0 0
  %2806 = vmatpush1.bf16.msra.mxu0 0
  %2807 = vmatprep.subr.bf16.mxu0 0
  %2808 = vmatpush1.bf16.msra.mxu0 0
  %2809 = vmatprep.subr.bf16.mxu0 0
  %2810 = vmatpush1.bf16.msra.mxu0 0
  %2811 = vmatprep.subr.bf16.mxu0 0
  %2812 = vmatpush1.bf16.msra.mxu0 0
  %2813 = vmatprep.subr.bf16.mxu0 0
  %2814 = vmatpush1.bf16.msra.mxu0 0
  %2815 = vmatprep.subr.bf16.mxu0 0
  %2816 = vmatpush1.bf16.msra.mxu0 0
  %2817 = vmatprep.subr.bf16.mxu0 0
  %2818 = vmatpush1.bf16.msra.mxu0 0
  %2819 = vmatprep.subr.bf16.mxu0 0
  %2820 = vmatpush1.bf16.msra.mxu0 0
  %2821 = vmatprep.subr.bf16.mxu0 0
  %2822 = vmatpush1.bf16.msra.mxu0 0
  %2823 = vmatprep.subr.bf16.mxu0 0
  %2824 = vmatpush1.bf16.msra.mxu0 0
  %2825 = vmatprep.mubr.bf16.mxu0 0
  %2826 = vmatmul.mubr.bf16.gmra.mrb[0].mxu0 %v2791
  %v2827 = vpop.f32.mrb[0].mxu0
  %v2828 = vadd.f32 0.0, %v2827
  %v2829 = vpop.f32.mrb[0].mxu0
  %v2830 = vpop.f32.mrb[0].mxu0
  %v2831 = vpop.f32.mrb[0].mxu0
  %2832 = vdwg.mxu0
  %v2833 = vadd.f32 %v2771, %v2828
  %v2834 = vld [vmem:[#allocation7] sm:$0xff]
  %v2835 = vxor.u32 %v2833, 2147483648
  %v2836 = vmul.f32 %v2835, 1.442695
  %v2837 = vpow.pop %v2836
  %v2838 = vadd.f32 %v2837, 1.0
  %v2839 = vrcp.pop %v2838
  %v2840 = vmul.f32 1.0, %v2839
  %v2841 = vtanh.pop %v2833
  %2843 = vrot.lane.b32.xlu0 %v2834, 32
  %v2844 = vpop.permute.xlu0 %2843
  %v2846 = vmul.f32 %v2840, %v2844
  %2848 = vrot.lane.b32.xlu0 %v2841, 32
  %v2849 = vpop.permute.xlu0 %2848
  %v2851 = vmul.f32 %v2840, %v2849
  %2853 = vrot.lane.b32.xlu0 %v2851, 32
  %v2854 = vpop.permute.xlu0 %2853
  %v2856 = vadd.f32 %v2846, %v2854
  %v2857 = vtanh.pop %v2856
  %2859 = vrot.lane.b32.xlu0 %v2857, 32
  %v2860 = vpop.permute.xlu0 %2859
  %v2862 = vmul.f32 %v2840, %v2860
  %2864 = vrot.lane.b32.xlu0 %v2862, 64
  %v2865 = vpop.permute.xlu0 %2864
  %2867 = vst.msk [vmem:[#allocation6] sm:$0xff] %vm90, %v2865
  %2869 = vrot.lane.b32.xlu0 %v2856, 96
  %v2870 = vpop.permute.xlu0 %2869
  %2872 = vst.msk [vmem:[#allocation7] sm:$0xff] %vm90, %v2870
  %v2873 = vld [vmem:[#allocation2] sm:$0xff]
  %v2874 = vld [vmem:[#allocation6] sm:$0xff]
  %v2875 = vpack.c.bf16 %v2874, %v2874
  %v2876 = vld [vmem:[%s9] sm:$0xf]
  %v2877 = vld [vmem:[%s9 + $0x4] sm:$0xf]
  %v2878 = vld [vmem:[%s9 + $0x8] sm:$0xf]
  %v2879 = vld [vmem:[%s9 + $0xc] sm:$0xf]
  %v2884 = vunpack.c.l.b16 %v2876
  %v2885 = vunpack.c.l.b16 %v2877
  %v2886 = vunpack.c.l.b16 %v2878
  %v2887 = vunpack.c.l.b16 %v2879
  %v2888 = vpack.c.b16 %v2885, %v2884
  %v2889 = vpack.c.b16 %v2887, %v2886
  %v2893 = vsel %vm90, %v2875, 0
  %2895 = vmatprep.subr.bf16.mxu0 0
  %2896 = vmatpush1.bf16.msra.mxu0 %v2888
  %2897 = vmatprep.subr.bf16.mxu0 0
  %2898 = vmatpush1.bf16.msra.mxu0 %v2889
  %2899 = vmatprep.subr.bf16.mxu0 0
  %2900 = vmatpush1.bf16.msra.mxu0 0
  %2901 = vmatprep.subr.bf16.mxu0 0
  %2902 = vmatpush1.bf16.msra.mxu0 0
  %2903 = vmatprep.subr.bf16.mxu0 0
  %2904 = vmatpush1.bf16.msra.mxu0 0
  %2905 = vmatprep.subr.bf16.mxu0 0
  %2906 = vmatpush1.bf16.msra.mxu0 0
  %2907 = vmatprep.subr.bf16.mxu0 0
  %2908 = vmatpush1.bf16.msra.mxu0 0
  %2909 = vmatprep.subr.bf16.mxu0 0
  %2910 = vmatpush1.bf16.msra.mxu0 0
  %2911 = vmatprep.subr.bf16.mxu0 0
  %2912 = vmatpush1.bf16.msra.mxu0 0
  %2913 = vmatprep.subr.bf16.mxu0 0
  %2914 = vmatpush1.bf16.msra.mxu0 0
  %2915 = vmatprep.subr.bf16.mxu0 0
  %2916 = vmatpush1.bf16.msra.mxu0 0
  %2917 = vmatprep.subr.bf16.mxu0 0
  %2918 = vmatpush1.bf16.msra.mxu0 0
  %2919 = vmatprep.subr.bf16.mxu0 0
  %2920 = vmatpush1.bf16.msra.mxu0 0
  %2921 = vmatprep.subr.bf16.mxu0 0
  %2922 = vmatpush1.bf16.msra.mxu0 0
  %2923 = vmatprep.subr.bf16.mxu0 0
  %2924 = vmatpush1.bf16.msra.mxu0 0
  %2925 = vmatprep.subr.bf16.mxu0 0
  %2926 = vmatpush1.bf16.msra.mxu0 0
  %2927 = vmatprep.mubr.bf16.mxu0 0
  %2928 = vmatmul.mubr.bf16.gmra.mrb[0].mxu0 %v2893
  %v2929 = vpop.f32.mrb[0].mxu0
  %v2930 = vadd.f32 0.0, %v2929
  %v2931 = vpop.f32.mrb[0].mxu0
  %v2932 = vpop.f32.mrb[0].mxu0
  %v2933 = vpop.f32.mrb[0].mxu0
  %2934 = vdwg.mxu0
  %v2935 = vadd.f32 %v2873, %v2930
  %v2936 = vld [vmem:[#allocation7] sm:$0xff]
  %v2937 = vxor.u32 %v2935, 2147483648
  %v2938 = vmul.f32 %v2937, 1.442695
  %v2939 = vpow.pop %v2938
  %v2940 = vadd.f32 %v2939, 1.0
  %v2941 = vrcp.pop %v2940
  %v2942 = vmul.f32 1.0, %v2941
  %v2943 = vtanh.pop %v2935
  %2945 = vrot.lane.b32.xlu0 %v2936, 32
  %v2946 = vpop.permute.xlu0 %2945
  %v2948 = vmul.f32 %v2942, %v2946
  %2950 = vrot.lane.b32.xlu0 %v2943, 32
  %v2951 = vpop.permute.xlu0 %2950
  %v2953 = vmul.f32 %v2942, %v2951
  %2955 = vrot.lane.b32.xlu0 %v2953, 32
  %v2956 = vpop.permute.xlu0 %2955
  %v2958 = vadd.f32 %v2948, %v2956
  %v2959 = vtanh.pop %v2958
  %2961 = vrot.lane.b32.xlu0 %v2959, 32
  %v2962 = vpop.permute.xlu0 %2961
  %v2964 = vmul.f32 %v2942, %v2962
  %2966 = vrot.lane.b32.xlu0 %v2964, 64
  %v2967 = vpop.permute.xlu0 %2966
  %2969 = vst.msk [vmem:[#allocation6] sm:$0xff] %vm90, %v2967
  %2971 = vrot.lane.b32.xlu0 %v2958, 96
  %v2972 = vpop.permute.xlu0 %2971
  %2974 = vst.msk [vmem:[#allocation7] sm:$0xff] %vm90, %v2972
  %v2975 = vld [vmem:[#allocation6] sm:$0xff]
  %2976 = vst.msk [vmem:[%s11] sm:$0xff] %vm90, %v2975
  // Predicated region
  $region46: #{han_forward.1} parent=0 // pred_check
    _
  $region47: #{han_forward.1} parent=0 // pred_check_branch
    %2978 = sbr.rel (0) target = $region49
  $region48: #{han_forward.1} parent=0 // pred_region
    _
  $region49: #{han_forward.1} parent=0 // pred_fallthru
    _
  // Predicated region
  $region50: #{han_forward.1} parent=0 // pred_check
    _
  $region51: #{han_forward.1} parent=0 // pred_check_branch
    %2980 = sbr.rel (0) target = $region53
  $region52: #{han_forward.1} parent=0 // pred_region
    _
  $region53: #{han_forward.1} parent=0 // pred_fallthru
    _

</llo_original>
